<compile_context>
chip_gen: v7x
topology: tpu7x:2x2x1
jax: 0.10.0
libtpu: 0.0.40
codegen_flags: <defaults>
</compile_context>

<pallas_src>
import jax
import jax.numpy as jnp
import numpy as np
from jax.experimental import pallas as pl
from jax.experimental.pallas import tpu as pltpu

C = 32  # channel count fixed by the Manipulator module (Conv2d(32, 32, 3, 1))


def _build_patch_rows(r_ref, x, *, reflect, zero_rows=False):
    """Fill r_ref (H+2, W, 3C) [bf16] with the horizontal im2col of 1-px-padded x.

    r_ref[hp, xcol, kw*C:(kw+1)*C] == Pad(x)[hp, xcol + kw, :]
    Pad = ReflectionPad2d(1) if reflect else ZeroPad2d(1).

    All stores are full-width, sublane-aligned slabs: the column shift and the
    border value are folded into the stored value via a concat, then cast to
    bf16 once.  For zero padding, the top/bottom padded rows are written only
    when zero_rows=True (the slab writes never touch them, so later zero-pad
    builds within the same grid step can skip re-zeroing).
    """
    H, W, _ = x.shape
    Hp = H + 2

    # center tap (kw=1)
    r_ref[1:H + 1, :, C:2 * C] = x.astype(jnp.bfloat16)

    if reflect:
        lcol = x[:, 1:2, :]              # padded col -1 reflects to x col 1
        rcol = x[:, W - 2:W - 1, :]      # padded col W  reflects to x col W-2
    else:
        lcol = jnp.zeros((H, 1, C), jnp.float32)
        rcol = lcol

    # left tap (kw=0): Pad[hp, xcol]   ; right tap (kw=2): Pad[hp, xcol+2]
    left = jnp.concatenate([lcol, x[:, :W - 1, :]], axis=1)     # (H, W, C)
    right = jnp.concatenate([x[:, 1:, :], rcol], axis=1)        # (H, W, C)
    r_ref[1:H + 1, :, 0:C] = left.astype(jnp.bfloat16)
    r_ref[1:H + 1, :, 2 * C:3 * C] = right.astype(jnp.bfloat16)

    if reflect:
        r_ref[0] = r_ref[2]              # padded row -1 reflects to x row 1
        r_ref[Hp - 1] = r_ref[Hp - 3]    # padded row H  reflects to x row H-2
    elif zero_rows:
        zrow = jnp.zeros((W, 3 * C), jnp.bfloat16)
        r_ref[0] = zrow
        r_ref[Hp - 1] = zrow


def _conv3x3(r_ref, w_ref, b_ref):
    """3x3 conv with ONE MXU matmul.

    r_ref: (H+2, W, 3C) bf16 patch rows.
    w_ref: (3C, 3C) bf16 — the three kh weight slabs concatenated along N.
    b_ref: (1, C) f32 bias.

    Y = R_flat @ W_big  (bf16 in, f32 acc), then
      out[h, x] = Y[h*W+x, 0:C] + Y[(h+1)*W+x, C:2C] + Y[(h+2)*W+x, 2C:3C] + b
    i.e. three leading-dim row slices (free) + 32-lane extractions (XLU).
    Returns (H, W, C) f32.
    """
    Hp, W, _ = r_ref.shape
    H = Hp - 2
    n = H * W
    r_flat = r_ref[...].reshape(Hp * W, 3 * C)
    y = jnp.dot(r_flat, w_ref[...], preferred_element_type=jnp.float32)
    out = (y[0:n, 0:C]
           + y[W:W + n, C:2 * C]
           + y[2 * W:2 * W + n, 2 * C:3 * C]
           + b_ref[...])
    return out.reshape(H, W, C)


def _manipulator_kernel(a_ref, b_ref, amp_ref,
                        w1_ref, b1_ref, w2_ref, b2_ref,
                        w3_ref, b3_ref, w4_ref, b4_ref,
                        o_ref, r_ref):
    img = pl.program_id(0)

    # conv1: ReflectionPad2d(1) + Conv2d + ReLU on (shape_b - shape_a)
    d = b_ref[...] - a_ref[...]
    _build_patch_rows(r_ref, d, reflect=True)
    g = jnp.maximum(_conv3x3(r_ref, w1_ref, b1_ref), 0.0)

    # amplification by the per-image scalar (read from SMEM)
    ga = g * amp_ref[img]

    # conv2 first stage: ZeroPad2d(1) + Conv2d.  zero_rows=True re-zeroes the
    # padded top/bottom rows that the reflect build overwrote.
    _build_patch_rows(r_ref, ga, reflect=False, zero_rows=True)
    h = _conv3x3(r_ref, w2_ref, b2_ref)
    # park the final skip (shape_a + h) directly in the output block
    o_ref[...] = a_ref[...] + h

    # ResidualBlock: zero-pad conv + ReLU + zero-pad conv.  Padded rows of R are
    # still zero from the conv2 build; the slab writes never touch them.
    _build_patch_rows(r_ref, h, reflect=False)
    r1 = jnp.maximum(_conv3x3(r_ref, w3_ref, b3_ref), 0.0)
    _build_patch_rows(r_ref, r1, reflect=False)
    r2 = _conv3x3(r_ref, w4_ref, b4_ref)

    # residual + skip:  out = shape_a + h + r2
    o_ref[...] = o_ref[...] + r2


def manipulator_forward(shape_a, shape_b, amp_f, params):
    """shape_a, shape_b: NCHW (B, 32, H, W); amp_f: (B,).  Returns NCHW."""
    B, Cin, H, W = shape_a.shape
    assert Cin == C
    assert H >= 2 and W >= 2, "ReflectionPad2d(1) requires H, W >= 2"

    # TODO(synk): if the caller can hold NHWC end-to-end, drop these transposes
    # (each is a full HBM round trip per tensor).
    a_nhwc = jnp.transpose(shape_a, (0, 2, 3, 1)).astype(jnp.float32)
    b_nhwc = jnp.transpose(shape_b, (0, 2, 3, 1)).astype(jnp.float32)
    amp = jnp.asarray(amp_f, jnp.float32).reshape(B)
    w1, bb1, w2, bb2, w3, bb3, w4, bb4 = params

    def prep_w(w):
        # HWIO (3,3,C,C) -> per-kh (3C, C) slabs -> concat along N -> (3C, 3C) bf16
        wkh = jnp.asarray(w, jnp.float32).reshape(3, 3 * C, C)
        return jnp.concatenate([wkh[0], wkh[1], wkh[2]], axis=1).astype(jnp.bfloat16)

    def prep_b(b):
        return jnp.asarray(b, jnp.float32).reshape(1, C)

    img_spec = pl.BlockSpec((None, H, W, C), lambda g: (g, 0, 0, 0))
    amp_spec = pl.BlockSpec(memory_space=pltpu.MemorySpace.SMEM)  # whole (B,) table
    w_spec = pl.BlockSpec((3 * C, 3 * C), lambda g: (0, 0))
    b_spec = pl.BlockSpec((1, C), lambda g: (0, 0))

    out_nhwc = pl.pallas_call(
        _manipulator_kernel,
        out_shape=jax.ShapeDtypeStruct((B, H, W, C), jnp.float32),
        grid=(B,),
        in_specs=[img_spec, img_spec, amp_spec,
                  w_spec, b_spec, w_spec, b_spec,
                  w_spec, b_spec, w_spec, b_spec],
        out_specs=img_spec,
        scratch_shapes=[pltpu.VMEM((H + 2, W, 3 * C), jnp.bfloat16)],  # patch rows
        compiler_params=pltpu.CompilerParams(
            dimension_semantics=("parallel",),
            # v5e's scoped-VMEM default is 16 MiB; 32 MiB fits every generation
            # (v7x physical VMEM is 64 MiB) and leaves ample pipeline headroom.
            vmem_limit_bytes=32 * 1024 * 1024),
    )(a_nhwc, b_nhwc, amp,
      prep_w(w1), prep_b(bb1), prep_w(w2), prep_b(bb2),
      prep_w(w3), prep_b(bb3), prep_w(w4), prep_b(bb4))
    return jnp.transpose(out_nhwc, (0, 3, 1, 2))


# ------------------------- pure-JAX reference -------------------------

def _conv_ref(x, w, b, reflect=False, bf16_operands=False):
    if bf16_operands:  # mirror the kernel's MXU precision (bf16 in, f32 acc)
        x = x.astype(jnp.bfloat16).astype(jnp.float32)
        w = jnp.asarray(w, jnp.float32).astype(jnp.bfloat16).astype(jnp.float32)
    mode = "reflect" if reflect else "constant"
    xp = jnp.pad(x, ((0, 0), (1, 1), (1, 1), (0, 0)), mode=mode)
    y = jax.lax.conv_general_dilated(
        xp, w, window_strides=(1, 1), padding="VALID",
        dimension_numbers=("NHWC", "HWIO", "NHWC"),
        precision=jax.lax.Precision.HIGHEST)
    return y + b


def manipulator_ref(shape_a, shape_b, amp_f, params, bf16_operands=False):
    w1, b1, w2, b2, w3, b3, w4, b4 = params
    a = jnp.transpose(shape_a, (0, 2, 3, 1)).astype(jnp.float32)
    b = jnp.transpose(shape_b, (0, 2, 3, 1)).astype(jnp.float32)
    g = jax.nn.relu(_conv_ref(b - a, w1, b1, reflect=True, bf16_operands=bf16_operands))
    ga = g * amp_f[:, None, None, None]
    h = _conv_ref(ga, w2, b2, bf16_operands=bf16_operands)
    r1 = jax.nn.relu(_conv_ref(h, w3, b3, bf16_operands=bf16_operands))
    r2 = _conv_ref(r1, w4, b4, bf16_operands=bf16_operands)
    out = a + h + r2
    return jnp.transpose(out, (0, 3, 1, 2))


if __name__ == "__main__":
    key = jax.random.PRNGKey(0)
    B, H, W = 4, 16, 16
    ks = jax.random.split(key, 11)

    shape_a = jax.random.normal(ks[0], (B, C, H, W), jnp.float32)
    shape_b = jax.random.normal(ks[1], (B, C, H, W), jnp.float32)
    amp_f = jax.random.uniform(ks[2], (B,), jnp.float32, 1.0, 3.0)

    def mk_w(k):  # HWIO
        return 0.05 * jax.random.normal(k, (3, 3, C, C), jnp.float32)

    def mk_b(k):
        return 0.05 * jax.random.normal(k, (C,), jnp.float32)

    params = (mk_w(ks[3]), mk_b(ks[4]),   # conv1
              mk_w(ks[5]), mk_b(ks[6]),   # conv2 first conv
              mk_w(ks[7]), mk_b(ks[8]),   # residual block conv 1
              mk_w(ks[9]), mk_b(ks[10]))  # residual block conv 2

    out = manipulator_forward(shape_a, shape_b, amp_f, params)
    jax.block_until_ready(out)
    assert out.shape == (B, C, H, W)

    # Strict check vs a reference with matching MXU precision (bf16 operands, f32 acc).
    ref_matched = manipulator_ref(shape_a, shape_b, amp_f, params, bf16_operands=True)
    np.testing.assert_allclose(np.asarray(out), np.asarray(ref_matched),
                               atol=2e-3, rtol=2e-3)

    # Sanity check vs the full-f32 reference (loose: bf16 MXU operands in the kernel).
    ref_f32 = manipulator_ref(shape_a, shape_b, amp_f, params, bf16_operands=False)
    np.testing.assert_allclose(np.asarray(out), np.asarray(ref_f32),
                               atol=1e-1, rtol=1e-1)

    print("KERNEL_OK")
</pallas_src>

<mosaic_0001>
module attributes {stable_mosaic.version = 11 : i64} {
  func.func @_manipulator_kernel(%arg0: i32, %arg1: memref<1x16x16x32xf32, #tpu.memory_space<vmem>>, %arg2: memref<1x16x16x32xf32, #tpu.memory_space<vmem>>, %arg3: memref<4xf32, #tpu.memory_space<smem>>, %arg4: memref<96x96xbf16, #tpu.memory_space<vmem>>, %arg5: memref<1x32xf32, #tpu.memory_space<vmem>>, %arg6: memref<96x96xbf16, #tpu.memory_space<vmem>>, %arg7: memref<1x32xf32, #tpu.memory_space<vmem>>, %arg8: memref<96x96xbf16, #tpu.memory_space<vmem>>, %arg9: memref<1x32xf32, #tpu.memory_space<vmem>>, %arg10: memref<96x96xbf16, #tpu.memory_space<vmem>>, %arg11: memref<1x32xf32, #tpu.memory_space<vmem>>, %arg12: memref<1x16x16x32xf32, #tpu.memory_space<vmem>>, %arg13: memref<18x16x96xbf16, #tpu.memory_space<vmem>>) attributes {dimension_semantics = [#tpu.dimension_semantics<parallel>], iteration_bounds = array<i64: 4>, scalar_prefetch = 0 : i64, scratch_operands = 1 : i64, tpu.core_type = #tpu.core_type<tc>, window_params = [{transform_indices = @transform_0, window_bounds = array<i64: 1, 16, 16, 32>}, {transform_indices = @transform_1, window_bounds = array<i64: 1, 16, 16, 32>}, {transform_indices = @transform_2, window_bounds = array<i64: 4>}, {pipeline_mode = #tpu.pipeline_mode<synchronous>, transform_indices = @transform_3, window_bounds = array<i64: 96, 96>}, {pipeline_mode = #tpu.pipeline_mode<synchronous>, transform_indices = @transform_4, window_bounds = array<i64: 1, 32>}, {pipeline_mode = #tpu.pipeline_mode<synchronous>, transform_indices = @transform_5, window_bounds = array<i64: 96, 96>}, {pipeline_mode = #tpu.pipeline_mode<synchronous>, transform_indices = @transform_6, window_bounds = array<i64: 1, 32>}, {pipeline_mode = #tpu.pipeline_mode<synchronous>, transform_indices = @transform_7, window_bounds = array<i64: 96, 96>}, {pipeline_mode = #tpu.pipeline_mode<synchronous>, transform_indices = @transform_8, window_bounds = array<i64: 1, 32>}, {pipeline_mode = #tpu.pipeline_mode<synchronous>, transform_indices = @transform_9, window_bounds = array<i64: 96, 96>}, {pipeline_mode = #tpu.pipeline_mode<synchronous>, transform_indices = @transform_10, window_bounds = array<i64: 1, 32>}, {transform_indices = @transform_11, window_bounds = array<i64: 1, 16, 16, 32>}]} {
    %c0 = arith.constant 0 : index
    %c0_0 = arith.constant 0 : index
    %c0_1 = arith.constant 0 : index
    %c0_2 = arith.constant 0 : index
    %0 = vector.load %arg2[%c0, %c0_0, %c0_1, %c0_2] : memref<1x16x16x32xf32, #tpu.memory_space<vmem>>, vector<1x16x16x32xf32>
    %1 = vector.shape_cast %0 : vector<1x16x16x32xf32> to vector<16x16x32xf32>
    %c0_3 = arith.constant 0 : index
    %c0_4 = arith.constant 0 : index
    %c0_5 = arith.constant 0 : index
    %c0_6 = arith.constant 0 : index
    %2 = vector.load %arg1[%c0_3, %c0_4, %c0_5, %c0_6] : memref<1x16x16x32xf32, #tpu.memory_space<vmem>>, vector<1x16x16x32xf32>
    %3 = vector.shape_cast %2 : vector<1x16x16x32xf32> to vector<16x16x32xf32>
    %4 = arith.subf %1, %3 : vector<16x16x32xf32>
    %5 = arith.truncf %4 : vector<16x16x32xf32> to vector<16x16x32xbf16>
    %c1 = arith.constant 1 : index
    %c0_7 = arith.constant 0 : index
    %c32 = arith.constant 32 : index
    %6 = vector.load %arg13[%c1, %c0_7, %c32] : memref<18x16x96xbf16, #tpu.memory_space<vmem>>, vector<16x16x32xbf16>
    tpu.vector_store %arg13[%c1, %c0_7, %c32], %5 {strides = array<i32>} : memref<18x16x96xbf16, #tpu.memory_space<vmem>>, vector<16x16x32xbf16>,
    %7 = vector.extract_strided_slice %4 {offsets = [0, 1, 0], sizes = [16, 1, 32], strides = [1, 1, 1]} : vector<16x16x32xf32> to vector<16x1x32xf32>
    %8 = vector.extract_strided_slice %4 {offsets = [0, 14, 0], sizes = [16, 1, 32], strides = [1, 1, 1]} : vector<16x16x32xf32> to vector<16x1x32xf32>
    %9 = vector.extract_strided_slice %4 {offsets = [0, 0, 0], sizes = [16, 15, 32], strides = [1, 1, 1]} : vector<16x16x32xf32> to vector<16x15x32xf32>
    %10 = tpu.concatenate %7, %9 in 1 : vector<16x1x32xf32>, vector<16x15x32xf32> -> vector<16x16x32xf32>
    %11 = vector.extract_strided_slice %4 {offsets = [0, 1, 0], sizes = [16, 15, 32], strides = [1, 1, 1]} : vector<16x16x32xf32> to vector<16x15x32xf32>
    %12 = tpu.concatenate %11, %8 in 1 : vector<16x15x32xf32>, vector<16x1x32xf32> -> vector<16x16x32xf32>
    %13 = arith.truncf %10 : vector<16x16x32xf32> to vector<16x16x32xbf16>
    %c1_8 = arith.constant 1 : index
    %c0_9 = arith.constant 0 : index
    %c0_10 = arith.constant 0 : index
    %14 = vector.load %arg13[%c1_8, %c0_9, %c0_10] : memref<18x16x96xbf16, #tpu.memory_space<vmem>>, vector<16x16x32xbf16>
    tpu.vector_store %arg13[%c1_8, %c0_9, %c0_10], %13 {strides = array<i32>} : memref<18x16x96xbf16, #tpu.memory_space<vmem>>, vector<16x16x32xbf16>,
    %15 = arith.truncf %12 : vector<16x16x32xf32> to vector<16x16x32xbf16>
    %c1_11 = arith.constant 1 : index
    %c0_12 = arith.constant 0 : index
    %c64 = arith.constant 64 : index
    %16 = vector.load %arg13[%c1_11, %c0_12, %c64] : memref<18x16x96xbf16, #tpu.memory_space<vmem>>, vector<16x16x32xbf16>
    tpu.vector_store %arg13[%c1_11, %c0_12, %c64], %15 {strides = array<i32>} : memref<18x16x96xbf16, #tpu.memory_space<vmem>>, vector<16x16x32xbf16>,
    %c2 = arith.constant 2 : index
    %c0_13 = arith.constant 0 : index
    %c0_14 = arith.constant 0 : index
    %17 = vector.load %arg13[%c2, %c0_13, %c0_14] : memref<18x16x96xbf16, #tpu.memory_space<vmem>>, vector<1x16x96xbf16>
    %18 = vector.shape_cast %17 : vector<1x16x96xbf16> to vector<16x96xbf16>
    %c0_15 = arith.constant 0 : index
    %c0_16 = arith.constant 0 : index
    %c0_17 = arith.constant 0 : index
    %19 = vector.load %arg13[%c0_15, %c0_16, %c0_17] : memref<18x16x96xbf16, #tpu.memory_space<vmem>>, vector<1x16x96xbf16>
    %20 = vector.shape_cast %19 : vector<1x16x96xbf16> to vector<16x96xbf16>
    %21 = vector.shape_cast %18 : vector<16x96xbf16> to vector<1x16x96xbf16>
    tpu.vector_store %arg13[%c0_15, %c0_16, %c0_17], %21 {strides = array<i32>} : memref<18x16x96xbf16, #tpu.memory_space<vmem>>, vector<1x16x96xbf16>,
    %c15 = arith.constant 15 : index
    %c0_18 = arith.constant 0 : index
    %c0_19 = arith.constant 0 : index
    %22 = vector.load %arg13[%c15, %c0_18, %c0_19] : memref<18x16x96xbf16, #tpu.memory_space<vmem>>, vector<1x16x96xbf16>
    %23 = vector.shape_cast %22 : vector<1x16x96xbf16> to vector<16x96xbf16>
    %c17 = arith.constant 17 : index
    %c0_20 = arith.constant 0 : index
    %c0_21 = arith.constant 0 : index
    %24 = vector.load %arg13[%c17, %c0_20, %c0_21] : memref<18x16x96xbf16, #tpu.memory_space<vmem>>, vector<1x16x96xbf16>
    %25 = vector.shape_cast %24 : vector<1x16x96xbf16> to vector<16x96xbf16>
    %26 = vector.shape_cast %23 : vector<16x96xbf16> to vector<1x16x96xbf16>
    tpu.vector_store %arg13[%c17, %c0_20, %c0_21], %26 {strides = array<i32>} : memref<18x16x96xbf16, #tpu.memory_space<vmem>>, vector<1x16x96xbf16>,
    %c0_22 = arith.constant 0 : index
    %c0_23 = arith.constant 0 : index
    %c0_24 = arith.constant 0 : index
    %27 = vector.load %arg13[%c0_22, %c0_23, %c0_24] : memref<18x16x96xbf16, #tpu.memory_space<vmem>>, vector<18x16x96xbf16>
    %28 = vector.shape_cast %27 : vector<18x16x96xbf16> to vector<288x96xbf16>
    %c0_25 = arith.constant 0 : index
    %c0_26 = arith.constant 0 : index
    %29 = vector.load %arg4[%c0_25, %c0_26] : memref<96x96xbf16, #tpu.memory_space<vmem>>, vector<96x96xbf16>
    %cst = arith.constant dense<0.000000e+00> : vector<288x96xf32>
    %30 = tpu.matmul %28, %29, %cst {dimension_numbers = #tpu.dot_dimension_numbers<[1], [0], [0], [1], [0, 0, 1, 1], [], []>} : vector<288x96xbf16>, vector<96x96xbf16>, vector<288x96xf32> -> vector<288x96xf32>
    %31 = vector.extract_strided_slice %30 {offsets = [0, 0], sizes = [256, 32], strides = [1, 1]} : vector<288x96xf32> to vector<256x32xf32>
    %32 = vector.extract_strided_slice %30 {offsets = [16, 32], sizes = [256, 32], strides = [1, 1]} : vector<288x96xf32> to vector<256x32xf32>
    %33 = arith.addf %31, %32 : vector<256x32xf32>
    %34 = vector.extract_strided_slice %30 {offsets = [32, 64], sizes = [256, 32], strides = [1, 1]} : vector<288x96xf32> to vector<256x32xf32>
    %35 = arith.addf %33, %34 : vector<256x32xf32>
    %c0_27 = arith.constant 0 : index
    %c0_28 = arith.constant 0 : index
    %36 = vector.load %arg5[%c0_27, %c0_28] : memref<1x32xf32, #tpu.memory_space<vmem>>, vector<1x32xf32>
    %37 = vector.broadcast %36 : vector<1x32xf32> to vector<256x32xf32>
    %38 = arith.addf %35, %37 : vector<256x32xf32>
    %39 = vector.shape_cast %38 : vector<256x32xf32> to vector<16x16x32xf32>
    %cst_29 = arith.constant 0.000000e+00 : f32
    %40 = vector.broadcast %cst_29 : f32 to vector<16x16x32xf32>
    %41 = arith.maximumf %39, %40 : vector<16x16x32xf32>
    %42 = arith.index_cast %arg0 : i32 to index
    %43 = memref.load %arg3[%42] : memref<4xf32, #tpu.memory_space<smem>>
    %44 = vector.broadcast %43 : f32 to vector<16x16x32xf32>
    %45 = arith.mulf %41, %44 : vector<16x16x32xf32>
    %46 = arith.truncf %45 : vector<16x16x32xf32> to vector<16x16x32xbf16>
    %c1_30 = arith.constant 1 : index
    %c0_31 = arith.constant 0 : index
    %c32_32 = arith.constant 32 : index
    %47 = vector.load %arg13[%c1_30, %c0_31, %c32_32] : memref<18x16x96xbf16, #tpu.memory_space<vmem>>, vector<16x16x32xbf16>
    tpu.vector_store %arg13[%c1_30, %c0_31, %c32_32], %46 {strides = array<i32>} : memref<18x16x96xbf16, #tpu.memory_space<vmem>>, vector<16x16x32xbf16>,
    %cst_33 = arith.constant 0.000000e+00 : f32
    %48 = vector.broadcast %cst_33 : f32 to vector<16x1x32xf32>
    %49 = vector.extract_strided_slice %45 {offsets = [0, 0, 0], sizes = [16, 15, 32], strides = [1, 1, 1]} : vector<16x16x32xf32> to vector<16x15x32xf32>
    %50 = tpu.concatenate %48, %49 in 1 : vector<16x1x32xf32>, vector<16x15x32xf32> -> vector<16x16x32xf32>
    %51 = vector.extract_strided_slice %45 {offsets = [0, 1, 0], sizes = [16, 15, 32], strides = [1, 1, 1]} : vector<16x16x32xf32> to vector<16x15x32xf32>
    %52 = tpu.concatenate %51, %48 in 1 : vector<16x15x32xf32>, vector<16x1x32xf32> -> vector<16x16x32xf32>
    %53 = arith.truncf %50 : vector<16x16x32xf32> to vector<16x16x32xbf16>
    %c1_34 = arith.constant 1 : index
    %c0_35 = arith.constant 0 : index
    %c0_36 = arith.constant 0 : index
    %54 = vector.load %arg13[%c1_34, %c0_35, %c0_36] : memref<18x16x96xbf16, #tpu.memory_space<vmem>>, vector<16x16x32xbf16>
    tpu.vector_store %arg13[%c1_34, %c0_35, %c0_36], %53 {strides = array<i32>} : memref<18x16x96xbf16, #tpu.memory_space<vmem>>, vector<16x16x32xbf16>,
    %55 = arith.truncf %52 : vector<16x16x32xf32> to vector<16x16x32xbf16>
    %c1_37 = arith.constant 1 : index
    %c0_38 = arith.constant 0 : index
    %c64_39 = arith.constant 64 : index
    %56 = vector.load %arg13[%c1_37, %c0_38, %c64_39] : memref<18x16x96xbf16, #tpu.memory_space<vmem>>, vector<16x16x32xbf16>
    tpu.vector_store %arg13[%c1_37, %c0_38, %c64_39], %55 {strides = array<i32>} : memref<18x16x96xbf16, #tpu.memory_space<vmem>>, vector<16x16x32xbf16>,
    %cst_40 = arith.constant 0.000000e+00 : bf16
    %57 = vector.broadcast %cst_40 : bf16 to vector<16x96xbf16>
    %c0_41 = arith.constant 0 : index
    %c0_42 = arith.constant 0 : index
    %c0_43 = arith.constant 0 : index
    %58 = vector.load %arg13[%c0_41, %c0_42, %c0_43] : memref<18x16x96xbf16, #tpu.memory_space<vmem>>, vector<1x16x96xbf16>
    %59 = vector.shape_cast %58 : vector<1x16x96xbf16> to vector<16x96xbf16>
    %60 = vector.shape_cast %57 : vector<16x96xbf16> to vector<1x16x96xbf16>
    tpu.vector_store %arg13[%c0_41, %c0_42, %c0_43], %60 {strides = array<i32>} : memref<18x16x96xbf16, #tpu.memory_space<vmem>>, vector<1x16x96xbf16>,
    %c17_44 = arith.constant 17 : index
    %c0_45 = arith.constant 0 : index
    %c0_46 = arith.constant 0 : index
    %61 = vector.load %arg13[%c17_44, %c0_45, %c0_46] : memref<18x16x96xbf16, #tpu.memory_space<vmem>>, vector<1x16x96xbf16>
    %62 = vector.shape_cast %61 : vector<1x16x96xbf16> to vector<16x96xbf16>
    %63 = vector.shape_cast %57 : vector<16x96xbf16> to vector<1x16x96xbf16>
    tpu.vector_store %arg13[%c17_44, %c0_45, %c0_46], %63 {strides = array<i32>} : memref<18x16x96xbf16, #tpu.memory_space<vmem>>, vector<1x16x96xbf16>,
    %c0_47 = arith.constant 0 : index
    %c0_48 = arith.constant 0 : index
    %c0_49 = arith.constant 0 : index
    %64 = vector.load %arg13[%c0_47, %c0_48, %c0_49] : memref<18x16x96xbf16, #tpu.memory_space<vmem>>, vector<18x16x96xbf16>
    %65 = vector.shape_cast %64 : vector<18x16x96xbf16> to vector<288x96xbf16>
    %c0_50 = arith.constant 0 : index
    %c0_51 = arith.constant 0 : index
    %66 = vector.load %arg6[%c0_50, %c0_51] : memref<96x96xbf16, #tpu.memory_space<vmem>>, vector<96x96xbf16>
    %cst_52 = arith.constant dense<0.000000e+00> : vector<288x96xf32>
    %67 = tpu.matmul %65, %66, %cst_52 {dimension_numbers = #tpu.dot_dimension_numbers<[1], [0], [0], [1], [0, 0, 1, 1], [], []>} : vector<288x96xbf16>, vector<96x96xbf16>, vector<288x96xf32> -> vector<288x96xf32>
    %68 = vector.extract_strided_slice %67 {offsets = [0, 0], sizes = [256, 32], strides = [1, 1]} : vector<288x96xf32> to vector<256x32xf32>
    %69 = vector.extract_strided_slice %67 {offsets = [16, 32], sizes = [256, 32], strides = [1, 1]} : vector<288x96xf32> to vector<256x32xf32>
    %70 = arith.addf %68, %69 : vector<256x32xf32>
    %71 = vector.extract_strided_slice %67 {offsets = [32, 64], sizes = [256, 32], strides = [1, 1]} : vector<288x96xf32> to vector<256x32xf32>
    %72 = arith.addf %70, %71 : vector<256x32xf32>
    %c0_53 = arith.constant 0 : index
    %c0_54 = arith.constant 0 : index
    %73 = vector.load %arg7[%c0_53, %c0_54] : memref<1x32xf32, #tpu.memory_space<vmem>>, vector<1x32xf32>
    %74 = vector.broadcast %73 : vector<1x32xf32> to vector<256x32xf32>
    %75 = arith.addf %72, %74 : vector<256x32xf32>
    %76 = vector.shape_cast %75 : vector<256x32xf32> to vector<16x16x32xf32>
    %c0_55 = arith.constant 0 : index
    %c0_56 = arith.constant 0 : index
    %c0_57 = arith.constant 0 : index
    %c0_58 = arith.constant 0 : index
    %77 = vector.load %arg1[%c0_55, %c0_56, %c0_57, %c0_58] : memref<1x16x16x32xf32, #tpu.memory_space<vmem>>, vector<1x16x16x32xf32>
    %78 = vector.shape_cast %77 : vector<1x16x16x32xf32> to vector<16x16x32xf32>
    %79 = arith.addf %78, %76 : vector<16x16x32xf32>
    %c0_59 = arith.constant 0 : index
    %c0_60 = arith.constant 0 : index
    %c0_61 = arith.constant 0 : index
    %c0_62 = arith.constant 0 : index
    %80 = vector.load %arg12[%c0_59, %c0_60, %c0_61, %c0_62] : memref<1x16x16x32xf32, #tpu.memory_space<vmem>>, vector<1x16x16x32xf32>
    %81 = vector.shape_cast %80 : vector<1x16x16x32xf32> to vector<16x16x32xf32>
    %82 = vector.shape_cast %79 : vector<16x16x32xf32> to vector<1x16x16x32xf32>
    tpu.vector_store %arg12[%c0_59, %c0_60, %c0_61, %c0_62], %82 {strides = array<i32>} : memref<1x16x16x32xf32, #tpu.memory_space<vmem>>, vector<1x16x16x32xf32>,
    %83 = arith.truncf %76 : vector<16x16x32xf32> to vector<16x16x32xbf16>
    %c1_63 = arith.constant 1 : index
    %c0_64 = arith.constant 0 : index
    %c32_65 = arith.constant 32 : index
    %84 = vector.load %arg13[%c1_63, %c0_64, %c32_65] : memref<18x16x96xbf16, #tpu.memory_space<vmem>>, vector<16x16x32xbf16>
    tpu.vector_store %arg13[%c1_63, %c0_64, %c32_65], %83 {strides = array<i32>} : memref<18x16x96xbf16, #tpu.memory_space<vmem>>, vector<16x16x32xbf16>,
    %cst_66 = arith.constant 0.000000e+00 : f32
    %85 = vector.broadcast %cst_66 : f32 to vector<16x1x32xf32>
    %86 = vector.extract_strided_slice %76 {offsets = [0, 0, 0], sizes = [16, 15, 32], strides = [1, 1, 1]} : vector<16x16x32xf32> to vector<16x15x32xf32>
    %87 = tpu.concatenate %85, %86 in 1 : vector<16x1x32xf32>, vector<16x15x32xf32> -> vector<16x16x32xf32>
    %88 = vector.extract_strided_slice %76 {offsets = [0, 1, 0], sizes = [16, 15, 32], strides = [1, 1, 1]} : vector<16x16x32xf32> to vector<16x15x32xf32>
    %89 = tpu.concatenate %88, %85 in 1 : vector<16x15x32xf32>, vector<16x1x32xf32> -> vector<16x16x32xf32>
    %90 = arith.truncf %87 : vector<16x16x32xf32> to vector<16x16x32xbf16>
    %c1_67 = arith.constant 1 : index
    %c0_68 = arith.constant 0 : index
    %c0_69 = arith.constant 0 : index
    %91 = vector.load %arg13[%c1_67, %c0_68, %c0_69] : memref<18x16x96xbf16, #tpu.memory_space<vmem>>, vector<16x16x32xbf16>
    tpu.vector_store %arg13[%c1_67, %c0_68, %c0_69], %90 {strides = array<i32>} : memref<18x16x96xbf16, #tpu.memory_space<vmem>>, vector<16x16x32xbf16>,
    %92 = arith.truncf %89 : vector<16x16x32xf32> to vector<16x16x32xbf16>
    %c1_70 = arith.constant 1 : index
    %c0_71 = arith.constant 0 : index
    %c64_72 = arith.constant 64 : index
    %93 = vector.load %arg13[%c1_70, %c0_71, %c64_72] : memref<18x16x96xbf16, #tpu.memory_space<vmem>>, vector<16x16x32xbf16>
    tpu.vector_store %arg13[%c1_70, %c0_71, %c64_72], %92 {strides = array<i32>} : memref<18x16x96xbf16, #tpu.memory_space<vmem>>, vector<16x16x32xbf16>,
    %c0_73 = arith.constant 0 : index
    %c0_74 = arith.constant 0 : index
    %c0_75 = arith.constant 0 : index
    %94 = vector.load %arg13[%c0_73, %c0_74, %c0_75] : memref<18x16x96xbf16, #tpu.memory_space<vmem>>, vector<18x16x96xbf16>
    %95 = vector.shape_cast %94 : vector<18x16x96xbf16> to vector<288x96xbf16>
    %c0_76 = arith.constant 0 : index
    %c0_77 = arith.constant 0 : index
    %96 = vector.load %arg8[%c0_76, %c0_77] : memref<96x96xbf16, #tpu.memory_space<vmem>>, vector<96x96xbf16>
    %cst_78 = arith.constant dense<0.000000e+00> : vector<288x96xf32>
    %97 = tpu.matmul %95, %96, %cst_78 {dimension_numbers = #tpu.dot_dimension_numbers<[1], [0], [0], [1], [0, 0, 1, 1], [], []>} : vector<288x96xbf16>, vector<96x96xbf16>, vector<288x96xf32> -> vector<288x96xf32>
    %98 = vector.extract_strided_slice %97 {offsets = [0, 0], sizes = [256, 32], strides = [1, 1]} : vector<288x96xf32> to vector<256x32xf32>
    %99 = vector.extract_strided_slice %97 {offsets = [16, 32], sizes = [256, 32], strides = [1, 1]} : vector<288x96xf32> to vector<256x32xf32>
    %100 = arith.addf %98, %99 : vector<256x32xf32>
    %101 = vector.extract_strided_slice %97 {offsets = [32, 64], sizes = [256, 32], strides = [1, 1]} : vector<288x96xf32> to vector<256x32xf32>
    %102 = arith.addf %100, %101 : vector<256x32xf32>
    %c0_79 = arith.constant 0 : index
    %c0_80 = arith.constant 0 : index
    %103 = vector.load %arg9[%c0_79, %c0_80] : memref<1x32xf32, #tpu.memory_space<vmem>>, vector<1x32xf32>
    %104 = vector.broadcast %103 : vector<1x32xf32> to vector<256x32xf32>
    %105 = arith.addf %102, %104 : vector<256x32xf32>
    %106 = vector.shape_cast %105 : vector<256x32xf32> to vector<16x16x32xf32>
    %cst_81 = arith.constant 0.000000e+00 : f32
    %107 = vector.broadcast %cst_81 : f32 to vector<16x16x32xf32>
    %108 = arith.maximumf %106, %107 : vector<16x16x32xf32>
    %109 = arith.truncf %108 : vector<16x16x32xf32> to vector<16x16x32xbf16>
    %c1_82 = arith.constant 1 : index
    %c0_83 = arith.constant 0 : index
    %c32_84 = arith.constant 32 : index
    %110 = vector.load %arg13[%c1_82, %c0_83, %c32_84] : memref<18x16x96xbf16, #tpu.memory_space<vmem>>, vector<16x16x32xbf16>
    tpu.vector_store %arg13[%c1_82, %c0_83, %c32_84], %109 {strides = array<i32>} : memref<18x16x96xbf16, #tpu.memory_space<vmem>>, vector<16x16x32xbf16>,
    %cst_85 = arith.constant 0.000000e+00 : f32
    %111 = vector.broadcast %cst_85 : f32 to vector<16x1x32xf32>
    %112 = vector.extract_strided_slice %108 {offsets = [0, 0, 0], sizes = [16, 15, 32], strides = [1, 1, 1]} : vector<16x16x32xf32> to vector<16x15x32xf32>
    %113 = tpu.concatenate %111, %112 in 1 : vector<16x1x32xf32>, vector<16x15x32xf32> -> vector<16x16x32xf32>
    %114 = vector.extract_strided_slice %108 {offsets = [0, 1, 0], sizes = [16, 15, 32], strides = [1, 1, 1]} : vector<16x16x32xf32> to vector<16x15x32xf32>
    %115 = tpu.concatenate %114, %111 in 1 : vector<16x15x32xf32>, vector<16x1x32xf32> -> vector<16x16x32xf32>
    %116 = arith.truncf %113 : vector<16x16x32xf32> to vector<16x16x32xbf16>
    %c1_86 = arith.constant 1 : index
    %c0_87 = arith.constant 0 : index
    %c0_88 = arith.constant 0 : index
    %117 = vector.load %arg13[%c1_86, %c0_87, %c0_88] : memref<18x16x96xbf16, #tpu.memory_space<vmem>>, vector<16x16x32xbf16>
    tpu.vector_store %arg13[%c1_86, %c0_87, %c0_88], %116 {strides = array<i32>} : memref<18x16x96xbf16, #tpu.memory_space<vmem>>, vector<16x16x32xbf16>,
    %118 = arith.truncf %115 : vector<16x16x32xf32> to vector<16x16x32xbf16>
    %c1_89 = arith.constant 1 : index
    %c0_90 = arith.constant 0 : index
    %c64_91 = arith.constant 64 : index
    %119 = vector.load %arg13[%c1_89, %c0_90, %c64_91] : memref<18x16x96xbf16, #tpu.memory_space<vmem>>, vector<16x16x32xbf16>
    tpu.vector_store %arg13[%c1_89, %c0_90, %c64_91], %118 {strides = array<i32>} : memref<18x16x96xbf16, #tpu.memory_space<vmem>>, vector<16x16x32xbf16>,
    %c0_92 = arith.constant 0 : index
    %c0_93 = arith.constant 0 : index
    %c0_94 = arith.constant 0 : index
    %120 = vector.load %arg13[%c0_92, %c0_93, %c0_94] : memref<18x16x96xbf16, #tpu.memory_space<vmem>>, vector<18x16x96xbf16>
    %121 = vector.shape_cast %120 : vector<18x16x96xbf16> to vector<288x96xbf16>
    %c0_95 = arith.constant 0 : index
    %c0_96 = arith.constant 0 : index
    %122 = vector.load %arg10[%c0_95, %c0_96] : memref<96x96xbf16, #tpu.memory_space<vmem>>, vector<96x96xbf16>
    %cst_97 = arith.constant dense<0.000000e+00> : vector<288x96xf32>
    %123 = tpu.matmul %121, %122, %cst_97 {dimension_numbers = #tpu.dot_dimension_numbers<[1], [0], [0], [1], [0, 0, 1, 1], [], []>} : vector<288x96xbf16>, vector<96x96xbf16>, vector<288x96xf32> -> vector<288x96xf32>
    %124 = vector.extract_strided_slice %123 {offsets = [0, 0], sizes = [256, 32], strides = [1, 1]} : vector<288x96xf32> to vector<256x32xf32>
    %125 = vector.extract_strided_slice %123 {offsets = [16, 32], sizes = [256, 32], strides = [1, 1]} : vector<288x96xf32> to vector<256x32xf32>
    %126 = arith.addf %124, %125 : vector<256x32xf32>
    %127 = vector.extract_strided_slice %123 {offsets = [32, 64], sizes = [256, 32], strides = [1, 1]} : vector<288x96xf32> to vector<256x32xf32>
    %128 = arith.addf %126, %127 : vector<256x32xf32>
    %c0_98 = arith.constant 0 : index
    %c0_99 = arith.constant 0 : index
    %129 = vector.load %arg11[%c0_98, %c0_99] : memref<1x32xf32, #tpu.memory_space<vmem>>, vector<1x32xf32>
    %130 = vector.broadcast %129 : vector<1x32xf32> to vector<256x32xf32>
    %131 = arith.addf %128, %130 : vector<256x32xf32>
    %132 = vector.shape_cast %131 : vector<256x32xf32> to vector<16x16x32xf32>
    %c0_100 = arith.constant 0 : index
    %c0_101 = arith.constant 0 : index
    %c0_102 = arith.constant 0 : index
    %c0_103 = arith.constant 0 : index
    %133 = vector.load %arg12[%c0_100, %c0_101, %c0_102, %c0_103] : memref<1x16x16x32xf32, #tpu.memory_space<vmem>>, vector<1x16x16x32xf32>
    %134 = vector.shape_cast %133 : vector<1x16x16x32xf32> to vector<16x16x32xf32>
    %135 = arith.addf %134, %132 : vector<16x16x32xf32>
    %c0_104 = arith.constant 0 : index
    %c0_105 = arith.constant 0 : index
    %c0_106 = arith.constant 0 : index
    %c0_107 = arith.constant 0 : index
    %136 = vector.load %arg12[%c0_104, %c0_105, %c0_106, %c0_107] : memref<1x16x16x32xf32, #tpu.memory_space<vmem>>, vector<1x16x16x32xf32>
    %137 = vector.shape_cast %136 : vector<1x16x16x32xf32> to vector<16x16x32xf32>
    %138 = vector.shape_cast %135 : vector<16x16x32xf32> to vector<1x16x16x32xf32>
    tpu.vector_store %arg12[%c0_104, %c0_105, %c0_106, %c0_107], %138 {strides = array<i32>} : memref<1x16x16x32xf32, #tpu.memory_space<vmem>>, vector<1x16x16x32xf32>,
    return
  }
  func.func @transform_0(%arg0: i32) -> (i32, i32, i32, i32) {
    %c0_i32 = arith.constant 0 : i32
    %c0_i32_0 = arith.constant 0 : i32
    %c0_i32_1 = arith.constant 0 : i32
    %c0_i32_2 = arith.constant 0 : i32
    return %arg0, %c0_i32, %c0_i32_0, %c0_i32_1 : i32, i32, i32, i32
  }
  func.func @transform_1(%arg0: i32) -> (i32, i32, i32, i32) {
    %c0_i32 = arith.constant 0 : i32
    %c0_i32_0 = arith.constant 0 : i32
    %c0_i32_1 = arith.constant 0 : i32
    %c0_i32_2 = arith.constant 0 : i32
    return %arg0, %c0_i32, %c0_i32_0, %c0_i32_1 : i32, i32, i32, i32
  }
  func.func @transform_2(%arg0: i32) -> i32 {
    %c0_i32 = arith.constant 0 : i32
    %c0_i32_0 = arith.constant 0 : i32
    return %c0_i32 : i32
  }
  func.func @transform_3(%arg0: i32) -> (i32, i32) {
    %c0_i32 = arith.constant 0 : i32
    %c0_i32_0 = arith.constant 0 : i32
    %c0_i32_1 = arith.constant 0 : i32
    return %c0_i32, %c0_i32_0 : i32, i32
  }
  func.func @transform_4(%arg0: i32) -> (i32, i32) {
    %c0_i32 = arith.constant 0 : i32
    %c0_i32_0 = arith.constant 0 : i32
    %c0_i32_1 = arith.constant 0 : i32
    return %c0_i32, %c0_i32_0 : i32, i32
  }
  func.func @transform_5(%arg0: i32) -> (i32, i32) {
    %c0_i32 = arith.constant 0 : i32
    %c0_i32_0 = arith.constant 0 : i32
    %c0_i32_1 = arith.constant 0 : i32
    return %c0_i32, %c0_i32_0 : i32, i32
  }
  func.func @transform_6(%arg0: i32) -> (i32, i32) {
    %c0_i32 = arith.constant 0 : i32
    %c0_i32_0 = arith.constant 0 : i32
    %c0_i32_1 = arith.constant 0 : i32
    return %c0_i32, %c0_i32_0 : i32, i32
  }
  func.func @transform_7(%arg0: i32) -> (i32, i32) {
    %c0_i32 = arith.constant 0 : i32
    %c0_i32_0 = arith.constant 0 : i32
    %c0_i32_1 = arith.constant 0 : i32
    return %c0_i32, %c0_i32_0 : i32, i32
  }
  func.func @transform_8(%arg0: i32) -> (i32, i32) {
    %c0_i32 = arith.constant 0 : i32
    %c0_i32_0 = arith.constant 0 : i32
    %c0_i32_1 = arith.constant 0 : i32
    return %c0_i32, %c0_i32_0 : i32, i32
  }
  func.func @transform_9(%arg0: i32) -> (i32, i32) {
    %c0_i32 = arith.constant 0 : i32
    %c0_i32_0 = arith.constant 0 : i32
    %c0_i32_1 = arith.constant 0 : i32
    return %c0_i32, %c0_i32_0 : i32, i32
  }
  func.func @transform_10(%arg0: i32) -> (i32, i32) {
    %c0_i32 = arith.constant 0 : i32
    %c0_i32_0 = arith.constant 0 : i32
    %c0_i32_1 = arith.constant 0 : i32
    return %c0_i32, %c0_i32_0 : i32, i32
  }
  func.func @transform_11(%arg0: i32) -> (i32, i32, i32, i32) {
    %c0_i32 = arith.constant 0 : i32
    %c0_i32_0 = arith.constant 0 : i32
    %c0_i32_1 = arith.constant 0 : i32
    %c0_i32_2 = arith.constant 0 : i32
    return %arg0, %c0_i32, %c0_i32_0, %c0_i32_1 : i32, i32, i32, i32
  }
}

</mosaic_0001>

<llo_original>
// kernel: tpu_custom_call.1
$region0: #{tpu_custom_call.1}
  #allocation0 [shape = 'u32[]', space=smem, size = 0x4, offset = 0x4, fixed_abs, tag = 'smem constant byte address 0x4 - core index']
  #allocation1 [shape = 'u32[144,128]{1,0:T(1,128)}', space=vmem, size = 0x12000, scoped, tag = 'internal scratch']
  #allocation2 [shape = 'bf16[18,16,96]{2,1,0:T(16,128)(2,1)}', space=vmem, size = 0x12000, scoped, tag = 'scratch operand']
  %s0 = inlined_call_operand.hbm [shape: f32[4,16,16,32], index: 0, kind: input, shape index: {}]
  %s1 = inlined_call_operand.hbm [shape: f32[4,16,16,32], index: 1, kind: input, shape index: {}]
  %s2 = inlined_call_operand.vmem [shape: f32[4], index: 2, kind: input, shape index: {}]
  %s3 = inlined_call_operand.hbm [shape: bf16[96,96], index: 3, kind: input, shape index: {}]
  %s4 = inlined_call_operand.vmem [shape: f32[1,32], index: 4, kind: input, shape index: {}]
  %s5 = inlined_call_operand.hbm [shape: bf16[96,96], index: 5, kind: input, shape index: {}]
  %s6 = inlined_call_operand.vmem [shape: f32[1,32], index: 6, kind: input, shape index: {}]
  %s7 = inlined_call_operand.hbm [shape: bf16[96,96], index: 7, kind: input, shape index: {}]
  %s8 = inlined_call_operand.vmem [shape: f32[1,32], index: 8, kind: input, shape index: {}]
  %s9 = inlined_call_operand.hbm [shape: bf16[96,96], index: 9, kind: input, shape index: {}]
  %s10 = inlined_call_operand.vmem [shape: f32[1,32], index: 10, kind: input, shape index: {}]
  %s11 = inlined_call_operand.hbm [shape: f32[4,16,16,32], index: 11, kind: output, shape index: {}]
  %s12 = sld [smem:[#allocation0]]
  $region105: #{tpu_custom_call.1} parent=0
    _
  %s14 = ssub.s32 1, %s12
  %s15 = scalar_select 0, %s14, %s12
  $region1: #{tpu_custom_call.1} parent=0
    #allocation3 [shape = 'u8[262144]{0}', space=vmem, size = 0x40000, scoped, tag = 'input window, operand 0']
    #allocation4 [shape = 's32[2]{0}', space=sflag, size = 0x8, scoped, tag = 'scoped memory for tpu_custom_call.1']
    #allocation5 [shape = 's32[2]{0}', space=sflag, size = 0x8, scoped, tag = 'scoped memory for tpu_custom_call.1']
    #allocation6 [shape = 's32[2]{0}', space=sflag, size = 0x8, scoped, tag = 'scoped memory for tpu_custom_call.1']
    #allocation7 [shape = 'u8[262144]{0}', space=vmem, size = 0x40000, scoped, tag = 'input window, operand 1']
    #allocation8 [shape = 's32[2]{0}', space=sflag, size = 0x8, scoped, tag = 'scoped memory for tpu_custom_call.1']
    #allocation9 [shape = 'u8[512]{0}', space=smem, size = 0x200, scoped, tag = 'input window, operand 2, single buffered']
    #allocation10 [shape = 'u8[24576]{0}', space=vmem, size = 0x6000, scoped, tag = 'input window, operand 3, single buffered']
    #allocation11 [shape = 'u8[24576]{0}', space=vmem, size = 0x6000, scoped, tag = 'input window, operand 5, single buffered']
    #allocation12 [shape = 's32[1]{0}', space=sflag, size = 0x4, scoped, tag = 'scoped memory for tpu_custom_call.1']
    #allocation13 [shape = 'u8[24576]{0}', space=vmem, size = 0x6000, scoped, tag = 'input window, operand 7, single buffered']
    #allocation14 [shape = 'u8[24576]{0}', space=vmem, size = 0x6000, scoped, tag = 'input window, operand 9, single buffered']
    #allocation15 [shape = 's32[1]{0}', space=sflag, size = 0x4, scoped, tag = 'scoped memory for tpu_custom_call.1']
    #allocation16 [shape = 'u8[262144]{0}', space=vmem, size = 0x40000, scoped, tag = 'output window, operand 0']
    %16 = vsyncpa [#allocation4], 0
    %s17 = scalar_lea.sflag [#allocation4], 1
    %18 = vsyncpa %s17, 0
    %19 = vsyncpa [#allocation8], 0
    %s20 = scalar_lea.sflag [#allocation8], 1
    %21 = vsyncpa %s20, 0
    %22 = vsyncpa [#allocation6], 0
    %23 = vsyncpa [#allocation12], 0
    %24 = vsyncpa [#allocation15], 0
    %25 = vsyncpa [#allocation5], 0
    %s26 = scalar_lea.sflag [#allocation5], 1
    %27 = vsyncpa %s26, 0
    loop: start=0, step=1, limit=6
    $region2: #{tpu_custom_call.1} parent=1 // loop_pre_header
      _
    $region3: #{tpu_custom_call.1} parent=1 // loop_header
      %s29 = sphi 0, %s33
      %p30 = scmp.ge.s32.totalorder %s29, 6
      %s39 = sphi 0, %s41
      %s42 = sphi 0, %s39
      %s43 = sphi 0, %s42
      %s59 = sphi 0, %s43
      %s65 = sphi 0, %s67
      %s68 = sphi 0, %s65
      %s69 = sphi 0, %s68
      %s85 = sphi 0, %s69
      %s89 = sphi 0, %s89
      %s91 = sphi 0, %s89
      %s92 = sphi 0, %s91
      %s106 = sphi 0, %s92
      %s110 = sphi 0, %s110
      %s112 = sphi 0, %s110
      %s113 = sphi 0, %s112
      %s127 = sphi 0, %s113
      %s131 = sphi 0, %s131
      %s133 = sphi 0, %s131
      %s134 = sphi 0, %s133
      %s148 = sphi 0, %s134
      %s152 = sphi 0, %s152
      %s154 = sphi 0, %s152
      %s155 = sphi 0, %s154
      %s169 = sphi 0, %s155
      %s173 = sphi 0, %s173
      %s175 = sphi 0, %s173
      %s176 = sphi 0, %s175
      %s190 = sphi 0, %s176
      %s194 = sphi 0, %s194
      %s196 = sphi 0, %s194
      %s197 = sphi 0, %s196
      %s211 = sphi 0, %s197
      %s215 = sphi 0, %s215
      %s217 = sphi 0, %s215
      %s218 = sphi 0, %s217
      %s232 = sphi 0, %s218
      %s236 = sphi 0, %s236
      %s238 = sphi 0, %s236
      %s239 = sphi 0, %s238
      %s253 = sphi 0, %s239
      %s257 = sphi 0, %s257
      %s259 = sphi 0, %s257
      %s260 = sphi 0, %s259
      %s274 = sphi 0, %s260
      %s280 = sphi 0, %s282
      %s283 = sphi 0, %s280
      %s284 = sphi 0, %s283
      %s300 = sphi 0, %s284
    $region4: #{tpu_custom_call.1} parent=1 // loop_header_branch
      %32 = sbr.rel (%p30) target = $region8
    $region5: #{tpu_custom_call.1} parent=1 // loop_body
      %s34 = ssub.s32 %s29, 1
      %s35 = ssub.s32 %s29, 2
      %s36 = sadd.s32 %s29, 1
      %s37 = ssub.s32 %s29, %s36
      %p38 = scmp.eq.s32.totalorder %s37, 0
      %s40 = sadd.s32 %s39, 1
      %s41 = scalar_select %p38, %s39, %s40
      %p44 = pneg %p38
      %p45 = scmp.eq.s32.totalorder %s29, 3
      %p46 = por %p44, %p45
      %p47 = scmp.ne.s32.totalorder %s39, %s42
      %p48 = scmp.eq.s32.totalorder %s29, 0
      %p49 = por %p47, %p48
      %p50 = scmp.ne.s32.totalorder %s39, %s42
      %p51 = scmp.eq.s32.totalorder %s34, 3
      %p52 = por %p50, %p51
      %p53 = scmp.ne.s32.totalorder %s42, %s43
      %p54 = scmp.eq.s32.totalorder %s34, 0
      %p55 = por %p53, %p54
      %p56 = scmp.ne.s32.totalorder %s42, %s43
      %p57 = scmp.eq.s32.totalorder %s35, 3
      %p58 = por %p56, %p57
      %p60 = scmp.ne.s32.totalorder %s43, %s59
      %p61 = scmp.eq.s32.totalorder %s35, 0
      %p62 = por %p60, %p61
      %s63 = ssub.s32 %s29, %s36
      %p64 = scmp.eq.s32.totalorder %s63, 0
      %s66 = sadd.s32 %s65, 1
      %s67 = scalar_select %p64, %s65, %s66
      %p70 = pneg %p64
      %p71 = scmp.eq.s32.totalorder %s29, 3
      %p72 = por %p70, %p71
      %p73 = scmp.ne.s32.totalorder %s65, %s68
      %p74 = scmp.eq.s32.totalorder %s29, 0
      %p75 = por %p73, %p74
      %p76 = scmp.ne.s32.totalorder %s65, %s68
      %p77 = scmp.eq.s32.totalorder %s34, 3
      %p78 = por %p76, %p77
      %p79 = scmp.ne.s32.totalorder %s68, %s69
      %p80 = scmp.eq.s32.totalorder %s34, 0
      %p81 = por %p79, %p80
      %p82 = scmp.ne.s32.totalorder %s68, %s69
      %p83 = scmp.eq.s32.totalorder %s35, 3
      %p84 = por %p82, %p83
      %p86 = scmp.ne.s32.totalorder %s69, %s85
      %p87 = scmp.eq.s32.totalorder %s35, 0
      %p88 = por %p86, %p87
      %s90 = sadd.s32 %s89, 1
      %p93 = scmp.eq.s32.totalorder %s29, 3
      %p94 = scmp.ne.s32.totalorder %s89, %s91
      %p95 = scmp.eq.s32.totalorder %s29, 0
      %p96 = por %p94, %p95
      %p97 = scmp.ne.s32.totalorder %s89, %s91
      %p98 = scmp.eq.s32.totalorder %s34, 3
      %p99 = por %p97, %p98
      %p100 = scmp.ne.s32.totalorder %s91, %s92
      %p101 = scmp.eq.s32.totalorder %s34, 0
      %p102 = por %p100, %p101
      %p103 = scmp.ne.s32.totalorder %s91, %s92
      %p104 = scmp.eq.s32.totalorder %s35, 3
      %p105 = por %p103, %p104
      %p107 = scmp.ne.s32.totalorder %s92, %s106
      %p108 = scmp.eq.s32.totalorder %s35, 0
      %p109 = por %p107, %p108
      %s111 = sadd.s32 %s110, 1
      %p114 = scmp.eq.s32.totalorder %s29, 3
      %p115 = scmp.ne.s32.totalorder %s110, %s112
      %p116 = scmp.eq.s32.totalorder %s29, 0
      %p117 = por %p115, %p116
      %p118 = scmp.ne.s32.totalorder %s110, %s112
      %p119 = scmp.eq.s32.totalorder %s34, 3
      %p120 = por %p118, %p119
      %p121 = scmp.ne.s32.totalorder %s112, %s113
      %p122 = scmp.eq.s32.totalorder %s34, 0
      %p123 = por %p121, %p122
      %p124 = scmp.ne.s32.totalorder %s112, %s113
      %p125 = scmp.eq.s32.totalorder %s35, 3
      %p126 = por %p124, %p125
      %p128 = scmp.ne.s32.totalorder %s113, %s127
      %p129 = scmp.eq.s32.totalorder %s35, 0
      %p130 = por %p128, %p129
      %s132 = sadd.s32 %s131, 1
      %p135 = scmp.eq.s32.totalorder %s29, 3
      %p136 = scmp.ne.s32.totalorder %s131, %s133
      %p137 = scmp.eq.s32.totalorder %s29, 0
      %p138 = por %p136, %p137
      %p139 = scmp.ne.s32.totalorder %s131, %s133
      %p140 = scmp.eq.s32.totalorder %s34, 3
      %p141 = por %p139, %p140
      %p142 = scmp.ne.s32.totalorder %s133, %s134
      %p143 = scmp.eq.s32.totalorder %s34, 0
      %p144 = por %p142, %p143
      %p145 = scmp.ne.s32.totalorder %s133, %s134
      %p146 = scmp.eq.s32.totalorder %s35, 3
      %p147 = por %p145, %p146
      %p149 = scmp.ne.s32.totalorder %s134, %s148
      %p150 = scmp.eq.s32.totalorder %s35, 0
      %p151 = por %p149, %p150
      %s153 = sadd.s32 %s152, 1
      %p156 = scmp.eq.s32.totalorder %s29, 3
      %p157 = scmp.ne.s32.totalorder %s152, %s154
      %p158 = scmp.eq.s32.totalorder %s29, 0
      %p159 = por %p157, %p158
      %p160 = scmp.ne.s32.totalorder %s152, %s154
      %p161 = scmp.eq.s32.totalorder %s34, 3
      %p162 = por %p160, %p161
      %p163 = scmp.ne.s32.totalorder %s154, %s155
      %p164 = scmp.eq.s32.totalorder %s34, 0
      %p165 = por %p163, %p164
      %p166 = scmp.ne.s32.totalorder %s154, %s155
      %p167 = scmp.eq.s32.totalorder %s35, 3
      %p168 = por %p166, %p167
      %p170 = scmp.ne.s32.totalorder %s155, %s169
      %p171 = scmp.eq.s32.totalorder %s35, 0
      %p172 = por %p170, %p171
      %s174 = sadd.s32 %s173, 1
      %p177 = scmp.eq.s32.totalorder %s29, 3
      %p178 = scmp.ne.s32.totalorder %s173, %s175
      %p179 = scmp.eq.s32.totalorder %s29, 0
      %p180 = por %p178, %p179
      %p181 = scmp.ne.s32.totalorder %s173, %s175
      %p182 = scmp.eq.s32.totalorder %s34, 3
      %p183 = por %p181, %p182
      %p184 = scmp.ne.s32.totalorder %s175, %s176
      %p185 = scmp.eq.s32.totalorder %s34, 0
      %p186 = por %p184, %p185
      %p187 = scmp.ne.s32.totalorder %s175, %s176
      %p188 = scmp.eq.s32.totalorder %s35, 3
      %p189 = por %p187, %p188
      %p191 = scmp.ne.s32.totalorder %s176, %s190
      %p192 = scmp.eq.s32.totalorder %s35, 0
      %p193 = por %p191, %p192
      %s195 = sadd.s32 %s194, 1
      %p198 = scmp.eq.s32.totalorder %s29, 3
      %p199 = scmp.ne.s32.totalorder %s194, %s196
      %p200 = scmp.eq.s32.totalorder %s29, 0
      %p201 = por %p199, %p200
      %p202 = scmp.ne.s32.totalorder %s194, %s196
      %p203 = scmp.eq.s32.totalorder %s34, 3
      %p204 = por %p202, %p203
      %p205 = scmp.ne.s32.totalorder %s196, %s197
      %p206 = scmp.eq.s32.totalorder %s34, 0
      %p207 = por %p205, %p206
      %p208 = scmp.ne.s32.totalorder %s196, %s197
      %p209 = scmp.eq.s32.totalorder %s35, 3
      %p210 = por %p208, %p209
      %p212 = scmp.ne.s32.totalorder %s197, %s211
      %p213 = scmp.eq.s32.totalorder %s35, 0
      %p214 = por %p212, %p213
      %s216 = sadd.s32 %s215, 1
      %p219 = scmp.eq.s32.totalorder %s29, 3
      %p220 = scmp.ne.s32.totalorder %s215, %s217
      %p221 = scmp.eq.s32.totalorder %s29, 0
      %p222 = por %p220, %p221
      %p223 = scmp.ne.s32.totalorder %s215, %s217
      %p224 = scmp.eq.s32.totalorder %s34, 3
      %p225 = por %p223, %p224
      %p226 = scmp.ne.s32.totalorder %s217, %s218
      %p227 = scmp.eq.s32.totalorder %s34, 0
      %p228 = por %p226, %p227
      %p229 = scmp.ne.s32.totalorder %s217, %s218
      %p230 = scmp.eq.s32.totalorder %s35, 3
      %p231 = por %p229, %p230
      %p233 = scmp.ne.s32.totalorder %s218, %s232
      %p234 = scmp.eq.s32.totalorder %s35, 0
      %p235 = por %p233, %p234
      %s237 = sadd.s32 %s236, 1
      %p240 = scmp.eq.s32.totalorder %s29, 3
      %p241 = scmp.ne.s32.totalorder %s236, %s238
      %p242 = scmp.eq.s32.totalorder %s29, 0
      %p243 = por %p241, %p242
      %p244 = scmp.ne.s32.totalorder %s236, %s238
      %p245 = scmp.eq.s32.totalorder %s34, 3
      %p246 = por %p244, %p245
      %p247 = scmp.ne.s32.totalorder %s238, %s239
      %p248 = scmp.eq.s32.totalorder %s34, 0
      %p249 = por %p247, %p248
      %p250 = scmp.ne.s32.totalorder %s238, %s239
      %p251 = scmp.eq.s32.totalorder %s35, 3
      %p252 = por %p250, %p251
      %p254 = scmp.ne.s32.totalorder %s239, %s253
      %p255 = scmp.eq.s32.totalorder %s35, 0
      %p256 = por %p254, %p255
      %s258 = sadd.s32 %s257, 1
      %p261 = scmp.eq.s32.totalorder %s29, 3
      %p262 = scmp.ne.s32.totalorder %s257, %s259
      %p263 = scmp.eq.s32.totalorder %s29, 0
      %p264 = por %p262, %p263
      %p265 = scmp.ne.s32.totalorder %s257, %s259
      %p266 = scmp.eq.s32.totalorder %s34, 3
      %p267 = por %p265, %p266
      %p268 = scmp.ne.s32.totalorder %s259, %s260
      %p269 = scmp.eq.s32.totalorder %s34, 0
      %p270 = por %p268, %p269
      %p271 = scmp.ne.s32.totalorder %s259, %s260
      %p272 = scmp.eq.s32.totalorder %s35, 3
      %p273 = por %p271, %p272
      %p275 = scmp.ne.s32.totalorder %s260, %s274
      %p276 = scmp.eq.s32.totalorder %s35, 0
      %p277 = por %p275, %p276
      %s278 = ssub.s32 %s29, %s36
      %p279 = scmp.eq.s32.totalorder %s278, 0
      %s281 = sadd.s32 %s280, 1
      %s282 = scalar_select %p279, %s280, %s281
      %p285 = pneg %p279
      %p286 = scmp.eq.s32.totalorder %s29, 3
      %p287 = por %p285, %p286
      %p288 = scmp.ne.s32.totalorder %s280, %s283
      %p289 = scmp.eq.s32.totalorder %s29, 0
      %p290 = por %p288, %p289
      %p291 = scmp.ne.s32.totalorder %s280, %s283
      %p292 = scmp.eq.s32.totalorder %s34, 3
      %p293 = por %p291, %p292
      %p294 = scmp.ne.s32.totalorder %s283, %s284
      %p295 = scmp.eq.s32.totalorder %s34, 0
      %p296 = por %p294, %p295
      %p297 = scmp.ne.s32.totalorder %s283, %s284
      %p298 = scmp.eq.s32.totalorder %s35, 3
      %p299 = por %p297, %p298
      %p301 = scmp.ne.s32.totalorder %s284, %s300
      %p302 = scmp.eq.s32.totalorder %s35, 0
      %p303 = por %p301, %p302
      %p304 = scmp.le.s32.totalorder 1, %s29
      %p305 = scmp.lt.s32.totalorder %s29, 5
      %p306 = pnand %p304, %p305
      %p307 = pneg %p306
      // Predicated region
      $region9: #{tpu_custom_call.1} parent=5 // pred_check
        _
      $region10: #{tpu_custom_call.1} parent=5 // pred_check_branch
        %309 = sbr.rel (%p306) target = $region12
      $region11: #{tpu_custom_call.1} parent=5 // pred_region
        %s310 = ssub.s32 %s29, 1
        // Predicated region
        $region13: #{tpu_custom_call.1} parent=11 // pred_check
          %p311 = pneg %p102
        $region14: #{tpu_custom_call.1} parent=11 // pred_check_branch
          %313 = sbr.rel (%p311) target = $region16
        $region15: #{tpu_custom_call.1} parent=11 // pred_region
          %s315 = ssub.s32 16, 16
          %316 = vsyncadd [#allocation6], %s315
          %s318 = sshll.u32 %s2, 4
          %s319 = int_to_ptr.vmem [resolvable:$true] %s318
          %321 = dma.vmem_to_smem %s319, 16, [#allocation9], [#allocation6]
        $region16: #{tpu_custom_call.1} parent=11 // pred_fallthru
          _
        // Predicated region
        $region17: #{tpu_custom_call.1} parent=11 // pred_check
          %p322 = pneg %p123
        $region18: #{tpu_custom_call.1} parent=11 // pred_check_branch
          %324 = sbr.rel (%p322) target = $region20
        $region19: #{tpu_custom_call.1} parent=11 // pred_region
          %s326 = ssub.s32 768, 768
          %327 = vsyncadd [#allocation8], %s326
          %s328 = sshll.u32 [#allocation10], 4
          %s329 = int_to_ptr.vmem [resolvable:$true] %s328
          %334 = dma.hbm_to_vmem [thread:$0]  %s3, 768, %s329, [#allocation8], 64, 64, 4
        $region20: #{tpu_custom_call.1} parent=11 // pred_fallthru
          _
        // Predicated region
        $region21: #{tpu_custom_call.1} parent=11 // pred_check
          %p335 = pneg %p144
        $region22: #{tpu_custom_call.1} parent=11 // pred_check_branch
          %337 = sbr.rel (%p335) target = $region24
        $region23: #{tpu_custom_call.1} parent=11 // pred_region
          _
        $region24: #{tpu_custom_call.1} parent=11 // pred_fallthru
          _
        // Predicated region
        $region25: #{tpu_custom_call.1} parent=11 // pred_check
          %p338 = pneg %p165
        $region26: #{tpu_custom_call.1} parent=11 // pred_check_branch
          %340 = sbr.rel (%p338) target = $region28
        $region27: #{tpu_custom_call.1} parent=11 // pred_region
          %s342 = ssub.s32 768, 768
          %343 = vsyncadd [#allocation12], %s342
          %s344 = sshll.u32 [#allocation11], 4
          %s345 = int_to_ptr.vmem [resolvable:$true] %s344
          %350 = dma.hbm_to_vmem [thread:$0]  %s5, 768, %s345, [#allocation12], 64, 64, 4
        $region28: #{tpu_custom_call.1} parent=11 // pred_fallthru
          _
        // Predicated region
        $region29: #{tpu_custom_call.1} parent=11 // pred_check
          %p351 = pneg %p186
        $region30: #{tpu_custom_call.1} parent=11 // pred_check_branch
          %353 = sbr.rel (%p351) target = $region32
        $region31: #{tpu_custom_call.1} parent=11 // pred_region
          _
        $region32: #{tpu_custom_call.1} parent=11 // pred_fallthru
          _
        // Predicated region
        $region33: #{tpu_custom_call.1} parent=11 // pred_check
          %p354 = pneg %p207
        $region34: #{tpu_custom_call.1} parent=11 // pred_check_branch
          %356 = sbr.rel (%p354) target = $region36
        $region35: #{tpu_custom_call.1} parent=11 // pred_region
          %s358 = ssub.s32 768, 768
          %359 = vsyncadd [#allocation12], %s358
          %s360 = sshll.u32 [#allocation13], 4
          %s361 = int_to_ptr.vmem [resolvable:$true] %s360
          %366 = dma.hbm_to_vmem [thread:$0]  %s7, 768, %s361, [#allocation12], 64, 64, 4
        $region36: #{tpu_custom_call.1} parent=11 // pred_fallthru
          _
        // Predicated region
        $region37: #{tpu_custom_call.1} parent=11 // pred_check
          %p367 = pneg %p228
        $region38: #{tpu_custom_call.1} parent=11 // pred_check_branch
          %369 = sbr.rel (%p367) target = $region40
        $region39: #{tpu_custom_call.1} parent=11 // pred_region
          _
        $region40: #{tpu_custom_call.1} parent=11 // pred_fallthru
          _
        // Predicated region
        $region41: #{tpu_custom_call.1} parent=11 // pred_check
          %p370 = pneg %p249
        $region42: #{tpu_custom_call.1} parent=11 // pred_check_branch
          %372 = sbr.rel (%p370) target = $region44
        $region43: #{tpu_custom_call.1} parent=11 // pred_region
          %s374 = ssub.s32 768, 768
          %375 = vsyncadd [#allocation15], %s374
          %s376 = sshll.u32 [#allocation14], 4
          %s377 = int_to_ptr.vmem [resolvable:$true] %s376
          %382 = dma.hbm_to_vmem [thread:$0]  %s9, 768, %s377, [#allocation15], 64, 64, 4
        $region44: #{tpu_custom_call.1} parent=11 // pred_fallthru
          _
        // Predicated region
        $region45: #{tpu_custom_call.1} parent=11 // pred_check
          %p383 = pneg %p270
        $region46: #{tpu_custom_call.1} parent=11 // pred_check_branch
          %385 = sbr.rel (%p383) target = $region48
        $region47: #{tpu_custom_call.1} parent=11 // pred_region
          _
        $region48: #{tpu_custom_call.1} parent=11 // pred_fallthru
          _
      $region12: #{tpu_custom_call.1} parent=5 // pred_fallthru
        _
      %p386 = scmp.lt.s32.totalorder %s29, 4
      // Predicated region
      $region49: #{tpu_custom_call.1} parent=5 // pred_check
        %p387 = pneg %p386
      $region50: #{tpu_custom_call.1} parent=5 // pred_check_branch
        %389 = sbr.rel (%p387) target = $region52
      $region51: #{tpu_custom_call.1} parent=5 // pred_region
        // Predicated region
        $region53: #{tpu_custom_call.1} parent=51 // pred_check
          %p390 = pneg %p49
        $region54: #{tpu_custom_call.1} parent=51 // pred_check_branch
          %392 = sbr.rel (%p390) target = $region56
        $region55: #{tpu_custom_call.1} parent=51 // pred_region
          %s393 = sand.u32 %s39, 1
          %s394 = scalar_lea.sflag [#allocation4], %s393
          %s395 = sand.u32 %s39, 1
          %s396 = smul.addr %s395, 256
          %s397 = scalar_lea.vmem [#allocation3], %s396
          %s399 = ssub.s32 4096, 4096
          %400 = vsyncadd %s394, %s399
          %s401 = smul.addr %s29, 32
          %s402 = smul.addr %s401, 128
          %s403 = scalar_lea.hbm %s0, %s402
          %s404 = sshll.u32 %s397, 4
          %s405 = int_to_ptr.vmem [resolvable:$true] %s404
          %410 = dma.hbm_to_vmem [thread:$0]  %s403, 4096, %s405, %s394, 128, 128, 8
        $region56: #{tpu_custom_call.1} parent=51 // pred_fallthru
          _
        // Predicated region
        $region57: #{tpu_custom_call.1} parent=51 // pred_check
          %p411 = pneg %p75
        $region58: #{tpu_custom_call.1} parent=51 // pred_check_branch
          %413 = sbr.rel (%p411) target = $region60
        $region59: #{tpu_custom_call.1} parent=51 // pred_region
          %s414 = sand.u32 %s29, 1
          %s415 = scalar_lea.sflag [#allocation8], %s414
          %s416 = sand.u32 %s65, 1
          %s417 = smul.addr %s416, 256
          %s418 = scalar_lea.vmem [#allocation7], %s417
          %s420 = ssub.s32 4096, 4096
          %421 = vsyncadd %s415, %s420
          %s422 = smul.addr %s29, 32
          %s423 = smul.addr %s422, 128
          %s424 = scalar_lea.hbm %s1, %s423
          %s425 = sshll.u32 %s418, 4
          %s426 = int_to_ptr.vmem [resolvable:$true] %s425
          %431 = dma.hbm_to_vmem [thread:$0]  %s424, 4096, %s426, %s415, 128, 128, 8
        $region60: #{tpu_custom_call.1} parent=51 // pred_fallthru
          _
      $region52: #{tpu_custom_call.1} parent=5 // pred_fallthru
        _
      %p432 = scmp.le.s32.totalorder 1, %s29
      %p433 = scmp.lt.s32.totalorder %s29, 5
      %p434 = pnand %p432, %p433
      %p435 = pneg %p434
      // Predicated region
      $region61: #{tpu_custom_call.1} parent=5 // pred_check
        _
      $region62: #{tpu_custom_call.1} parent=5 // pred_check_branch
        %437 = sbr.rel (%p434) target = $region64
      $region63: #{tpu_custom_call.1} parent=5 // pred_region
        %s438 = ssub.s32 %s29, 1
        %s439 = sand.u32 %s42, 1
        %s440 = scalar_lea.sflag [#allocation4], %s439
        %s441 = sand.u32 %s42, 1
        %s442 = smul.addr %s441, 256
        %s443 = scalar_lea.vmem [#allocation3], %s442
        // Predicated region
        $region65: #{tpu_custom_call.1} parent=63 // pred_check
          %p444 = pneg %p55
        $region66: #{tpu_custom_call.1} parent=63 // pred_check_branch
          %446 = sbr.rel (%p444) target = $region68
        $region67: #{tpu_custom_call.1} parent=63 // pred_region
          %447 = dma.done %s440, 4096
        $region68: #{tpu_custom_call.1} parent=63 // pred_fallthru
          _
        %s448 = sand.u32 %s34, 1
        %s449 = scalar_lea.sflag [#allocation8], %s448
        %s450 = sand.u32 %s68, 1
        %s451 = smul.addr %s450, 256
        %s452 = scalar_lea.vmem [#allocation7], %s451
        // Predicated region
        $region69: #{tpu_custom_call.1} parent=63 // pred_check
          %p453 = pneg %p81
        $region70: #{tpu_custom_call.1} parent=63 // pred_check_branch
          %455 = sbr.rel (%p453) target = $region72
        $region71: #{tpu_custom_call.1} parent=63 // pred_region
          %456 = dma.done %s449, 4096
        $region72: #{tpu_custom_call.1} parent=63 // pred_fallthru
          _
        // Predicated region
        $region73: #{tpu_custom_call.1} parent=63 // pred_check
          %p457 = pneg %p102
        $region74: #{tpu_custom_call.1} parent=63 // pred_check_branch
          %459 = sbr.rel (%p457) target = $region76
        $region75: #{tpu_custom_call.1} parent=63 // pred_region
          %460 = dma.done [#allocation6], 16
        $region76: #{tpu_custom_call.1} parent=63 // pred_fallthru
          _
        // Predicated region
        $region77: #{tpu_custom_call.1} parent=63 // pred_check
          %p461 = pneg %p123
        $region78: #{tpu_custom_call.1} parent=63 // pred_check_branch
          %463 = sbr.rel (%p461) target = $region80
        $region79: #{tpu_custom_call.1} parent=63 // pred_region
          %464 = dma.done [#allocation8], 768
        $region80: #{tpu_custom_call.1} parent=63 // pred_fallthru
          _
        // Predicated region
        $region81: #{tpu_custom_call.1} parent=63 // pred_check
          %p465 = pneg %p165
        $region82: #{tpu_custom_call.1} parent=63 // pred_check_branch
          %467 = sbr.rel (%p465) target = $region84
        $region83: #{tpu_custom_call.1} parent=63 // pred_region
          %468 = dma.done [#allocation12], 768
        $region84: #{tpu_custom_call.1} parent=63 // pred_fallthru
          _
        // Predicated region
        $region85: #{tpu_custom_call.1} parent=63 // pred_check
          %p469 = pneg %p207
        $region86: #{tpu_custom_call.1} parent=63 // pred_check_branch
          %471 = sbr.rel (%p469) target = $region88
        $region87: #{tpu_custom_call.1} parent=63 // pred_region
          %472 = dma.done [#allocation12], 768
        $region88: #{tpu_custom_call.1} parent=63 // pred_fallthru
          _
        // Predicated region
        $region89: #{tpu_custom_call.1} parent=63 // pred_check
          %p473 = pneg %p249
        $region90: #{tpu_custom_call.1} parent=63 // pred_check_branch
          %475 = sbr.rel (%p473) target = $region92
        $region91: #{tpu_custom_call.1} parent=63 // pred_region
          %476 = dma.done [#allocation15], 768
        $region92: #{tpu_custom_call.1} parent=63 // pred_fallthru
          _
        %477 = sfence
        %s478 = sand.u32 %s42, 1
        %s479 = scalar_lea.sflag [#allocation4], %s478
        %s480 = sand.u32 %s42, 1
        %s481 = smul.addr %s480, 256
        %s482 = scalar_lea.vmem [#allocation3], %s481
        %p483 = pneg %p55
        %p484 = pneg %p52
        %s485 = sand.u32 %s34, 1
        %s486 = scalar_lea.sflag [#allocation8], %s485
        %s487 = sand.u32 %s68, 1
        %s488 = smul.addr %s487, 256
        %s489 = scalar_lea.vmem [#allocation7], %s488
        %p490 = pneg %p81
        %p491 = pneg %p78
        %p492 = pneg %p102
        %p493 = pneg %p99
        %p494 = pneg %p123
        %p495 = pneg %p120
        %p496 = pneg %p144
        %p497 = pneg %p141
        %p498 = pneg %p165
        %p499 = pneg %p162
        %p500 = pneg %p186
        %p501 = pneg %p183
        %p502 = pneg %p207
        %p503 = pneg %p204
        %p504 = pneg %p228
        %p505 = pneg %p225
        %p506 = pneg %p249
        %p507 = pneg %p246
        %p508 = pneg %p270
        %p509 = pneg %p267
        %p510 = pneg %p296
        %p511 = pneg %p293
        %s512 = sand.u32 %s283, 1
        %s513 = scalar_lea.sflag [#allocation5], %s512
        %s514 = sand.u32 %s283, 1
        %s515 = smul.addr %s514, 256
        %s516 = scalar_lea.vmem [#allocation16], %s515
        %v518 = vld [vmem:[%s452] sm:$0xff]
        %v519 = vld [vmem:[%s452 + $0x8] sm:$0xff]
        %v520 = vld [vmem:[%s452 + $0x10] sm:$0xff]
        %v521 = vld [vmem:[%s452 + $0x18] sm:$0xff]
        %v522 = vld [vmem:[%s452 + $0x20] sm:$0xff]
        %v523 = vld [vmem:[%s452 + $0x28] sm:$0xff]
        %v524 = vld [vmem:[%s452 + $0x30] sm:$0xff]
        %v525 = vld [vmem:[%s452 + $0x38] sm:$0xff]
        %v526 = vld [vmem:[%s452 + $0x40] sm:$0xff]
        %v527 = vld [vmem:[%s452 + $0x48] sm:$0xff]
        %v528 = vld [vmem:[%s452 + $0x50] sm:$0xff]
        %v529 = vld [vmem:[%s452 + $0x58] sm:$0xff]
        %v530 = vld [vmem:[%s452 + $0x60] sm:$0xff]
        %v531 = vld [vmem:[%s452 + $0x68] sm:$0xff]
        %v532 = vld [vmem:[%s452 + $0x70] sm:$0xff]
        %v533 = vld [vmem:[%s452 + $0x78] sm:$0xff]
        %v534 = vld [vmem:[%s452 + $0x80] sm:$0xff]
        %v535 = vld [vmem:[%s452 + $0x88] sm:$0xff]
        %v536 = vld [vmem:[%s452 + $0x90] sm:$0xff]
        %v537 = vld [vmem:[%s452 + $0x98] sm:$0xff]
        %v538 = vld [vmem:[%s452 + $0xa0] sm:$0xff]
        %v539 = vld [vmem:[%s452 + $0xa8] sm:$0xff]
        %v540 = vld [vmem:[%s452 + $0xb0] sm:$0xff]
        %v541 = vld [vmem:[%s452 + $0xb8] sm:$0xff]
        %v542 = vld [vmem:[%s452 + $0xc0] sm:$0xff]
        %v543 = vld [vmem:[%s452 + $0xc8] sm:$0xff]
        %v544 = vld [vmem:[%s452 + $0xd0] sm:$0xff]
        %v545 = vld [vmem:[%s452 + $0xd8] sm:$0xff]
        %v546 = vld [vmem:[%s452 + $0xe0] sm:$0xff]
        %v547 = vld [vmem:[%s452 + $0xe8] sm:$0xff]
        %v548 = vld [vmem:[%s452 + $0xf0] sm:$0xff]
        %v549 = vld [vmem:[%s452 + $0xf8] sm:$0xff]
        %v550 = vld [vmem:[%s443] sm:$0xff]
        %v551 = vld [vmem:[%s443 + $0x8] sm:$0xff]
        %v552 = vld [vmem:[%s443 + $0x10] sm:$0xff]
        %v553 = vld [vmem:[%s443 + $0x18] sm:$0xff]
        %v554 = vld [vmem:[%s443 + $0x20] sm:$0xff]
        %v555 = vld [vmem:[%s443 + $0x28] sm:$0xff]
        %v556 = vld [vmem:[%s443 + $0x30] sm:$0xff]
        %v557 = vld [vmem:[%s443 + $0x38] sm:$0xff]
        %v558 = vld [vmem:[%s443 + $0x40] sm:$0xff]
        %v559 = vld [vmem:[%s443 + $0x48] sm:$0xff]
        %v560 = vld [vmem:[%s443 + $0x50] sm:$0xff]
        %v561 = vld [vmem:[%s443 + $0x58] sm:$0xff]
        %v562 = vld [vmem:[%s443 + $0x60] sm:$0xff]
        %v563 = vld [vmem:[%s443 + $0x68] sm:$0xff]
        %v564 = vld [vmem:[%s443 + $0x70] sm:$0xff]
        %v565 = vld [vmem:[%s443 + $0x78] sm:$0xff]
        %v566 = vld [vmem:[%s443 + $0x80] sm:$0xff]
        %v567 = vld [vmem:[%s443 + $0x88] sm:$0xff]
        %v568 = vld [vmem:[%s443 + $0x90] sm:$0xff]
        %v569 = vld [vmem:[%s443 + $0x98] sm:$0xff]
        %v570 = vld [vmem:[%s443 + $0xa0] sm:$0xff]
        %v571 = vld [vmem:[%s443 + $0xa8] sm:$0xff]
        %v572 = vld [vmem:[%s443 + $0xb0] sm:$0xff]
        %v573 = vld [vmem:[%s443 + $0xb8] sm:$0xff]
        %v574 = vld [vmem:[%s443 + $0xc0] sm:$0xff]
        %v575 = vld [vmem:[%s443 + $0xc8] sm:$0xff]
        %v576 = vld [vmem:[%s443 + $0xd0] sm:$0xff]
        %v577 = vld [vmem:[%s443 + $0xd8] sm:$0xff]
        %v578 = vld [vmem:[%s443 + $0xe0] sm:$0xff]
        %v579 = vld [vmem:[%s443 + $0xe8] sm:$0xff]
        %v580 = vld [vmem:[%s443 + $0xf0] sm:$0xff]
        %v581 = vld [vmem:[%s443 + $0xf8] sm:$0xff]
        %v582 = vsub.f32 %v518, %v550
        %v583 = vsub.f32 %v519, %v551
        %v584 = vsub.f32 %v520, %v552
        %v585 = vsub.f32 %v521, %v553
        %v586 = vsub.f32 %v522, %v554
        %v587 = vsub.f32 %v523, %v555
        %v588 = vsub.f32 %v524, %v556
        %v589 = vsub.f32 %v525, %v557
        %v590 = vsub.f32 %v526, %v558
        %v591 = vsub.f32 %v527, %v559
        %v592 = vsub.f32 %v528, %v560
        %v593 = vsub.f32 %v529, %v561
        %v594 = vsub.f32 %v530, %v562
        %v595 = vsub.f32 %v531, %v563
        %v596 = vsub.f32 %v532, %v564
        %v597 = vsub.f32 %v533, %v565
        %v598 = vsub.f32 %v534, %v566
        %v599 = vsub.f32 %v535, %v567
        %v600 = vsub.f32 %v536, %v568
        %v601 = vsub.f32 %v537, %v569
        %v602 = vsub.f32 %v538, %v570
        %v603 = vsub.f32 %v539, %v571
        %v604 = vsub.f32 %v540, %v572
        %v605 = vsub.f32 %v541, %v573
        %v606 = vsub.f32 %v542, %v574
        %v607 = vsub.f32 %v543, %v575
        %v608 = vsub.f32 %v544, %v576
        %v609 = vsub.f32 %v545, %v577
        %v610 = vsub.f32 %v546, %v578
        %v611 = vsub.f32 %v547, %v579
        %v612 = vsub.f32 %v548, %v580
        %v613 = vsub.f32 %v549, %v581
        %v614 = vpack.c.bf16 %v583, %v582
        %v615 = vpack.c.bf16 %v585, %v584
        %v616 = vpack.c.bf16 %v587, %v586
        %v617 = vpack.c.bf16 %v589, %v588
        %v618 = vpack.c.bf16 %v591, %v590
        %v619 = vpack.c.bf16 %v593, %v592
        %v620 = vpack.c.bf16 %v595, %v594
        %v621 = vpack.c.bf16 %v597, %v596
        %v622 = vpack.c.bf16 %v599, %v598
        %v623 = vpack.c.bf16 %v601, %v600
        %v624 = vpack.c.bf16 %v603, %v602
        %v625 = vpack.c.bf16 %v605, %v604
        %v626 = vpack.c.bf16 %v607, %v606
        %v627 = vpack.c.bf16 %v609, %v608
        %v628 = vpack.c.bf16 %v611, %v610
        %v629 = vpack.c.bf16 %v613, %v612
        %646 = vrot.lane.b32.xlu0 %v614, 32
        %v647 = vpop.permute.xlu0 %646
        %648 = vrot.lane.b32.xlu0 %v615, 32
        %v649 = vpop.permute.xlu0 %648
        %650 = vrot.lane.b32.xlu0 %v616, 32
        %v651 = vpop.permute.xlu0 %650
        %652 = vrot.lane.b32.xlu0 %v617, 32
        %v653 = vpop.permute.xlu0 %652
        %654 = vrot.lane.b32.xlu0 %v618, 32
        %v655 = vpop.permute.xlu0 %654
        %656 = vrot.lane.b32.xlu0 %v619, 32
        %v657 = vpop.permute.xlu0 %656
        %658 = vrot.lane.b32.xlu0 %v620, 32
        %v659 = vpop.permute.xlu0 %658
        %660 = vrot.lane.b32.xlu0 %v621, 32
        %v661 = vpop.permute.xlu0 %660
        %662 = vrot.lane.b32.xlu0 %v622, 32
        %v663 = vpop.permute.xlu0 %662
        %664 = vrot.lane.b32.xlu0 %v623, 32
        %v665 = vpop.permute.xlu0 %664
        %666 = vrot.lane.b32.xlu0 %v624, 32
        %v667 = vpop.permute.xlu0 %666
        %668 = vrot.lane.b32.xlu0 %v625, 32
        %v669 = vpop.permute.xlu0 %668
        %670 = vrot.lane.b32.xlu0 %v626, 32
        %v671 = vpop.permute.xlu0 %670
        %672 = vrot.lane.b32.xlu0 %v627, 32
        %v673 = vpop.permute.xlu0 %672
        %674 = vrot.lane.b32.xlu0 %v628, 32
        %v675 = vpop.permute.xlu0 %674
        %676 = vrot.lane.b32.xlu0 %v629, 32
        %v677 = vpop.permute.xlu0 %676
        %s694 = scalar_lea.vmem [#allocation2], 8
        %vm695 = vcmask 523520
        %696 = vst.msk [vmem:[%s694] sm:$0xff] %vm695, %v647
        %697 = vst.msk [vmem:[%s694 + $0x8] sm:$0xff] %vm695, %v649
        %698 = vst.msk [vmem:[%s694 + $0x10] sm:$0xff] %vm695, %v651
        %699 = vst.msk [vmem:[%s694 + $0x18] sm:$0xff] %vm695, %v653
        %700 = vst.msk [vmem:[%s694 + $0x20] sm:$0xff] %vm695, %v655
        %701 = vst.msk [vmem:[%s694 + $0x28] sm:$0xff] %vm695, %v657
        %702 = vst.msk [vmem:[%s694 + $0x30] sm:$0xff] %vm695, %v659
        %703 = vst.msk [vmem:[%s694 + $0x38] sm:$0xff] %vm695, %v661
        %704 = vst.msk [vmem:[%s694 + $0x40] sm:$0xff] %vm695, %v663
        %705 = vst.msk [vmem:[%s694 + $0x48] sm:$0xff] %vm695, %v665
        %706 = vst.msk [vmem:[%s694 + $0x50] sm:$0xff] %vm695, %v667
        %707 = vst.msk [vmem:[%s694 + $0x58] sm:$0xff] %vm695, %v669
        %708 = vst.msk [vmem:[%s694 + $0x60] sm:$0xff] %vm695, %v671
        %709 = vst.msk [vmem:[%s694 + $0x68] sm:$0xff] %vm695, %v673
        %710 = vst.msk [vmem:[%s694 + $0x70] sm:$0xff] %vm695, %v675
        %711 = vst.msk [vmem:[%s694 + $0x78] sm:$0xff] %vm695, %v677
        %v728 = vrot.slane %v582, 1
        %v729 = vrot.slane %v584, 1
        %v730 = vrot.slane %v586, 1
        %v731 = vrot.slane %v588, 1
        %v732 = vrot.slane %v590, 1
        %v733 = vrot.slane %v592, 1
        %v734 = vrot.slane %v594, 1
        %v735 = vrot.slane %v596, 1
        %v736 = vrot.slane %v598, 1
        %v737 = vrot.slane %v600, 1
        %v738 = vrot.slane %v602, 1
        %v739 = vrot.slane %v604, 1
        %v740 = vrot.slane %v606, 1
        %v741 = vrot.slane %v608, 1
        %v742 = vrot.slane %v610, 1
        %v743 = vrot.slane %v612, 1
        %vm776 = vcmask 1040384
        %v777 = vrot.slane %v582, 7
        %v778 = vrot.slane %v583, 7
        %v779 = vsel %vm776, %v777, %v778
        %v780 = vrot.slane %v584, 7
        %v781 = vrot.slane %v585, 7
        %v782 = vsel %vm776, %v780, %v781
        %v783 = vrot.slane %v586, 7
        %v784 = vrot.slane %v587, 7
        %v785 = vsel %vm776, %v783, %v784
        %v786 = vrot.slane %v588, 7
        %v787 = vrot.slane %v589, 7
        %v788 = vsel %vm776, %v786, %v787
        %v789 = vrot.slane %v590, 7
        %v790 = vrot.slane %v591, 7
        %v791 = vsel %vm776, %v789, %v790
        %v792 = vrot.slane %v592, 7
        %v793 = vrot.slane %v593, 7
        %v794 = vsel %vm776, %v792, %v793
        %v795 = vrot.slane %v594, 7
        %v796 = vrot.slane %v595, 7
        %v797 = vsel %vm776, %v795, %v796
        %v798 = vrot.slane %v596, 7
        %v799 = vrot.slane %v597, 7
        %v800 = vsel %vm776, %v798, %v799
        %v801 = vrot.slane %v598, 7
        %v802 = vrot.slane %v599, 7
        %v803 = vsel %vm776, %v801, %v802
        %v804 = vrot.slane %v600, 7
        %v805 = vrot.slane %v601, 7
        %v806 = vsel %vm776, %v804, %v805
        %v807 = vrot.slane %v602, 7
        %v808 = vrot.slane %v603, 7
        %v809 = vsel %vm776, %v807, %v808
        %v810 = vrot.slane %v604, 7
        %v811 = vrot.slane %v605, 7
        %v812 = vsel %vm776, %v810, %v811
        %v813 = vrot.slane %v606, 7
        %v814 = vrot.slane %v607, 7
        %v815 = vsel %vm776, %v813, %v814
        %v816 = vrot.slane %v608, 7
        %v817 = vrot.slane %v609, 7
        %v818 = vsel %vm776, %v816, %v817
        %v819 = vrot.slane %v610, 7
        %v820 = vrot.slane %v611, 7
        %v821 = vsel %vm776, %v819, %v820
        %v822 = vrot.slane %v612, 7
        %v823 = vrot.slane %v613, 7
        %v824 = vsel %vm776, %v822, %v823
        %v857 = vsel %vm776, %v728, %v777
        %v858 = vsel %vm776, %v729, %v780
        %v859 = vsel %vm776, %v730, %v783
        %v860 = vsel %vm776, %v731, %v786
        %v861 = vsel %vm776, %v732, %v789
        %v862 = vsel %vm776, %v733, %v792
        %v863 = vsel %vm776, %v734, %v795
        %v864 = vsel %vm776, %v735, %v798
        %v865 = vsel %vm776, %v736, %v801
        %v866 = vsel %vm776, %v737, %v804
        %v867 = vsel %vm776, %v738, %v807
        %v868 = vsel %vm776, %v739, %v810
        %v869 = vsel %vm776, %v740, %v813
        %v870 = vsel %vm776, %v741, %v816
        %v871 = vsel %vm776, %v742, %v819
        %v872 = vsel %vm776, %v743, %v822
        %vm873 = vcmask 1046528
        %v874 = vrot.slane %v583, 1
        %v875 = vsel %vm873, %v728, %v874
        %v876 = vrot.slane %v585, 1
        %v877 = vsel %vm873, %v729, %v876
        %v878 = vrot.slane %v587, 1
        %v879 = vsel %vm873, %v730, %v878
        %v880 = vrot.slane %v589, 1
        %v881 = vsel %vm873, %v731, %v880
        %v882 = vrot.slane %v591, 1
        %v883 = vsel %vm873, %v732, %v882
        %v884 = vrot.slane %v593, 1
        %v885 = vsel %vm873, %v733, %v884
        %v886 = vrot.slane %v595, 1
        %v887 = vsel %vm873, %v734, %v886
        %v888 = vrot.slane %v597, 1
        %v889 = vsel %vm873, %v735, %v888
        %v890 = vrot.slane %v599, 1
        %v891 = vsel %vm873, %v736, %v890
        %v892 = vrot.slane %v601, 1
        %v893 = vsel %vm873, %v737, %v892
        %v894 = vrot.slane %v603, 1
        %v895 = vsel %vm873, %v738, %v894
        %v896 = vrot.slane %v605, 1
        %v897 = vsel %vm873, %v739, %v896
        %v898 = vrot.slane %v607, 1
        %v899 = vsel %vm873, %v740, %v898
        %v900 = vrot.slane %v609, 1
        %v901 = vsel %vm873, %v741, %v900
        %v902 = vrot.slane %v611, 1
        %v903 = vsel %vm873, %v742, %v902
        %v904 = vrot.slane %v613, 1
        %v905 = vsel %vm873, %v743, %v904
        %v954 = vsel %vm873, %v874, %v778
        %v955 = vsel %vm873, %v876, %v781
        %v956 = vsel %vm873, %v878, %v784
        %v957 = vsel %vm873, %v880, %v787
        %v958 = vsel %vm873, %v882, %v790
        %v959 = vsel %vm873, %v884, %v793
        %v960 = vsel %vm873, %v886, %v796
        %v961 = vsel %vm873, %v888, %v799
        %v962 = vsel %vm873, %v890, %v802
        %v963 = vsel %vm873, %v892, %v805
        %v964 = vsel %vm873, %v894, %v808
        %v965 = vsel %vm873, %v896, %v811
        %v966 = vsel %vm873, %v898, %v814
        %v967 = vsel %vm873, %v900, %v817
        %v968 = vsel %vm873, %v902, %v820
        %v969 = vsel %vm873, %v904, %v823
        %v970 = vpack.c.bf16 %v779, %v857
        %v971 = vpack.c.bf16 %v782, %v858
        %v972 = vpack.c.bf16 %v785, %v859
        %v973 = vpack.c.bf16 %v788, %v860
        %v974 = vpack.c.bf16 %v791, %v861
        %v975 = vpack.c.bf16 %v794, %v862
        %v976 = vpack.c.bf16 %v797, %v863
        %v977 = vpack.c.bf16 %v800, %v864
        %v978 = vpack.c.bf16 %v803, %v865
        %v979 = vpack.c.bf16 %v806, %v866
        %v980 = vpack.c.bf16 %v809, %v867
        %v981 = vpack.c.bf16 %v812, %v868
        %v982 = vpack.c.bf16 %v815, %v869
        %v983 = vpack.c.bf16 %v818, %v870
        %v984 = vpack.c.bf16 %v821, %v871
        %v985 = vpack.c.bf16 %v824, %v872
        %vm986 = vcmask 261120
        %987 = vst.msk [vmem:[%s694] sm:$0xff] %vm986, %v970
        %988 = vst.msk [vmem:[%s694 + $0x8] sm:$0xff] %vm986, %v971
        %989 = vst.msk [vmem:[%s694 + $0x10] sm:$0xff] %vm986, %v972
        %990 = vst.msk [vmem:[%s694 + $0x18] sm:$0xff] %vm986, %v973
        %991 = vst.msk [vmem:[%s694 + $0x20] sm:$0xff] %vm986, %v974
        %992 = vst.msk [vmem:[%s694 + $0x28] sm:$0xff] %vm986, %v975
        %993 = vst.msk [vmem:[%s694 + $0x30] sm:$0xff] %vm986, %v976
        %994 = vst.msk [vmem:[%s694 + $0x38] sm:$0xff] %vm986, %v977
        %995 = vst.msk [vmem:[%s694 + $0x40] sm:$0xff] %vm986, %v978
        %996 = vst.msk [vmem:[%s694 + $0x48] sm:$0xff] %vm986, %v979
        %997 = vst.msk [vmem:[%s694 + $0x50] sm:$0xff] %vm986, %v980
        %998 = vst.msk [vmem:[%s694 + $0x58] sm:$0xff] %vm986, %v981
        %999 = vst.msk [vmem:[%s694 + $0x60] sm:$0xff] %vm986, %v982
        %1000 = vst.msk [vmem:[%s694 + $0x68] sm:$0xff] %vm986, %v983
        %1001 = vst.msk [vmem:[%s694 + $0x70] sm:$0xff] %vm986, %v984
        %1002 = vst.msk [vmem:[%s694 + $0x78] sm:$0xff] %vm986, %v985
        %v1003 = vpack.c.bf16 %v954, %v875
        %v1004 = vpack.c.bf16 %v955, %v877
        %v1005 = vpack.c.bf16 %v956, %v879
        %v1006 = vpack.c.bf16 %v957, %v881
        %v1007 = vpack.c.bf16 %v958, %v883
        %v1008 = vpack.c.bf16 %v959, %v885
        %v1009 = vpack.c.bf16 %v960, %v887
        %v1010 = vpack.c.bf16 %v961, %v889
        %v1011 = vpack.c.bf16 %v962, %v891
        %v1012 = vpack.c.bf16 %v963, %v893
        %v1013 = vpack.c.bf16 %v964, %v895
        %v1014 = vpack.c.bf16 %v965, %v897
        %v1015 = vpack.c.bf16 %v966, %v899
        %v1016 = vpack.c.bf16 %v967, %v901
        %v1017 = vpack.c.bf16 %v968, %v903
        %v1018 = vpack.c.bf16 %v969, %v905
        %1035 = vrot.lane.b32.xlu0 %v1003, 64
        %v1036 = vpop.permute.xlu0 %1035
        %1037 = vrot.lane.b32.xlu0 %v1004, 64
        %v1038 = vpop.permute.xlu0 %1037
        %1039 = vrot.lane.b32.xlu0 %v1005, 64
        %v1040 = vpop.permute.xlu0 %1039
        %1041 = vrot.lane.b32.xlu0 %v1006, 64
        %v1042 = vpop.permute.xlu0 %1041
        %1043 = vrot.lane.b32.xlu0 %v1007, 64
        %v1044 = vpop.permute.xlu0 %1043
        %1045 = vrot.lane.b32.xlu0 %v1008, 64
        %v1046 = vpop.permute.xlu0 %1045
        %1047 = vrot.lane.b32.xlu0 %v1009, 64
        %v1048 = vpop.permute.xlu0 %1047
        %1049 = vrot.lane.b32.xlu0 %v1010, 64
        %v1050 = vpop.permute.xlu0 %1049
        %1051 = vrot.lane.b32.xlu0 %v1011, 64
        %v1052 = vpop.permute.xlu0 %1051
        %1053 = vrot.lane.b32.xlu0 %v1012, 64
        %v1054 = vpop.permute.xlu0 %1053
        %1055 = vrot.lane.b32.xlu0 %v1013, 64
        %v1056 = vpop.permute.xlu0 %1055
        %1057 = vrot.lane.b32.xlu0 %v1014, 64
        %v1058 = vpop.permute.xlu0 %1057
        %1059 = vrot.lane.b32.xlu0 %v1015, 64
        %v1060 = vpop.permute.xlu0 %1059
        %1061 = vrot.lane.b32.xlu0 %v1016, 64
        %v1062 = vpop.permute.xlu0 %1061
        %1063 = vrot.lane.b32.xlu0 %v1017, 64
        %v1064 = vpop.permute.xlu0 %1063
        %1065 = vrot.lane.b32.xlu0 %v1018, 64
        %v1066 = vpop.permute.xlu0 %1065
        %vm1083 = vcmask 785920
        %1084 = vst.msk [vmem:[%s694] sm:$0xff] %vm1083, %v1036
        %1085 = vst.msk [vmem:[%s694 + $0x8] sm:$0xff] %vm1083, %v1038
        %1086 = vst.msk [vmem:[%s694 + $0x10] sm:$0xff] %vm1083, %v1040
        %1087 = vst.msk [vmem:[%s694 + $0x18] sm:$0xff] %vm1083, %v1042
        %1088 = vst.msk [vmem:[%s694 + $0x20] sm:$0xff] %vm1083, %v1044
        %1089 = vst.msk [vmem:[%s694 + $0x28] sm:$0xff] %vm1083, %v1046
        %1090 = vst.msk [vmem:[%s694 + $0x30] sm:$0xff] %vm1083, %v1048
        %1091 = vst.msk [vmem:[%s694 + $0x38] sm:$0xff] %vm1083, %v1050
        %1092 = vst.msk [vmem:[%s694 + $0x40] sm:$0xff] %vm1083, %v1052
        %1093 = vst.msk [vmem:[%s694 + $0x48] sm:$0xff] %vm1083, %v1054
        %1094 = vst.msk [vmem:[%s694 + $0x50] sm:$0xff] %vm1083, %v1056
        %1095 = vst.msk [vmem:[%s694 + $0x58] sm:$0xff] %vm1083, %v1058
        %1096 = vst.msk [vmem:[%s694 + $0x60] sm:$0xff] %vm1083, %v1060
        %1097 = vst.msk [vmem:[%s694 + $0x68] sm:$0xff] %vm1083, %v1062
        %1098 = vst.msk [vmem:[%s694 + $0x70] sm:$0xff] %vm1083, %v1064
        %1099 = vst.msk [vmem:[%s694 + $0x78] sm:$0xff] %vm1083, %v1066
        %s1100 = scalar_lea.vmem [#allocation2], 16
        %v1101 = vld [vmem:[%s1100] sm:$0xff]
        %vm1102 = vcmask 785408
        %1103 = vst.msk [vmem:[#allocation2] sm:$0xff] %vm1102, %v1101
        %s1104 = scalar_lea.vmem [#allocation2], 120
        %v1105 = vld [vmem:[%s1104] sm:$0xff]
        %s1106 = scalar_lea.vmem [#allocation2], 136
        %1107 = vst.msk [vmem:[%s1106] sm:$0xff] %vm1102, %v1105
        %v1108 = vld [vmem:[#allocation2] sm:$0xff]
        %v1109 = vld [vmem:[#allocation2 + $0x8] sm:$0xff]
        %v1110 = vld [vmem:[#allocation2 + $0x10] sm:$0xff]
        %v1111 = vld [vmem:[#allocation2 + $0x18] sm:$0xff]
        %v1112 = vld [vmem:[#allocation2 + $0x20] sm:$0xff]
        %v1113 = vld [vmem:[#allocation2 + $0x28] sm:$0xff]
        %v1114 = vld [vmem:[#allocation2 + $0x30] sm:$0xff]
        %v1115 = vld [vmem:[#allocation2 + $0x38] sm:$0xff]
        %v1116 = vld [vmem:[#allocation2 + $0x40] sm:$0xff]
        %v1117 = vld [vmem:[#allocation2 + $0x48] sm:$0xff]
        %v1118 = vld [vmem:[#allocation2 + $0x50] sm:$0xff]
        %v1119 = vld [vmem:[#allocation2 + $0x58] sm:$0xff]
        %v1120 = vld [vmem:[#allocation2 + $0x60] sm:$0xff]
        %v1121 = vld [vmem:[#allocation2 + $0x68] sm:$0xff]
        %v1122 = vld [vmem:[#allocation2 + $0x70] sm:$0xff]
        %v1123 = vld [vmem:[#allocation2 + $0x78] sm:$0xff]
        %v1124 = vld [vmem:[#allocation2 + $0x80] sm:$0xff]
        %v1125 = vld [vmem:[#allocation2 + $0x88] sm:$0xff]
        %v1126 = vld [vmem:[#allocation10] sm:$0xf]
        %v1127 = vld [vmem:[#allocation10 + $0x4] sm:$0xf]
        %v1128 = vld [vmem:[#allocation10 + $0x8] sm:$0xf]
        %v1129 = vld [vmem:[#allocation10 + $0xc] sm:$0xf]
        %v1130 = vld [vmem:[#allocation10 + $0x10] sm:$0xf]
        %v1131 = vld [vmem:[#allocation10 + $0x14] sm:$0xf]
        %v1132 = vld [vmem:[#allocation10 + $0x18] sm:$0xf]
        %v1133 = vld [vmem:[#allocation10 + $0x1c] sm:$0xf]
        %v1134 = vld [vmem:[#allocation10 + $0x20] sm:$0xf]
        %v1135 = vld [vmem:[#allocation10 + $0x24] sm:$0xf]
        %v1136 = vld [vmem:[#allocation10 + $0x28] sm:$0xf]
        %v1137 = vld [vmem:[#allocation10 + $0x2c] sm:$0xf]
        %v1150 = vunpack.c.l.b16 %v1126
        %v1151 = vunpack.c.l.b16 %v1127
        %v1152 = vunpack.c.l.b16 %v1128
        %v1153 = vunpack.c.l.b16 %v1129
        %v1154 = vunpack.c.l.b16 %v1130
        %v1155 = vunpack.c.l.b16 %v1131
        %v1156 = vunpack.c.l.b16 %v1132
        %v1157 = vunpack.c.l.b16 %v1133
        %v1158 = vunpack.c.l.b16 %v1134
        %v1159 = vunpack.c.l.b16 %v1135
        %v1160 = vunpack.c.l.b16 %v1136
        %v1161 = vunpack.c.l.b16 %v1137
        %v1162 = vpack.c.b16 %v1151, %v1150
        %v1163 = vpack.c.b16 %v1153, %v1152
        %v1164 = vpack.c.b16 %v1155, %v1154
        %v1165 = vpack.c.b16 %v1157, %v1156
        %v1166 = vpack.c.b16 %v1159, %v1158
        %v1167 = vpack.c.b16 %v1161, %v1160
        %v1175 = vsel %vm1102, %v1108, 0
        %v1178 = vsel %vm1102, %v1109, 0
        %v1181 = vsel %vm1102, %v1110, 0
        %v1184 = vsel %vm1102, %v1111, 0
        %v1187 = vsel %vm1102, %v1112, 0
        %v1190 = vsel %vm1102, %v1113, 0
        %v1193 = vsel %vm1102, %v1114, 0
        %v1196 = vsel %vm1102, %v1115, 0
        %v1199 = vsel %vm1102, %v1116, 0
        %v1202 = vsel %vm1102, %v1117, 0
        %v1205 = vsel %vm1102, %v1118, 0
        %v1208 = vsel %vm1102, %v1119, 0
        %v1211 = vsel %vm1102, %v1120, 0
        %v1214 = vsel %vm1102, %v1121, 0
        %v1217 = vsel %vm1102, %v1122, 0
        %v1220 = vsel %vm1102, %v1123, 0
        %v1223 = vsel %vm1102, %v1124, 0
        %v1226 = vsel %vm1102, %v1125, 0
        %1228 = vmatprep.subr.bf16.mxu0 0
        %1229 = vmatpush1.bf16.msra.mxu0 %v1162
        %1230 = vmatprep.subr.bf16.mxu0 0
        %1231 = vmatpush1.bf16.msra.mxu0 %v1163
        %1232 = vmatprep.subr.bf16.mxu0 0
        %1233 = vmatpush1.bf16.msra.mxu0 %v1164
        %1234 = vmatprep.subr.bf16.mxu0 0
        %1235 = vmatpush1.bf16.msra.mxu0 %v1165
        %1236 = vmatprep.subr.bf16.mxu0 0
        %1237 = vmatpush1.bf16.msra.mxu0 %v1166
        %1238 = vmatprep.subr.bf16.mxu0 0
        %1239 = vmatpush1.bf16.msra.mxu0 %v1167
        %1240 = vmatprep.subr.bf16.mxu0 0
        %1241 = vmatpush1.bf16.msra.mxu0 0
        %1242 = vmatprep.subr.bf16.mxu0 0
        %1243 = vmatpush1.bf16.msra.mxu0 0
        %1244 = vmatprep.subr.bf16.mxu0 0
        %1245 = vmatpush1.bf16.msra.mxu0 0
        %1246 = vmatprep.subr.bf16.mxu0 0
        %1247 = vmatpush1.bf16.msra.mxu0 0
        %1248 = vmatprep.subr.bf16.mxu0 0
        %1249 = vmatpush1.bf16.msra.mxu0 0
        %1250 = vmatprep.subr.bf16.mxu0 0
        %1251 = vmatpush1.bf16.msra.mxu0 0
        %1252 = vmatprep.subr.bf16.mxu0 0
        %1253 = vmatpush1.bf16.msra.mxu0 0
        %1254 = vmatprep.subr.bf16.mxu0 0
        %1255 = vmatpush1.bf16.msra.mxu0 0
        %1256 = vmatprep.subr.bf16.mxu0 0
        %1257 = vmatpush1.bf16.msra.mxu0 0
        %1258 = vmatprep.subr.bf16.mxu0 0
        %1259 = vmatpush1.bf16.msra.mxu0 0
        %1260 = vmatprep.mubr.bf16.mxu0 0
        %1261 = vmatmul.mubr.bf16.gmra.mrb[0].mxu0 %v1175
        %v1262 = vpop.f32.mrb[0].mxu0
        %v1263 = vadd.f32 0.0, %v1262
        %v1264 = vpop.f32.mrb[0].mxu0
        %v1265 = vpop.f32.mrb[0].mxu0
        %v1266 = vadd.f32 0.0, %v1265
        %v1267 = vpop.f32.mrb[0].mxu0
        %1268 = vmatprep.mubr.bf16.mxu0 0
        %1269 = vmatmul.mubr.bf16.gmra.mrb[0].mxu0 %v1178
        %v1270 = vpop.f32.mrb[0].mxu0
        %v1271 = vadd.f32 0.0, %v1270
        %v1272 = vpop.f32.mrb[0].mxu0
        %v1273 = vpop.f32.mrb[0].mxu0
        %v1274 = vadd.f32 0.0, %v1273
        %v1275 = vpop.f32.mrb[0].mxu0
        %1276 = vmatprep.mubr.bf16.mxu0 0
        %1277 = vmatmul.mubr.bf16.gmra.mrb[0].mxu0 %v1181
        %v1278 = vpop.f32.mrb[0].mxu0
        %v1279 = vadd.f32 0.0, %v1278
        %v1280 = vpop.f32.mrb[0].mxu0
        %v1281 = vpop.f32.mrb[0].mxu0
        %v1282 = vadd.f32 0.0, %v1281
        %v1283 = vpop.f32.mrb[0].mxu0
        %1284 = vmatprep.mubr.bf16.mxu0 0
        %1285 = vmatmul.mubr.bf16.gmra.mrb[0].mxu0 %v1184
        %v1286 = vpop.f32.mrb[0].mxu0
        %v1287 = vadd.f32 0.0, %v1286
        %v1288 = vpop.f32.mrb[0].mxu0
        %v1289 = vpop.f32.mrb[0].mxu0
        %v1290 = vadd.f32 0.0, %v1289
        %v1291 = vpop.f32.mrb[0].mxu0
        %1292 = vmatprep.mubr.bf16.mxu0 0
        %1293 = vmatmul.mubr.bf16.gmra.mrb[0].mxu0 %v1187
        %v1294 = vpop.f32.mrb[0].mxu0
        %v1295 = vadd.f32 0.0, %v1294
        %v1296 = vpop.f32.mrb[0].mxu0
        %v1297 = vpop.f32.mrb[0].mxu0
        %v1298 = vadd.f32 0.0, %v1297
        %v1299 = vpop.f32.mrb[0].mxu0
        %1300 = vmatprep.mubr.bf16.mxu0 0
        %1301 = vmatmul.mubr.bf16.gmra.mrb[0].mxu0 %v1190
        %v1302 = vpop.f32.mrb[0].mxu0
        %v1303 = vadd.f32 0.0, %v1302
        %v1304 = vpop.f32.mrb[0].mxu0
        %v1305 = vpop.f32.mrb[0].mxu0
        %v1306 = vadd.f32 0.0, %v1305
        %v1307 = vpop.f32.mrb[0].mxu0
        %1308 = vmatprep.mubr.bf16.mxu0 0
        %1309 = vmatmul.mubr.bf16.gmra.mrb[0].mxu0 %v1193
        %v1310 = vpop.f32.mrb[0].mxu0
        %v1311 = vadd.f32 0.0, %v1310
        %v1312 = vpop.f32.mrb[0].mxu0
        %v1313 = vpop.f32.mrb[0].mxu0
        %v1314 = vadd.f32 0.0, %v1313
        %v1315 = vpop.f32.mrb[0].mxu0
        %1316 = vmatprep.mubr.bf16.mxu0 0
        %1317 = vmatmul.mubr.bf16.gmra.mrb[0].mxu0 %v1196
        %v1318 = vpop.f32.mrb[0].mxu0
        %v1319 = vadd.f32 0.0, %v1318
        %v1320 = vpop.f32.mrb[0].mxu0
        %v1321 = vpop.f32.mrb[0].mxu0
        %v1322 = vadd.f32 0.0, %v1321
        %v1323 = vpop.f32.mrb[0].mxu0
        %1324 = vmatprep.mubr.bf16.mxu0 0
        %1325 = vmatmul.mubr.bf16.gmra.mrb[0].mxu0 %v1199
        %v1326 = vpop.f32.mrb[0].mxu0
        %v1327 = vadd.f32 0.0, %v1326
        %v1328 = vpop.f32.mrb[0].mxu0
        %v1329 = vpop.f32.mrb[0].mxu0
        %v1330 = vadd.f32 0.0, %v1329
        %v1331 = vpop.f32.mrb[0].mxu0
        %1332 = vmatprep.mubr.bf16.mxu0 0
        %1333 = vmatmul.mubr.bf16.gmra.mrb[0].mxu0 %v1202
        %v1334 = vpop.f32.mrb[0].mxu0
        %v1335 = vadd.f32 0.0, %v1334
        %v1336 = vpop.f32.mrb[0].mxu0
        %v1337 = vpop.f32.mrb[0].mxu0
        %v1338 = vadd.f32 0.0, %v1337
        %v1339 = vpop.f32.mrb[0].mxu0
        %1340 = vmatprep.mubr.bf16.mxu0 0
        %1341 = vmatmul.mubr.bf16.gmra.mrb[0].mxu0 %v1205
        %v1342 = vpop.f32.mrb[0].mxu0
        %v1343 = vadd.f32 0.0, %v1342
        %v1344 = vpop.f32.mrb[0].mxu0
        %v1345 = vpop.f32.mrb[0].mxu0
        %v1346 = vadd.f32 0.0, %v1345
        %v1347 = vpop.f32.mrb[0].mxu0
        %1348 = vmatprep.mubr.bf16.mxu0 0
        %1349 = vmatmul.mubr.bf16.gmra.mrb[0].mxu0 %v1208
        %v1350 = vpop.f32.mrb[0].mxu0
        %v1351 = vadd.f32 0.0, %v1350
        %v1352 = vpop.f32.mrb[0].mxu0
        %v1353 = vpop.f32.mrb[0].mxu0
        %v1354 = vadd.f32 0.0, %v1353
        %v1355 = vpop.f32.mrb[0].mxu0
        %1356 = vmatprep.mubr.bf16.mxu0 0
        %1357 = vmatmul.mubr.bf16.gmra.mrb[0].mxu0 %v1211
        %v1358 = vpop.f32.mrb[0].mxu0
        %v1359 = vadd.f32 0.0, %v1358
        %v1360 = vpop.f32.mrb[0].mxu0
        %v1361 = vpop.f32.mrb[0].mxu0
        %v1362 = vadd.f32 0.0, %v1361
        %v1363 = vpop.f32.mrb[0].mxu0
        %1364 = vmatprep.mubr.bf16.mxu0 0
        %1365 = vmatmul.mubr.bf16.gmra.mrb[0].mxu0 %v1214
        %v1366 = vpop.f32.mrb[0].mxu0
        %v1367 = vadd.f32 0.0, %v1366
        %v1368 = vpop.f32.mrb[0].mxu0
        %v1369 = vpop.f32.mrb[0].mxu0
        %v1370 = vadd.f32 0.0, %v1369
        %v1371 = vpop.f32.mrb[0].mxu0
        %1372 = vmatprep.mubr.bf16.mxu0 0
        %1373 = vmatmul.mubr.bf16.gmra.mrb[0].mxu0 %v1217
        %v1374 = vpop.f32.mrb[0].mxu0
        %v1375 = vadd.f32 0.0, %v1374
        %v1376 = vpop.f32.mrb[0].mxu0
        %v1377 = vpop.f32.mrb[0].mxu0
        %v1378 = vadd.f32 0.0, %v1377
        %v1379 = vpop.f32.mrb[0].mxu0
        %1380 = vmatprep.mubr.bf16.mxu0 0
        %1381 = vmatmul.mubr.bf16.gmra.mrb[0].mxu0 %v1220
        %v1382 = vpop.f32.mrb[0].mxu0
        %v1383 = vadd.f32 0.0, %v1382
        %v1384 = vpop.f32.mrb[0].mxu0
        %v1385 = vpop.f32.mrb[0].mxu0
        %v1386 = vadd.f32 0.0, %v1385
        %v1387 = vpop.f32.mrb[0].mxu0
        %1388 = vmatprep.mubr.bf16.mxu0 0
        %1389 = vmatmul.mubr.bf16.gmra.mrb[0].mxu0 %v1223
        %v1390 = vpop.f32.mrb[0].mxu0
        %v1391 = vadd.f32 0.0, %v1390
        %v1392 = vpop.f32.mrb[0].mxu0
        %v1393 = vpop.f32.mrb[0].mxu0
        %v1394 = vadd.f32 0.0, %v1393
        %v1395 = vpop.f32.mrb[0].mxu0
        %1396 = vmatprep.mubr.bf16.mxu0 0
        %1397 = vmatmul.mubr.bf16.gmra.mrb[0].mxu0 %v1226
        %v1398 = vpop.f32.mrb[0].mxu0
        %v1399 = vadd.f32 0.0, %v1398
        %v1400 = vpop.f32.mrb[0].mxu0
        %v1401 = vpop.f32.mrb[0].mxu0
        %v1402 = vadd.f32 0.0, %v1401
        %v1403 = vpop.f32.mrb[0].mxu0
        %1404 = vdwg.mxu0
        %1437 = vrot.lane.b32.xlu0 %v1271, 96
        %v1438 = vpop.permute.xlu0 %1437
        %1439 = vrot.lane.b32.xlu0 %v1274, 96
        %v1440 = vpop.permute.xlu0 %1439
        %1441 = vrot.lane.b32.xlu0 %v1279, 96
        %v1442 = vpop.permute.xlu0 %1441
        %1443 = vrot.lane.b32.xlu0 %v1282, 96
        %v1444 = vpop.permute.xlu0 %1443
        %1445 = vrot.lane.b32.xlu0 %v1287, 96
        %v1446 = vpop.permute.xlu0 %1445
        %1447 = vrot.lane.b32.xlu0 %v1290, 96
        %v1448 = vpop.permute.xlu0 %1447
        %1449 = vrot.lane.b32.xlu0 %v1295, 96
        %v1450 = vpop.permute.xlu0 %1449
        %1451 = vrot.lane.b32.xlu0 %v1298, 96
        %v1452 = vpop.permute.xlu0 %1451
        %1453 = vrot.lane.b32.xlu0 %v1303, 96
        %v1454 = vpop.permute.xlu0 %1453
        %1455 = vrot.lane.b32.xlu0 %v1306, 96
        %v1456 = vpop.permute.xlu0 %1455
        %1457 = vrot.lane.b32.xlu0 %v1311, 96
        %v1458 = vpop.permute.xlu0 %1457
        %1459 = vrot.lane.b32.xlu0 %v1314, 96
        %v1460 = vpop.permute.xlu0 %1459
        %1461 = vrot.lane.b32.xlu0 %v1319, 96
        %v1462 = vpop.permute.xlu0 %1461
        %1463 = vrot.lane.b32.xlu0 %v1322, 96
        %v1464 = vpop.permute.xlu0 %1463
        %1465 = vrot.lane.b32.xlu0 %v1327, 96
        %v1466 = vpop.permute.xlu0 %1465
        %1467 = vrot.lane.b32.xlu0 %v1330, 96
        %v1468 = vpop.permute.xlu0 %1467
        %1469 = vrot.lane.b32.xlu0 %v1335, 96
        %v1470 = vpop.permute.xlu0 %1469
        %1471 = vrot.lane.b32.xlu0 %v1338, 96
        %v1472 = vpop.permute.xlu0 %1471
        %1473 = vrot.lane.b32.xlu0 %v1343, 96
        %v1474 = vpop.permute.xlu0 %1473
        %1475 = vrot.lane.b32.xlu0 %v1346, 96
        %v1476 = vpop.permute.xlu0 %1475
        %1477 = vrot.lane.b32.xlu0 %v1351, 96
        %v1478 = vpop.permute.xlu0 %1477
        %1479 = vrot.lane.b32.xlu0 %v1354, 96
        %v1480 = vpop.permute.xlu0 %1479
        %1481 = vrot.lane.b32.xlu0 %v1359, 96
        %v1482 = vpop.permute.xlu0 %1481
        %1483 = vrot.lane.b32.xlu0 %v1362, 96
        %v1484 = vpop.permute.xlu0 %1483
        %1485 = vrot.lane.b32.xlu0 %v1367, 96
        %v1486 = vpop.permute.xlu0 %1485
        %1487 = vrot.lane.b32.xlu0 %v1370, 96
        %v1488 = vpop.permute.xlu0 %1487
        %1489 = vrot.lane.b32.xlu0 %v1375, 96
        %v1490 = vpop.permute.xlu0 %1489
        %1491 = vrot.lane.b32.xlu0 %v1378, 96
        %v1492 = vpop.permute.xlu0 %1491
        %1493 = vrot.lane.b32.xlu0 %v1383, 96
        %v1494 = vpop.permute.xlu0 %1493
        %1495 = vrot.lane.b32.xlu0 %v1386, 96
        %v1496 = vpop.permute.xlu0 %1495
        %1497 = vrot.lane.b32.xlu0 %v1391, 96
        %v1498 = vpop.permute.xlu0 %1497
        %1499 = vrot.lane.b32.xlu0 %v1394, 96
        %v1500 = vpop.permute.xlu0 %1499
        %v1533 = vadd.f32 %v1263, %v1438
        %v1534 = vadd.f32 %v1266, %v1440
        %v1535 = vadd.f32 %v1271, %v1442
        %v1536 = vadd.f32 %v1274, %v1444
        %v1537 = vadd.f32 %v1279, %v1446
        %v1538 = vadd.f32 %v1282, %v1448
        %v1539 = vadd.f32 %v1287, %v1450
        %v1540 = vadd.f32 %v1290, %v1452
        %v1541 = vadd.f32 %v1295, %v1454
        %v1542 = vadd.f32 %v1298, %v1456
        %v1543 = vadd.f32 %v1303, %v1458
        %v1544 = vadd.f32 %v1306, %v1460
        %v1545 = vadd.f32 %v1311, %v1462
        %v1546 = vadd.f32 %v1314, %v1464
        %v1547 = vadd.f32 %v1319, %v1466
        %v1548 = vadd.f32 %v1322, %v1468
        %v1549 = vadd.f32 %v1327, %v1470
        %v1550 = vadd.f32 %v1330, %v1472
        %v1551 = vadd.f32 %v1335, %v1474
        %v1552 = vadd.f32 %v1338, %v1476
        %v1553 = vadd.f32 %v1343, %v1478
        %v1554 = vadd.f32 %v1346, %v1480
        %v1555 = vadd.f32 %v1351, %v1482
        %v1556 = vadd.f32 %v1354, %v1484
        %v1557 = vadd.f32 %v1359, %v1486
        %v1558 = vadd.f32 %v1362, %v1488
        %v1559 = vadd.f32 %v1367, %v1490
        %v1560 = vadd.f32 %v1370, %v1492
        %v1561 = vadd.f32 %v1375, %v1494
        %v1562 = vadd.f32 %v1378, %v1496
        %v1563 = vadd.f32 %v1383, %v1498
        %v1564 = vadd.f32 %v1386, %v1500
        %1567 = vrot.lane.b32.xlu0 %v1279, 64
        %v1568 = vpop.permute.xlu0 %1567
        %1569 = vrot.lane.b32.xlu0 %v1282, 64
        %v1570 = vpop.permute.xlu0 %1569
        %1571 = vrot.lane.b32.xlu0 %v1287, 64
        %v1572 = vpop.permute.xlu0 %1571
        %1573 = vrot.lane.b32.xlu0 %v1290, 64
        %v1574 = vpop.permute.xlu0 %1573
        %1575 = vrot.lane.b32.xlu0 %v1295, 64
        %v1576 = vpop.permute.xlu0 %1575
        %1577 = vrot.lane.b32.xlu0 %v1298, 64
        %v1578 = vpop.permute.xlu0 %1577
        %1579 = vrot.lane.b32.xlu0 %v1303, 64
        %v1580 = vpop.permute.xlu0 %1579
        %1581 = vrot.lane.b32.xlu0 %v1306, 64
        %v1582 = vpop.permute.xlu0 %1581
        %1583 = vrot.lane.b32.xlu0 %v1311, 64
        %v1584 = vpop.permute.xlu0 %1583
        %1585 = vrot.lane.b32.xlu0 %v1314, 64
        %v1586 = vpop.permute.xlu0 %1585
        %1587 = vrot.lane.b32.xlu0 %v1319, 64
        %v1588 = vpop.permute.xlu0 %1587
        %1589 = vrot.lane.b32.xlu0 %v1322, 64
        %v1590 = vpop.permute.xlu0 %1589
        %1591 = vrot.lane.b32.xlu0 %v1327, 64
        %v1592 = vpop.permute.xlu0 %1591
        %1593 = vrot.lane.b32.xlu0 %v1330, 64
        %v1594 = vpop.permute.xlu0 %1593
        %1595 = vrot.lane.b32.xlu0 %v1335, 64
        %v1596 = vpop.permute.xlu0 %1595
        %1597 = vrot.lane.b32.xlu0 %v1338, 64
        %v1598 = vpop.permute.xlu0 %1597
        %1599 = vrot.lane.b32.xlu0 %v1343, 64
        %v1600 = vpop.permute.xlu0 %1599
        %1601 = vrot.lane.b32.xlu0 %v1346, 64
        %v1602 = vpop.permute.xlu0 %1601
        %1603 = vrot.lane.b32.xlu0 %v1351, 64
        %v1604 = vpop.permute.xlu0 %1603
        %1605 = vrot.lane.b32.xlu0 %v1354, 64
        %v1606 = vpop.permute.xlu0 %1605
        %1607 = vrot.lane.b32.xlu0 %v1359, 64
        %v1608 = vpop.permute.xlu0 %1607
        %1609 = vrot.lane.b32.xlu0 %v1362, 64
        %v1610 = vpop.permute.xlu0 %1609
        %1611 = vrot.lane.b32.xlu0 %v1367, 64
        %v1612 = vpop.permute.xlu0 %1611
        %1613 = vrot.lane.b32.xlu0 %v1370, 64
        %v1614 = vpop.permute.xlu0 %1613
        %1615 = vrot.lane.b32.xlu0 %v1375, 64
        %v1616 = vpop.permute.xlu0 %1615
        %1617 = vrot.lane.b32.xlu0 %v1378, 64
        %v1618 = vpop.permute.xlu0 %1617
        %1619 = vrot.lane.b32.xlu0 %v1383, 64
        %v1620 = vpop.permute.xlu0 %1619
        %1621 = vrot.lane.b32.xlu0 %v1386, 64
        %v1622 = vpop.permute.xlu0 %1621
        %1623 = vrot.lane.b32.xlu0 %v1391, 64
        %v1624 = vpop.permute.xlu0 %1623
        %1625 = vrot.lane.b32.xlu0 %v1394, 64
        %v1626 = vpop.permute.xlu0 %1625
        %1627 = vrot.lane.b32.xlu0 %v1399, 64
        %v1628 = vpop.permute.xlu0 %1627
        %1629 = vrot.lane.b32.xlu0 %v1402, 64
        %v1630 = vpop.permute.xlu0 %1629
        %v1663 = vadd.f32 %v1533, %v1568
        %v1664 = vadd.f32 %v1534, %v1570
        %v1665 = vadd.f32 %v1535, %v1572
        %v1666 = vadd.f32 %v1536, %v1574
        %v1667 = vadd.f32 %v1537, %v1576
        %v1668 = vadd.f32 %v1538, %v1578
        %v1669 = vadd.f32 %v1539, %v1580
        %v1670 = vadd.f32 %v1540, %v1582
        %v1671 = vadd.f32 %v1541, %v1584
        %v1672 = vadd.f32 %v1542, %v1586
        %v1673 = vadd.f32 %v1543, %v1588
        %v1674 = vadd.f32 %v1544, %v1590
        %v1675 = vadd.f32 %v1545, %v1592
        %v1676 = vadd.f32 %v1546, %v1594
        %v1677 = vadd.f32 %v1547, %v1596
        %v1678 = vadd.f32 %v1548, %v1598
        %v1679 = vadd.f32 %v1549, %v1600
        %v1680 = vadd.f32 %v1550, %v1602
        %v1681 = vadd.f32 %v1551, %v1604
        %v1682 = vadd.f32 %v1552, %v1606
        %v1683 = vadd.f32 %v1553, %v1608
        %v1684 = vadd.f32 %v1554, %v1610
        %v1685 = vadd.f32 %v1555, %v1612
        %v1686 = vadd.f32 %v1556, %v1614
        %v1687 = vadd.f32 %v1557, %v1616
        %v1688 = vadd.f32 %v1558, %v1618
        %v1689 = vadd.f32 %v1559, %v1620
        %v1690 = vadd.f32 %v1560, %v1622
        %v1691 = vadd.f32 %v1561, %v1624
        %v1692 = vadd.f32 %v1562, %v1626
        %v1693 = vadd.f32 %v1563, %v1628
        %v1694 = vadd.f32 %v1564, %v1630
        %v1695 = vld [vmem:[%s4] sm:$0x1]
        %v1697 = vlaneseq
        %v1698 = vshrl.u32 %v1697, 7
        %v1699 = vsub.s32 0, %v1698
        %v1700 = vrot.slane %v1695, %v1699
        %v1702 = vadd.f32 %v1663, %v1700
        %v1703 = vadd.f32 %v1664, %v1700
        %v1704 = vadd.f32 %v1665, %v1700
        %v1705 = vadd.f32 %v1666, %v1700
        %v1706 = vadd.f32 %v1667, %v1700
        %v1707 = vadd.f32 %v1668, %v1700
        %v1708 = vadd.f32 %v1669, %v1700
        %v1709 = vadd.f32 %v1670, %v1700
        %v1710 = vadd.f32 %v1671, %v1700
        %v1711 = vadd.f32 %v1672, %v1700
        %v1712 = vadd.f32 %v1673, %v1700
        %v1713 = vadd.f32 %v1674, %v1700
        %v1714 = vadd.f32 %v1675, %v1700
        %v1715 = vadd.f32 %v1676, %v1700
        %v1716 = vadd.f32 %v1677, %v1700
        %v1717 = vadd.f32 %v1678, %v1700
        %v1718 = vadd.f32 %v1679, %v1700
        %v1719 = vadd.f32 %v1680, %v1700
        %v1720 = vadd.f32 %v1681, %v1700
        %v1721 = vadd.f32 %v1682, %v1700
        %v1722 = vadd.f32 %v1683, %v1700
        %v1723 = vadd.f32 %v1684, %v1700
        %v1724 = vadd.f32 %v1685, %v1700
        %v1725 = vadd.f32 %v1686, %v1700
        %v1726 = vadd.f32 %v1687, %v1700
        %v1727 = vadd.f32 %v1688, %v1700
        %v1728 = vadd.f32 %v1689, %v1700
        %v1729 = vadd.f32 %v1690, %v1700
        %v1730 = vadd.f32 %v1691, %v1700
        %v1731 = vadd.f32 %v1692, %v1700
        %v1732 = vadd.f32 %v1693, %v1700
        %v1733 = vadd.f32 %v1694, %v1700
        %v1734 = vmax.f32 %v1702, 0.0
        %v1735 = vmax.f32 %v1703, 0.0
        %v1736 = vmax.f32 %v1704, 0.0
        %v1737 = vmax.f32 %v1705, 0.0
        %v1738 = vmax.f32 %v1706, 0.0
        %v1739 = vmax.f32 %v1707, 0.0
        %v1740 = vmax.f32 %v1708, 0.0
        %v1741 = vmax.f32 %v1709, 0.0
        %v1742 = vmax.f32 %v1710, 0.0
        %v1743 = vmax.f32 %v1711, 0.0
        %v1744 = vmax.f32 %v1712, 0.0
        %v1745 = vmax.f32 %v1713, 0.0
        %v1746 = vmax.f32 %v1714, 0.0
        %v1747 = vmax.f32 %v1715, 0.0
        %v1748 = vmax.f32 %v1716, 0.0
        %v1749 = vmax.f32 %v1717, 0.0
        %v1750 = vmax.f32 %v1718, 0.0
        %v1751 = vmax.f32 %v1719, 0.0
        %v1752 = vmax.f32 %v1720, 0.0
        %v1753 = vmax.f32 %v1721, 0.0
        %v1754 = vmax.f32 %v1722, 0.0
        %v1755 = vmax.f32 %v1723, 0.0
        %v1756 = vmax.f32 %v1724, 0.0
        %v1757 = vmax.f32 %v1725, 0.0
        %v1758 = vmax.f32 %v1726, 0.0
        %v1759 = vmax.f32 %v1727, 0.0
        %v1760 = vmax.f32 %v1728, 0.0
        %v1761 = vmax.f32 %v1729, 0.0
        %v1762 = vmax.f32 %v1730, 0.0
        %v1763 = vmax.f32 %v1731, 0.0
        %v1764 = vmax.f32 %v1732, 0.0
        %v1765 = vmax.f32 %v1733, 0.0
        %s1766 = sld [smem:[#allocation9 + %s34]]
        %v1767 = vstv %s1766
        %v1768 = vmul.f32 %v1734, %v1767
        %v1769 = vmul.f32 %v1735, %v1767
        %v1770 = vmul.f32 %v1736, %v1767
        %v1771 = vmul.f32 %v1737, %v1767
        %v1772 = vmul.f32 %v1738, %v1767
        %v1773 = vmul.f32 %v1739, %v1767
        %v1774 = vmul.f32 %v1740, %v1767
        %v1775 = vmul.f32 %v1741, %v1767
        %v1776 = vmul.f32 %v1742, %v1767
        %v1777 = vmul.f32 %v1743, %v1767
        %v1778 = vmul.f32 %v1744, %v1767
        %v1779 = vmul.f32 %v1745, %v1767
        %v1780 = vmul.f32 %v1746, %v1767
        %v1781 = vmul.f32 %v1747, %v1767
        %v1782 = vmul.f32 %v1748, %v1767
        %v1783 = vmul.f32 %v1749, %v1767
        %v1784 = vmul.f32 %v1750, %v1767
        %v1785 = vmul.f32 %v1751, %v1767
        %v1786 = vmul.f32 %v1752, %v1767
        %v1787 = vmul.f32 %v1753, %v1767
        %v1788 = vmul.f32 %v1754, %v1767
        %v1789 = vmul.f32 %v1755, %v1767
        %v1790 = vmul.f32 %v1756, %v1767
        %v1791 = vmul.f32 %v1757, %v1767
        %v1792 = vmul.f32 %v1758, %v1767
        %v1793 = vmul.f32 %v1759, %v1767
        %v1794 = vmul.f32 %v1760, %v1767
        %v1795 = vmul.f32 %v1761, %v1767
        %v1796 = vmul.f32 %v1762, %v1767
        %v1797 = vmul.f32 %v1763, %v1767
        %v1798 = vmul.f32 %v1764, %v1767
        %v1799 = vmul.f32 %v1765, %v1767
        %v1800 = vpack.c.bf16 %v1769, %v1768
        %v1801 = vpack.c.bf16 %v1771, %v1770
        %v1802 = vpack.c.bf16 %v1773, %v1772
        %v1803 = vpack.c.bf16 %v1775, %v1774
        %v1804 = vpack.c.bf16 %v1777, %v1776
        %v1805 = vpack.c.bf16 %v1779, %v1778
        %v1806 = vpack.c.bf16 %v1781, %v1780
        %v1807 = vpack.c.bf16 %v1783, %v1782
        %v1808 = vpack.c.bf16 %v1785, %v1784
        %v1809 = vpack.c.bf16 %v1787, %v1786
        %v1810 = vpack.c.bf16 %v1789, %v1788
        %v1811 = vpack.c.bf16 %v1791, %v1790
        %v1812 = vpack.c.bf16 %v1793, %v1792
        %v1813 = vpack.c.bf16 %v1795, %v1794
        %v1814 = vpack.c.bf16 %v1797, %v1796
        %v1815 = vpack.c.bf16 %v1799, %v1798
        %1832 = vrot.lane.b32.xlu0 %v1800, 32
        %v1833 = vpop.permute.xlu0 %1832
        %1834 = vrot.lane.b32.xlu0 %v1801, 32
        %v1835 = vpop.permute.xlu0 %1834
        %1836 = vrot.lane.b32.xlu0 %v1802, 32
        %v1837 = vpop.permute.xlu0 %1836
        %1838 = vrot.lane.b32.xlu0 %v1803, 32
        %v1839 = vpop.permute.xlu0 %1838
        %1840 = vrot.lane.b32.xlu0 %v1804, 32
        %v1841 = vpop.permute.xlu0 %1840
        %1842 = vrot.lane.b32.xlu0 %v1805, 32
        %v1843 = vpop.permute.xlu0 %1842
        %1844 = vrot.lane.b32.xlu0 %v1806, 32
        %v1845 = vpop.permute.xlu0 %1844
        %1846 = vrot.lane.b32.xlu0 %v1807, 32
        %v1847 = vpop.permute.xlu0 %1846
        %1848 = vrot.lane.b32.xlu0 %v1808, 32
        %v1849 = vpop.permute.xlu0 %1848
        %1850 = vrot.lane.b32.xlu0 %v1809, 32
        %v1851 = vpop.permute.xlu0 %1850
        %1852 = vrot.lane.b32.xlu0 %v1810, 32
        %v1853 = vpop.permute.xlu0 %1852
        %1854 = vrot.lane.b32.xlu0 %v1811, 32
        %v1855 = vpop.permute.xlu0 %1854
        %1856 = vrot.lane.b32.xlu0 %v1812, 32
        %v1857 = vpop.permute.xlu0 %1856
        %1858 = vrot.lane.b32.xlu0 %v1813, 32
        %v1859 = vpop.permute.xlu0 %1858
        %1860 = vrot.lane.b32.xlu0 %v1814, 32
        %v1861 = vpop.permute.xlu0 %1860
        %1862 = vrot.lane.b32.xlu0 %v1815, 32
        %v1863 = vpop.permute.xlu0 %1862
        %1880 = vst.msk [vmem:[%s694] sm:$0xff] %vm695, %v1833
        %1881 = vst.msk [vmem:[%s694 + $0x8] sm:$0xff] %vm695, %v1835
        %1882 = vst.msk [vmem:[%s694 + $0x10] sm:$0xff] %vm695, %v1837
        %1883 = vst.msk [vmem:[%s694 + $0x18] sm:$0xff] %vm695, %v1839
        %1884 = vst.msk [vmem:[%s694 + $0x20] sm:$0xff] %vm695, %v1841
        %1885 = vst.msk [vmem:[%s694 + $0x28] sm:$0xff] %vm695, %v1843
        %1886 = vst.msk [vmem:[%s694 + $0x30] sm:$0xff] %vm695, %v1845
        %1887 = vst.msk [vmem:[%s694 + $0x38] sm:$0xff] %vm695, %v1847
        %1888 = vst.msk [vmem:[%s694 + $0x40] sm:$0xff] %vm695, %v1849
        %1889 = vst.msk [vmem:[%s694 + $0x48] sm:$0xff] %vm695, %v1851
        %1890 = vst.msk [vmem:[%s694 + $0x50] sm:$0xff] %vm695, %v1853
        %1891 = vst.msk [vmem:[%s694 + $0x58] sm:$0xff] %vm695, %v1855
        %1892 = vst.msk [vmem:[%s694 + $0x60] sm:$0xff] %vm695, %v1857
        %1893 = vst.msk [vmem:[%s694 + $0x68] sm:$0xff] %vm695, %v1859
        %1894 = vst.msk [vmem:[%s694 + $0x70] sm:$0xff] %vm695, %v1861
        %1895 = vst.msk [vmem:[%s694 + $0x78] sm:$0xff] %vm695, %v1863
        %v1928 = vrot.slane %v1768, 7
        %v1929 = vrot.slane %v1769, 7
        %v1930 = vsel %vm776, %v1928, %v1929
        %v1931 = vrot.slane %v1770, 7
        %v1932 = vrot.slane %v1771, 7
        %v1933 = vsel %vm776, %v1931, %v1932
        %v1934 = vrot.slane %v1772, 7
        %v1935 = vrot.slane %v1773, 7
        %v1936 = vsel %vm776, %v1934, %v1935
        %v1937 = vrot.slane %v1774, 7
        %v1938 = vrot.slane %v1775, 7
        %v1939 = vsel %vm776, %v1937, %v1938
        %v1940 = vrot.slane %v1776, 7
        %v1941 = vrot.slane %v1777, 7
        %v1942 = vsel %vm776, %v1940, %v1941
        %v1943 = vrot.slane %v1778, 7
        %v1944 = vrot.slane %v1779, 7
        %v1945 = vsel %vm776, %v1943, %v1944
        %v1946 = vrot.slane %v1780, 7
        %v1947 = vrot.slane %v1781, 7
        %v1948 = vsel %vm776, %v1946, %v1947
        %v1949 = vrot.slane %v1782, 7
        %v1950 = vrot.slane %v1783, 7
        %v1951 = vsel %vm776, %v1949, %v1950
        %v1952 = vrot.slane %v1784, 7
        %v1953 = vrot.slane %v1785, 7
        %v1954 = vsel %vm776, %v1952, %v1953
        %v1955 = vrot.slane %v1786, 7
        %v1956 = vrot.slane %v1787, 7
        %v1957 = vsel %vm776, %v1955, %v1956
        %v1958 = vrot.slane %v1788, 7
        %v1959 = vrot.slane %v1789, 7
        %v1960 = vsel %vm776, %v1958, %v1959
        %v1961 = vrot.slane %v1790, 7
        %v1962 = vrot.slane %v1791, 7
        %v1963 = vsel %vm776, %v1961, %v1962
        %v1964 = vrot.slane %v1792, 7
        %v1965 = vrot.slane %v1793, 7
        %v1966 = vsel %vm776, %v1964, %v1965
        %v1967 = vrot.slane %v1794, 7
        %v1968 = vrot.slane %v1795, 7
        %v1969 = vsel %vm776, %v1967, %v1968
        %v1970 = vrot.slane %v1796, 7
        %v1971 = vrot.slane %v1797, 7
        %v1972 = vsel %vm776, %v1970, %v1971
        %v1973 = vrot.slane %v1798, 7
        %v1974 = vrot.slane %v1799, 7
        %v1975 = vsel %vm776, %v1973, %v1974
        %v2008 = vsel %vm776, 0.0, %v1928
        %v2009 = vsel %vm776, 0.0, %v1931
        %v2010 = vsel %vm776, 0.0, %v1934
        %v2011 = vsel %vm776, 0.0, %v1937
        %v2012 = vsel %vm776, 0.0, %v1940
        %v2013 = vsel %vm776, 0.0, %v1943
        %v2014 = vsel %vm776, 0.0, %v1946
        %v2015 = vsel %vm776, 0.0, %v1949
        %v2016 = vsel %vm776, 0.0, %v1952
        %v2017 = vsel %vm776, 0.0, %v1955
        %v2018 = vsel %vm776, 0.0, %v1958
        %v2019 = vsel %vm776, 0.0, %v1961
        %v2020 = vsel %vm776, 0.0, %v1964
        %v2021 = vsel %vm776, 0.0, %v1967
        %v2022 = vsel %vm776, 0.0, %v1970
        %v2023 = vsel %vm776, 0.0, %v1973
        %v2024 = vrot.slane %v1768, 1
        %v2025 = vrot.slane %v1769, 1
        %v2026 = vsel %vm873, %v2024, %v2025
        %v2027 = vrot.slane %v1770, 1
        %v2028 = vrot.slane %v1771, 1
        %v2029 = vsel %vm873, %v2027, %v2028
        %v2030 = vrot.slane %v1772, 1
        %v2031 = vrot.slane %v1773, 1
        %v2032 = vsel %vm873, %v2030, %v2031
        %v2033 = vrot.slane %v1774, 1
        %v2034 = vrot.slane %v1775, 1
        %v2035 = vsel %vm873, %v2033, %v2034
        %v2036 = vrot.slane %v1776, 1
        %v2037 = vrot.slane %v1777, 1
        %v2038 = vsel %vm873, %v2036, %v2037
        %v2039 = vrot.slane %v1778, 1
        %v2040 = vrot.slane %v1779, 1
        %v2041 = vsel %vm873, %v2039, %v2040
        %v2042 = vrot.slane %v1780, 1
        %v2043 = vrot.slane %v1781, 1
        %v2044 = vsel %vm873, %v2042, %v2043
        %v2045 = vrot.slane %v1782, 1
        %v2046 = vrot.slane %v1783, 1
        %v2047 = vsel %vm873, %v2045, %v2046
        %v2048 = vrot.slane %v1784, 1
        %v2049 = vrot.slane %v1785, 1
        %v2050 = vsel %vm873, %v2048, %v2049
        %v2051 = vrot.slane %v1786, 1
        %v2052 = vrot.slane %v1787, 1
        %v2053 = vsel %vm873, %v2051, %v2052
        %v2054 = vrot.slane %v1788, 1
        %v2055 = vrot.slane %v1789, 1
        %v2056 = vsel %vm873, %v2054, %v2055
        %v2057 = vrot.slane %v1790, 1
        %v2058 = vrot.slane %v1791, 1
        %v2059 = vsel %vm873, %v2057, %v2058
        %v2060 = vrot.slane %v1792, 1
        %v2061 = vrot.slane %v1793, 1
        %v2062 = vsel %vm873, %v2060, %v2061
        %v2063 = vrot.slane %v1794, 1
        %v2064 = vrot.slane %v1795, 1
        %v2065 = vsel %vm873, %v2063, %v2064
        %v2066 = vrot.slane %v1796, 1
        %v2067 = vrot.slane %v1797, 1
        %v2068 = vsel %vm873, %v2066, %v2067
        %v2069 = vrot.slane %v1798, 1
        %v2070 = vrot.slane %v1799, 1
        %v2071 = vsel %vm873, %v2069, %v2070
        %v2104 = vsel %vm873, %v2025, 0.0
        %v2105 = vsel %vm873, %v2028, 0.0
        %v2106 = vsel %vm873, %v2031, 0.0
        %v2107 = vsel %vm873, %v2034, 0.0
        %v2108 = vsel %vm873, %v2037, 0.0
        %v2109 = vsel %vm873, %v2040, 0.0
        %v2110 = vsel %vm873, %v2043, 0.0
        %v2111 = vsel %vm873, %v2046, 0.0
        %v2112 = vsel %vm873, %v2049, 0.0
        %v2113 = vsel %vm873, %v2052, 0.0
        %v2114 = vsel %vm873, %v2055, 0.0
        %v2115 = vsel %vm873, %v2058, 0.0
        %v2116 = vsel %vm873, %v2061, 0.0
        %v2117 = vsel %vm873, %v2064, 0.0
        %v2118 = vsel %vm873, %v2067, 0.0
        %v2119 = vsel %vm873, %v2070, 0.0
        %v2120 = vpack.c.bf16 %v1930, %v2008
        %v2121 = vpack.c.bf16 %v1933, %v2009
        %v2122 = vpack.c.bf16 %v1936, %v2010
        %v2123 = vpack.c.bf16 %v1939, %v2011
        %v2124 = vpack.c.bf16 %v1942, %v2012
        %v2125 = vpack.c.bf16 %v1945, %v2013
        %v2126 = vpack.c.bf16 %v1948, %v2014
        %v2127 = vpack.c.bf16 %v1951, %v2015
        %v2128 = vpack.c.bf16 %v1954, %v2016
        %v2129 = vpack.c.bf16 %v1957, %v2017
        %v2130 = vpack.c.bf16 %v1960, %v2018
        %v2131 = vpack.c.bf16 %v1963, %v2019
        %v2132 = vpack.c.bf16 %v1966, %v2020
        %v2133 = vpack.c.bf16 %v1969, %v2021
        %v2134 = vpack.c.bf16 %v1972, %v2022
        %v2135 = vpack.c.bf16 %v1975, %v2023
        %2136 = vst.msk [vmem:[%s694] sm:$0xff] %vm986, %v2120
        %2137 = vst.msk [vmem:[%s694 + $0x8] sm:$0xff] %vm986, %v2121
        %2138 = vst.msk [vmem:[%s694 + $0x10] sm:$0xff] %vm986, %v2122
        %2139 = vst.msk [vmem:[%s694 + $0x18] sm:$0xff] %vm986, %v2123
        %2140 = vst.msk [vmem:[%s694 + $0x20] sm:$0xff] %vm986, %v2124
        %2141 = vst.msk [vmem:[%s694 + $0x28] sm:$0xff] %vm986, %v2125
        %2142 = vst.msk [vmem:[%s694 + $0x30] sm:$0xff] %vm986, %v2126
        %2143 = vst.msk [vmem:[%s694 + $0x38] sm:$0xff] %vm986, %v2127
        %2144 = vst.msk [vmem:[%s694 + $0x40] sm:$0xff] %vm986, %v2128
        %2145 = vst.msk [vmem:[%s694 + $0x48] sm:$0xff] %vm986, %v2129
        %2146 = vst.msk [vmem:[%s694 + $0x50] sm:$0xff] %vm986, %v2130
        %2147 = vst.msk [vmem:[%s694 + $0x58] sm:$0xff] %vm986, %v2131
        %2148 = vst.msk [vmem:[%s694 + $0x60] sm:$0xff] %vm986, %v2132
        %2149 = vst.msk [vmem:[%s694 + $0x68] sm:$0xff] %vm986, %v2133
        %2150 = vst.msk [vmem:[%s694 + $0x70] sm:$0xff] %vm986, %v2134
        %2151 = vst.msk [vmem:[%s694 + $0x78] sm:$0xff] %vm986, %v2135
        %v2152 = vpack.c.bf16 %v2104, %v2026
        %v2153 = vpack.c.bf16 %v2105, %v2029
        %v2154 = vpack.c.bf16 %v2106, %v2032
        %v2155 = vpack.c.bf16 %v2107, %v2035
        %v2156 = vpack.c.bf16 %v2108, %v2038
        %v2157 = vpack.c.bf16 %v2109, %v2041
        %v2158 = vpack.c.bf16 %v2110, %v2044
        %v2159 = vpack.c.bf16 %v2111, %v2047
        %v2160 = vpack.c.bf16 %v2112, %v2050
        %v2161 = vpack.c.bf16 %v2113, %v2053
        %v2162 = vpack.c.bf16 %v2114, %v2056
        %v2163 = vpack.c.bf16 %v2115, %v2059
        %v2164 = vpack.c.bf16 %v2116, %v2062
        %v2165 = vpack.c.bf16 %v2117, %v2065
        %v2166 = vpack.c.bf16 %v2118, %v2068
        %v2167 = vpack.c.bf16 %v2119, %v2071
        %2184 = vrot.lane.b32.xlu0 %v2152, 64
        %v2185 = vpop.permute.xlu0 %2184
        %2186 = vrot.lane.b32.xlu0 %v2153, 64
        %v2187 = vpop.permute.xlu0 %2186
        %2188 = vrot.lane.b32.xlu0 %v2154, 64
        %v2189 = vpop.permute.xlu0 %2188
        %2190 = vrot.lane.b32.xlu0 %v2155, 64
        %v2191 = vpop.permute.xlu0 %2190
        %2192 = vrot.lane.b32.xlu0 %v2156, 64
        %v2193 = vpop.permute.xlu0 %2192
        %2194 = vrot.lane.b32.xlu0 %v2157, 64
        %v2195 = vpop.permute.xlu0 %2194
        %2196 = vrot.lane.b32.xlu0 %v2158, 64
        %v2197 = vpop.permute.xlu0 %2196
        %2198 = vrot.lane.b32.xlu0 %v2159, 64
        %v2199 = vpop.permute.xlu0 %2198
        %2200 = vrot.lane.b32.xlu0 %v2160, 64
        %v2201 = vpop.permute.xlu0 %2200
        %2202 = vrot.lane.b32.xlu0 %v2161, 64
        %v2203 = vpop.permute.xlu0 %2202
        %2204 = vrot.lane.b32.xlu0 %v2162, 64
        %v2205 = vpop.permute.xlu0 %2204
        %2206 = vrot.lane.b32.xlu0 %v2163, 64
        %v2207 = vpop.permute.xlu0 %2206
        %2208 = vrot.lane.b32.xlu0 %v2164, 64
        %v2209 = vpop.permute.xlu0 %2208
        %2210 = vrot.lane.b32.xlu0 %v2165, 64
        %v2211 = vpop.permute.xlu0 %2210
        %2212 = vrot.lane.b32.xlu0 %v2166, 64
        %v2213 = vpop.permute.xlu0 %2212
        %2214 = vrot.lane.b32.xlu0 %v2167, 64
        %v2215 = vpop.permute.xlu0 %2214
        %2232 = vst.msk [vmem:[%s694] sm:$0xff] %vm1083, %v2185
        %2233 = vst.msk [vmem:[%s694 + $0x8] sm:$0xff] %vm1083, %v2187
        %2234 = vst.msk [vmem:[%s694 + $0x10] sm:$0xff] %vm1083, %v2189
        %2235 = vst.msk [vmem:[%s694 + $0x18] sm:$0xff] %vm1083, %v2191
        %2236 = vst.msk [vmem:[%s694 + $0x20] sm:$0xff] %vm1083, %v2193
        %2237 = vst.msk [vmem:[%s694 + $0x28] sm:$0xff] %vm1083, %v2195
        %2238 = vst.msk [vmem:[%s694 + $0x30] sm:$0xff] %vm1083, %v2197
        %2239 = vst.msk [vmem:[%s694 + $0x38] sm:$0xff] %vm1083, %v2199
        %2240 = vst.msk [vmem:[%s694 + $0x40] sm:$0xff] %vm1083, %v2201
        %2241 = vst.msk [vmem:[%s694 + $0x48] sm:$0xff] %vm1083, %v2203
        %2242 = vst.msk [vmem:[%s694 + $0x50] sm:$0xff] %vm1083, %v2205
        %2243 = vst.msk [vmem:[%s694 + $0x58] sm:$0xff] %vm1083, %v2207
        %2244 = vst.msk [vmem:[%s694 + $0x60] sm:$0xff] %vm1083, %v2209
        %2245 = vst.msk [vmem:[%s694 + $0x68] sm:$0xff] %vm1083, %v2211
        %2246 = vst.msk [vmem:[%s694 + $0x70] sm:$0xff] %vm1083, %v2213
        %2247 = vst.msk [vmem:[%s694 + $0x78] sm:$0xff] %vm1083, %v2215
        %2248 = vst.msk [vmem:[#allocation2] sm:$0xff] %vm1102, 0
        %2249 = vst.msk [vmem:[%s1106] sm:$0xff] %vm1102, 0
        %v2250 = vld [vmem:[#allocation2] sm:$0xff]
        %v2251 = vld [vmem:[#allocation2 + $0x8] sm:$0xff]
        %v2252 = vld [vmem:[#allocation2 + $0x10] sm:$0xff]
        %v2253 = vld [vmem:[#allocation2 + $0x18] sm:$0xff]
        %v2254 = vld [vmem:[#allocation2 + $0x20] sm:$0xff]
        %v2255 = vld [vmem:[#allocation2 + $0x28] sm:$0xff]
        %v2256 = vld [vmem:[#allocation2 + $0x30] sm:$0xff]
        %v2257 = vld [vmem:[#allocation2 + $0x38] sm:$0xff]
        %v2258 = vld [vmem:[#allocation2 + $0x40] sm:$0xff]
        %v2259 = vld [vmem:[#allocation2 + $0x48] sm:$0xff]
        %v2260 = vld [vmem:[#allocation2 + $0x50] sm:$0xff]
        %v2261 = vld [vmem:[#allocation2 + $0x58] sm:$0xff]
        %v2262 = vld [vmem:[#allocation2 + $0x60] sm:$0xff]
        %v2263 = vld [vmem:[#allocation2 + $0x68] sm:$0xff]
        %v2264 = vld [vmem:[#allocation2 + $0x70] sm:$0xff]
        %v2265 = vld [vmem:[#allocation2 + $0x78] sm:$0xff]
        %v2266 = vld [vmem:[#allocation2 + $0x80] sm:$0xff]
        %v2267 = vld [vmem:[#allocation2 + $0x88] sm:$0xff]
        %v2268 = vld [vmem:[#allocation11] sm:$0xf]
        %v2269 = vld [vmem:[#allocation11 + $0x4] sm:$0xf]
        %v2270 = vld [vmem:[#allocation11 + $0x8] sm:$0xf]
        %v2271 = vld [vmem:[#allocation11 + $0xc] sm:$0xf]
        %v2272 = vld [vmem:[#allocation11 + $0x10] sm:$0xf]
        %v2273 = vld [vmem:[#allocation11 + $0x14] sm:$0xf]
        %v2274 = vld [vmem:[#allocation11 + $0x18] sm:$0xf]
        %v2275 = vld [vmem:[#allocation11 + $0x1c] sm:$0xf]
        %v2276 = vld [vmem:[#allocation11 + $0x20] sm:$0xf]
        %v2277 = vld [vmem:[#allocation11 + $0x24] sm:$0xf]
        %v2278 = vld [vmem:[#allocation11 + $0x28] sm:$0xf]
        %v2279 = vld [vmem:[#allocation11 + $0x2c] sm:$0xf]
        %v2292 = vunpack.c.l.b16 %v2268
        %v2293 = vunpack.c.l.b16 %v2269
        %v2294 = vunpack.c.l.b16 %v2270
        %v2295 = vunpack.c.l.b16 %v2271
        %v2296 = vunpack.c.l.b16 %v2272
        %v2297 = vunpack.c.l.b16 %v2273
        %v2298 = vunpack.c.l.b16 %v2274
        %v2299 = vunpack.c.l.b16 %v2275
        %v2300 = vunpack.c.l.b16 %v2276
        %v2301 = vunpack.c.l.b16 %v2277
        %v2302 = vunpack.c.l.b16 %v2278
        %v2303 = vunpack.c.l.b16 %v2279
        %v2304 = vpack.c.b16 %v2293, %v2292
        %v2305 = vpack.c.b16 %v2295, %v2294
        %v2306 = vpack.c.b16 %v2297, %v2296
        %v2307 = vpack.c.b16 %v2299, %v2298
        %v2308 = vpack.c.b16 %v2301, %v2300
        %v2309 = vpack.c.b16 %v2303, %v2302
        %v2317 = vsel %vm1102, %v2250, 0
        %v2320 = vsel %vm1102, %v2251, 0
        %v2323 = vsel %vm1102, %v2252, 0
        %v2326 = vsel %vm1102, %v2253, 0
        %v2329 = vsel %vm1102, %v2254, 0
        %v2332 = vsel %vm1102, %v2255, 0
        %v2335 = vsel %vm1102, %v2256, 0
        %v2338 = vsel %vm1102, %v2257, 0
        %v2341 = vsel %vm1102, %v2258, 0
        %v2344 = vsel %vm1102, %v2259, 0
        %v2347 = vsel %vm1102, %v2260, 0
        %v2350 = vsel %vm1102, %v2261, 0
        %v2353 = vsel %vm1102, %v2262, 0
        %v2356 = vsel %vm1102, %v2263, 0
        %v2359 = vsel %vm1102, %v2264, 0
        %v2362 = vsel %vm1102, %v2265, 0
        %v2365 = vsel %vm1102, %v2266, 0
        %v2368 = vsel %vm1102, %v2267, 0
        %2370 = vmatprep.subr.bf16.mxu0 0
        %2371 = vmatpush1.bf16.msra.mxu0 %v2304
        %2372 = vmatprep.subr.bf16.mxu0 0
        %2373 = vmatpush1.bf16.msra.mxu0 %v2305
        %2374 = vmatprep.subr.bf16.mxu0 0
        %2375 = vmatpush1.bf16.msra.mxu0 %v2306
        %2376 = vmatprep.subr.bf16.mxu0 0
        %2377 = vmatpush1.bf16.msra.mxu0 %v2307
        %2378 = vmatprep.subr.bf16.mxu0 0
        %2379 = vmatpush1.bf16.msra.mxu0 %v2308
        %2380 = vmatprep.subr.bf16.mxu0 0
        %2381 = vmatpush1.bf16.msra.mxu0 %v2309
        %2382 = vmatprep.subr.bf16.mxu0 0
        %2383 = vmatpush1.bf16.msra.mxu0 0
        %2384 = vmatprep.subr.bf16.mxu0 0
        %2385 = vmatpush1.bf16.msra.mxu0 0
        %2386 = vmatprep.subr.bf16.mxu0 0
        %2387 = vmatpush1.bf16.msra.mxu0 0
        %2388 = vmatprep.subr.bf16.mxu0 0
        %2389 = vmatpush1.bf16.msra.mxu0 0
        %2390 = vmatprep.subr.bf16.mxu0 0
        %2391 = vmatpush1.bf16.msra.mxu0 0
        %2392 = vmatprep.subr.bf16.mxu0 0
        %2393 = vmatpush1.bf16.msra.mxu0 0
        %2394 = vmatprep.subr.bf16.mxu0 0
        %2395 = vmatpush1.bf16.msra.mxu0 0
        %2396 = vmatprep.subr.bf16.mxu0 0
        %2397 = vmatpush1.bf16.msra.mxu0 0
        %2398 = vmatprep.subr.bf16.mxu0 0
        %2399 = vmatpush1.bf16.msra.mxu0 0
        %2400 = vmatprep.subr.bf16.mxu0 0
        %2401 = vmatpush1.bf16.msra.mxu0 0
        %2402 = vmatprep.mubr.bf16.mxu0 0
        %2403 = vmatmul.mubr.bf16.gmra.mrb[0].mxu0 %v2317
        %v2404 = vpop.f32.mrb[0].mxu0
        %v2405 = vadd.f32 0.0, %v2404
        %v2406 = vpop.f32.mrb[0].mxu0
        %v2407 = vpop.f32.mrb[0].mxu0
        %v2408 = vadd.f32 0.0, %v2407
        %v2409 = vpop.f32.mrb[0].mxu0
        %2410 = vmatprep.mubr.bf16.mxu0 0
        %2411 = vmatmul.mubr.bf16.gmra.mrb[0].mxu0 %v2320
        %v2412 = vpop.f32.mrb[0].mxu0
        %v2413 = vadd.f32 0.0, %v2412
        %v2414 = vpop.f32.mrb[0].mxu0
        %v2415 = vpop.f32.mrb[0].mxu0
        %v2416 = vadd.f32 0.0, %v2415
        %v2417 = vpop.f32.mrb[0].mxu0
        %2418 = vmatprep.mubr.bf16.mxu0 0
        %2419 = vmatmul.mubr.bf16.gmra.mrb[0].mxu0 %v2323
        %v2420 = vpop.f32.mrb[0].mxu0
        %v2421 = vadd.f32 0.0, %v2420
        %v2422 = vpop.f32.mrb[0].mxu0
        %v2423 = vpop.f32.mrb[0].mxu0
        %v2424 = vadd.f32 0.0, %v2423
        %v2425 = vpop.f32.mrb[0].mxu0
        %2426 = vmatprep.mubr.bf16.mxu0 0
        %2427 = vmatmul.mubr.bf16.gmra.mrb[0].mxu0 %v2326
        %v2428 = vpop.f32.mrb[0].mxu0
        %v2429 = vadd.f32 0.0, %v2428
        %v2430 = vpop.f32.mrb[0].mxu0
        %v2431 = vpop.f32.mrb[0].mxu0
        %v2432 = vadd.f32 0.0, %v2431
        %v2433 = vpop.f32.mrb[0].mxu0
        %2434 = vmatprep.mubr.bf16.mxu0 0
        %2435 = vmatmul.mubr.bf16.gmra.mrb[0].mxu0 %v2329
        %v2436 = vpop.f32.mrb[0].mxu0
        %v2437 = vadd.f32 0.0, %v2436
        %v2438 = vpop.f32.mrb[0].mxu0
        %v2439 = vpop.f32.mrb[0].mxu0
        %v2440 = vadd.f32 0.0, %v2439
        %v2441 = vpop.f32.mrb[0].mxu0
        %2442 = vmatprep.mubr.bf16.mxu0 0
        %2443 = vmatmul.mubr.bf16.gmra.mrb[0].mxu0 %v2332
        %v2444 = vpop.f32.mrb[0].mxu0
        %v2445 = vadd.f32 0.0, %v2444
        %v2446 = vpop.f32.mrb[0].mxu0
        %v2447 = vpop.f32.mrb[0].mxu0
        %v2448 = vadd.f32 0.0, %v2447
        %v2449 = vpop.f32.mrb[0].mxu0
        %2450 = vmatprep.mubr.bf16.mxu0 0
        %2451 = vmatmul.mubr.bf16.gmra.mrb[0].mxu0 %v2335
        %v2452 = vpop.f32.mrb[0].mxu0
        %v2453 = vadd.f32 0.0, %v2452
        %v2454 = vpop.f32.mrb[0].mxu0
        %v2455 = vpop.f32.mrb[0].mxu0
        %v2456 = vadd.f32 0.0, %v2455
        %v2457 = vpop.f32.mrb[0].mxu0
        %2458 = vmatprep.mubr.bf16.mxu0 0
        %2459 = vmatmul.mubr.bf16.gmra.mrb[0].mxu0 %v2338
        %v2460 = vpop.f32.mrb[0].mxu0
        %v2461 = vadd.f32 0.0, %v2460
        %v2462 = vpop.f32.mrb[0].mxu0
        %v2463 = vpop.f32.mrb[0].mxu0
        %v2464 = vadd.f32 0.0, %v2463
        %v2465 = vpop.f32.mrb[0].mxu0
        %2466 = vmatprep.mubr.bf16.mxu0 0
        %2467 = vmatmul.mubr.bf16.gmra.mrb[0].mxu0 %v2341
        %v2468 = vpop.f32.mrb[0].mxu0
        %v2469 = vadd.f32 0.0, %v2468
        %v2470 = vpop.f32.mrb[0].mxu0
        %v2471 = vpop.f32.mrb[0].mxu0
        %v2472 = vadd.f32 0.0, %v2471
        %v2473 = vpop.f32.mrb[0].mxu0
        %2474 = vmatprep.mubr.bf16.mxu0 0
        %2475 = vmatmul.mubr.bf16.gmra.mrb[0].mxu0 %v2344
        %v2476 = vpop.f32.mrb[0].mxu0
        %v2477 = vadd.f32 0.0, %v2476
        %v2478 = vpop.f32.mrb[0].mxu0
        %v2479 = vpop.f32.mrb[0].mxu0
        %v2480 = vadd.f32 0.0, %v2479
        %v2481 = vpop.f32.mrb[0].mxu0
        %2482 = vmatprep.mubr.bf16.mxu0 0
        %2483 = vmatmul.mubr.bf16.gmra.mrb[0].mxu0 %v2347
        %v2484 = vpop.f32.mrb[0].mxu0
        %v2485 = vadd.f32 0.0, %v2484
        %v2486 = vpop.f32.mrb[0].mxu0
        %v2487 = vpop.f32.mrb[0].mxu0
        %v2488 = vadd.f32 0.0, %v2487
        %v2489 = vpop.f32.mrb[0].mxu0
        %2490 = vmatprep.mubr.bf16.mxu0 0
        %2491 = vmatmul.mubr.bf16.gmra.mrb[0].mxu0 %v2350
        %v2492 = vpop.f32.mrb[0].mxu0
        %v2493 = vadd.f32 0.0, %v2492
        %v2494 = vpop.f32.mrb[0].mxu0
        %v2495 = vpop.f32.mrb[0].mxu0
        %v2496 = vadd.f32 0.0, %v2495
        %v2497 = vpop.f32.mrb[0].mxu0
        %2498 = vmatprep.mubr.bf16.mxu0 0
        %2499 = vmatmul.mubr.bf16.gmra.mrb[0].mxu0 %v2353
        %v2500 = vpop.f32.mrb[0].mxu0
        %v2501 = vadd.f32 0.0, %v2500
        %v2502 = vpop.f32.mrb[0].mxu0
        %v2503 = vpop.f32.mrb[0].mxu0
        %v2504 = vadd.f32 0.0, %v2503
        %v2505 = vpop.f32.mrb[0].mxu0
        %2506 = vmatprep.mubr.bf16.mxu0 0
        %2507 = vmatmul.mubr.bf16.gmra.mrb[0].mxu0 %v2356
        %v2508 = vpop.f32.mrb[0].mxu0
        %v2509 = vadd.f32 0.0, %v2508
        %v2510 = vpop.f32.mrb[0].mxu0
        %v2511 = vpop.f32.mrb[0].mxu0
        %v2512 = vadd.f32 0.0, %v2511
        %v2513 = vpop.f32.mrb[0].mxu0
        %2514 = vmatprep.mubr.bf16.mxu0 0
        %2515 = vmatmul.mubr.bf16.gmra.mrb[0].mxu0 %v2359
        %v2516 = vpop.f32.mrb[0].mxu0
        %v2517 = vadd.f32 0.0, %v2516
        %v2518 = vpop.f32.mrb[0].mxu0
        %v2519 = vpop.f32.mrb[0].mxu0
        %v2520 = vadd.f32 0.0, %v2519
        %v2521 = vpop.f32.mrb[0].mxu0
        %2522 = vmatprep.mubr.bf16.mxu0 0
        %2523 = vmatmul.mubr.bf16.gmra.mrb[0].mxu0 %v2362
        %v2524 = vpop.f32.mrb[0].mxu0
        %v2525 = vadd.f32 0.0, %v2524
        %v2526 = vpop.f32.mrb[0].mxu0
        %v2527 = vpop.f32.mrb[0].mxu0
        %v2528 = vadd.f32 0.0, %v2527
        %v2529 = vpop.f32.mrb[0].mxu0
        %2530 = vmatprep.mubr.bf16.mxu0 0
        %2531 = vmatmul.mubr.bf16.gmra.mrb[0].mxu0 %v2365
        %v2532 = vpop.f32.mrb[0].mxu0
        %v2533 = vadd.f32 0.0, %v2532
        %v2534 = vpop.f32.mrb[0].mxu0
        %v2535 = vpop.f32.mrb[0].mxu0
        %v2536 = vadd.f32 0.0, %v2535
        %v2537 = vpop.f32.mrb[0].mxu0
        %2538 = vmatprep.mubr.bf16.mxu0 0
        %2539 = vmatmul.mubr.bf16.gmra.mrb[0].mxu0 %v2368
        %v2540 = vpop.f32.mrb[0].mxu0
        %v2541 = vadd.f32 0.0, %v2540
        %v2542 = vpop.f32.mrb[0].mxu0
        %v2543 = vpop.f32.mrb[0].mxu0
        %v2544 = vadd.f32 0.0, %v2543
        %v2545 = vpop.f32.mrb[0].mxu0
        %2546 = vdwg.mxu0
        %2579 = vrot.lane.b32.xlu0 %v2413, 96
        %v2580 = vpop.permute.xlu0 %2579
        %2581 = vrot.lane.b32.xlu0 %v2416, 96
        %v2582 = vpop.permute.xlu0 %2581
        %2583 = vrot.lane.b32.xlu0 %v2421, 96
        %v2584 = vpop.permute.xlu0 %2583
        %2585 = vrot.lane.b32.xlu0 %v2424, 96
        %v2586 = vpop.permute.xlu0 %2585
        %2587 = vrot.lane.b32.xlu0 %v2429, 96
        %v2588 = vpop.permute.xlu0 %2587
        %2589 = vrot.lane.b32.xlu0 %v2432, 96
        %v2590 = vpop.permute.xlu0 %2589
        %2591 = vrot.lane.b32.xlu0 %v2437, 96
        %v2592 = vpop.permute.xlu0 %2591
        %2593 = vrot.lane.b32.xlu0 %v2440, 96
        %v2594 = vpop.permute.xlu0 %2593
        %2595 = vrot.lane.b32.xlu0 %v2445, 96
        %v2596 = vpop.permute.xlu0 %2595
        %2597 = vrot.lane.b32.xlu0 %v2448, 96
        %v2598 = vpop.permute.xlu0 %2597
        %2599 = vrot.lane.b32.xlu0 %v2453, 96
        %v2600 = vpop.permute.xlu0 %2599
        %2601 = vrot.lane.b32.xlu0 %v2456, 96
        %v2602 = vpop.permute.xlu0 %2601
        %2603 = vrot.lane.b32.xlu0 %v2461, 96
        %v2604 = vpop.permute.xlu0 %2603
        %2605 = vrot.lane.b32.xlu0 %v2464, 96
        %v2606 = vpop.permute.xlu0 %2605
        %2607 = vrot.lane.b32.xlu0 %v2469, 96
        %v2608 = vpop.permute.xlu0 %2607
        %2609 = vrot.lane.b32.xlu0 %v2472, 96
        %v2610 = vpop.permute.xlu0 %2609
        %2611 = vrot.lane.b32.xlu0 %v2477, 96
        %v2612 = vpop.permute.xlu0 %2611
        %2613 = vrot.lane.b32.xlu0 %v2480, 96
        %v2614 = vpop.permute.xlu0 %2613
        %2615 = vrot.lane.b32.xlu0 %v2485, 96
        %v2616 = vpop.permute.xlu0 %2615
        %2617 = vrot.lane.b32.xlu0 %v2488, 96
        %v2618 = vpop.permute.xlu0 %2617
        %2619 = vrot.lane.b32.xlu0 %v2493, 96
        %v2620 = vpop.permute.xlu0 %2619
        %2621 = vrot.lane.b32.xlu0 %v2496, 96
        %v2622 = vpop.permute.xlu0 %2621
        %2623 = vrot.lane.b32.xlu0 %v2501, 96
        %v2624 = vpop.permute.xlu0 %2623
        %2625 = vrot.lane.b32.xlu0 %v2504, 96
        %v2626 = vpop.permute.xlu0 %2625
        %2627 = vrot.lane.b32.xlu0 %v2509, 96
        %v2628 = vpop.permute.xlu0 %2627
        %2629 = vrot.lane.b32.xlu0 %v2512, 96
        %v2630 = vpop.permute.xlu0 %2629
        %2631 = vrot.lane.b32.xlu0 %v2517, 96
        %v2632 = vpop.permute.xlu0 %2631
        %2633 = vrot.lane.b32.xlu0 %v2520, 96
        %v2634 = vpop.permute.xlu0 %2633
        %2635 = vrot.lane.b32.xlu0 %v2525, 96
        %v2636 = vpop.permute.xlu0 %2635
        %2637 = vrot.lane.b32.xlu0 %v2528, 96
        %v2638 = vpop.permute.xlu0 %2637
        %2639 = vrot.lane.b32.xlu0 %v2533, 96
        %v2640 = vpop.permute.xlu0 %2639
        %2641 = vrot.lane.b32.xlu0 %v2536, 96
        %v2642 = vpop.permute.xlu0 %2641
        %v2675 = vadd.f32 %v2405, %v2580
        %v2676 = vadd.f32 %v2408, %v2582
        %v2677 = vadd.f32 %v2413, %v2584
        %v2678 = vadd.f32 %v2416, %v2586
        %v2679 = vadd.f32 %v2421, %v2588
        %v2680 = vadd.f32 %v2424, %v2590
        %v2681 = vadd.f32 %v2429, %v2592
        %v2682 = vadd.f32 %v2432, %v2594
        %v2683 = vadd.f32 %v2437, %v2596
        %v2684 = vadd.f32 %v2440, %v2598
        %v2685 = vadd.f32 %v2445, %v2600
        %v2686 = vadd.f32 %v2448, %v2602
        %v2687 = vadd.f32 %v2453, %v2604
        %v2688 = vadd.f32 %v2456, %v2606
        %v2689 = vadd.f32 %v2461, %v2608
        %v2690 = vadd.f32 %v2464, %v2610
        %v2691 = vadd.f32 %v2469, %v2612
        %v2692 = vadd.f32 %v2472, %v2614
        %v2693 = vadd.f32 %v2477, %v2616
        %v2694 = vadd.f32 %v2480, %v2618
        %v2695 = vadd.f32 %v2485, %v2620
        %v2696 = vadd.f32 %v2488, %v2622
        %v2697 = vadd.f32 %v2493, %v2624
        %v2698 = vadd.f32 %v2496, %v2626
        %v2699 = vadd.f32 %v2501, %v2628
        %v2700 = vadd.f32 %v2504, %v2630
        %v2701 = vadd.f32 %v2509, %v2632
        %v2702 = vadd.f32 %v2512, %v2634
        %v2703 = vadd.f32 %v2517, %v2636
        %v2704 = vadd.f32 %v2520, %v2638
        %v2705 = vadd.f32 %v2525, %v2640
        %v2706 = vadd.f32 %v2528, %v2642
        %2709 = vrot.lane.b32.xlu0 %v2421, 64
        %v2710 = vpop.permute.xlu0 %2709
        %2711 = vrot.lane.b32.xlu0 %v2424, 64
        %v2712 = vpop.permute.xlu0 %2711
        %2713 = vrot.lane.b32.xlu0 %v2429, 64
        %v2714 = vpop.permute.xlu0 %2713
        %2715 = vrot.lane.b32.xlu0 %v2432, 64
        %v2716 = vpop.permute.xlu0 %2715
        %2717 = vrot.lane.b32.xlu0 %v2437, 64
        %v2718 = vpop.permute.xlu0 %2717
        %2719 = vrot.lane.b32.xlu0 %v2440, 64
        %v2720 = vpop.permute.xlu0 %2719
        %2721 = vrot.lane.b32.xlu0 %v2445, 64
        %v2722 = vpop.permute.xlu0 %2721
        %2723 = vrot.lane.b32.xlu0 %v2448, 64
        %v2724 = vpop.permute.xlu0 %2723
        %2725 = vrot.lane.b32.xlu0 %v2453, 64
        %v2726 = vpop.permute.xlu0 %2725
        %2727 = vrot.lane.b32.xlu0 %v2456, 64
        %v2728 = vpop.permute.xlu0 %2727
        %2729 = vrot.lane.b32.xlu0 %v2461, 64
        %v2730 = vpop.permute.xlu0 %2729
        %2731 = vrot.lane.b32.xlu0 %v2464, 64
        %v2732 = vpop.permute.xlu0 %2731
        %2733 = vrot.lane.b32.xlu0 %v2469, 64
        %v2734 = vpop.permute.xlu0 %2733
        %2735 = vrot.lane.b32.xlu0 %v2472, 64
        %v2736 = vpop.permute.xlu0 %2735
        %2737 = vrot.lane.b32.xlu0 %v2477, 64
        %v2738 = vpop.permute.xlu0 %2737
        %2739 = vrot.lane.b32.xlu0 %v2480, 64
        %v2740 = vpop.permute.xlu0 %2739
        %2741 = vrot.lane.b32.xlu0 %v2485, 64
        %v2742 = vpop.permute.xlu0 %2741
        %2743 = vrot.lane.b32.xlu0 %v2488, 64
        %v2744 = vpop.permute.xlu0 %2743
        %2745 = vrot.lane.b32.xlu0 %v2493, 64
        %v2746 = vpop.permute.xlu0 %2745
        %2747 = vrot.lane.b32.xlu0 %v2496, 64
        %v2748 = vpop.permute.xlu0 %2747
        %2749 = vrot.lane.b32.xlu0 %v2501, 64
        %v2750 = vpop.permute.xlu0 %2749
        %2751 = vrot.lane.b32.xlu0 %v2504, 64
        %v2752 = vpop.permute.xlu0 %2751
        %2753 = vrot.lane.b32.xlu0 %v2509, 64
        %v2754 = vpop.permute.xlu0 %2753
        %2755 = vrot.lane.b32.xlu0 %v2512, 64
        %v2756 = vpop.permute.xlu0 %2755
        %2757 = vrot.lane.b32.xlu0 %v2517, 64
        %v2758 = vpop.permute.xlu0 %2757
        %2759 = vrot.lane.b32.xlu0 %v2520, 64
        %v2760 = vpop.permute.xlu0 %2759
        %2761 = vrot.lane.b32.xlu0 %v2525, 64
        %v2762 = vpop.permute.xlu0 %2761
        %2763 = vrot.lane.b32.xlu0 %v2528, 64
        %v2764 = vpop.permute.xlu0 %2763
        %2765 = vrot.lane.b32.xlu0 %v2533, 64
        %v2766 = vpop.permute.xlu0 %2765
        %2767 = vrot.lane.b32.xlu0 %v2536, 64
        %v2768 = vpop.permute.xlu0 %2767
        %2769 = vrot.lane.b32.xlu0 %v2541, 64
        %v2770 = vpop.permute.xlu0 %2769
        %2771 = vrot.lane.b32.xlu0 %v2544, 64
        %v2772 = vpop.permute.xlu0 %2771
        %v2805 = vadd.f32 %v2675, %v2710
        %v2806 = vadd.f32 %v2676, %v2712
        %v2807 = vadd.f32 %v2677, %v2714
        %v2808 = vadd.f32 %v2678, %v2716
        %v2809 = vadd.f32 %v2679, %v2718
        %v2810 = vadd.f32 %v2680, %v2720
        %v2811 = vadd.f32 %v2681, %v2722
        %v2812 = vadd.f32 %v2682, %v2724
        %v2813 = vadd.f32 %v2683, %v2726
        %v2814 = vadd.f32 %v2684, %v2728
        %v2815 = vadd.f32 %v2685, %v2730
        %v2816 = vadd.f32 %v2686, %v2732
        %v2817 = vadd.f32 %v2687, %v2734
        %v2818 = vadd.f32 %v2688, %v2736
        %v2819 = vadd.f32 %v2689, %v2738
        %v2820 = vadd.f32 %v2690, %v2740
        %v2821 = vadd.f32 %v2691, %v2742
        %v2822 = vadd.f32 %v2692, %v2744
        %v2823 = vadd.f32 %v2693, %v2746
        %v2824 = vadd.f32 %v2694, %v2748
        %v2825 = vadd.f32 %v2695, %v2750
        %v2826 = vadd.f32 %v2696, %v2752
        %v2827 = vadd.f32 %v2697, %v2754
        %v2828 = vadd.f32 %v2698, %v2756
        %v2829 = vadd.f32 %v2699, %v2758
        %v2830 = vadd.f32 %v2700, %v2760
        %v2831 = vadd.f32 %v2701, %v2762
        %v2832 = vadd.f32 %v2702, %v2764
        %v2833 = vadd.f32 %v2703, %v2766
        %v2834 = vadd.f32 %v2704, %v2768
        %v2835 = vadd.f32 %v2705, %v2770
        %v2836 = vadd.f32 %v2706, %v2772
        %v2837 = vld [vmem:[%s6] sm:$0x1]
        %v2839 = vlaneseq
        %v2840 = vshrl.u32 %v2839, 7
        %v2841 = vsub.s32 0, %v2840
        %v2842 = vrot.slane %v2837, %v2841
        %v2844 = vadd.f32 %v2805, %v2842
        %v2845 = vadd.f32 %v2806, %v2842
        %v2846 = vadd.f32 %v2807, %v2842
        %v2847 = vadd.f32 %v2808, %v2842
        %v2848 = vadd.f32 %v2809, %v2842
        %v2849 = vadd.f32 %v2810, %v2842
        %v2850 = vadd.f32 %v2811, %v2842
        %v2851 = vadd.f32 %v2812, %v2842
        %v2852 = vadd.f32 %v2813, %v2842
        %v2853 = vadd.f32 %v2814, %v2842
        %v2854 = vadd.f32 %v2815, %v2842
        %v2855 = vadd.f32 %v2816, %v2842
        %v2856 = vadd.f32 %v2817, %v2842
        %v2857 = vadd.f32 %v2818, %v2842
        %v2858 = vadd.f32 %v2819, %v2842
        %v2859 = vadd.f32 %v2820, %v2842
        %v2860 = vadd.f32 %v2821, %v2842
        %v2861 = vadd.f32 %v2822, %v2842
        %v2862 = vadd.f32 %v2823, %v2842
        %v2863 = vadd.f32 %v2824, %v2842
        %v2864 = vadd.f32 %v2825, %v2842
        %v2865 = vadd.f32 %v2826, %v2842
        %v2866 = vadd.f32 %v2827, %v2842
        %v2867 = vadd.f32 %v2828, %v2842
        %v2868 = vadd.f32 %v2829, %v2842
        %v2869 = vadd.f32 %v2830, %v2842
        %v2870 = vadd.f32 %v2831, %v2842
        %v2871 = vadd.f32 %v2832, %v2842
        %v2872 = vadd.f32 %v2833, %v2842
        %v2873 = vadd.f32 %v2834, %v2842
        %v2874 = vadd.f32 %v2835, %v2842
        %v2875 = vadd.f32 %v2836, %v2842
        %v2876 = vld [vmem:[%s443] sm:$0xff]
        %v2877 = vld [vmem:[%s443 + $0x8] sm:$0xff]
        %v2878 = vld [vmem:[%s443 + $0x10] sm:$0xff]
        %v2879 = vld [vmem:[%s443 + $0x18] sm:$0xff]
        %v2880 = vld [vmem:[%s443 + $0x20] sm:$0xff]
        %v2881 = vld [vmem:[%s443 + $0x28] sm:$0xff]
        %v2882 = vld [vmem:[%s443 + $0x30] sm:$0xff]
        %v2883 = vld [vmem:[%s443 + $0x38] sm:$0xff]
        %v2884 = vld [vmem:[%s443 + $0x40] sm:$0xff]
        %v2885 = vld [vmem:[%s443 + $0x48] sm:$0xff]
        %v2886 = vld [vmem:[%s443 + $0x50] sm:$0xff]
        %v2887 = vld [vmem:[%s443 + $0x58] sm:$0xff]
        %v2888 = vld [vmem:[%s443 + $0x60] sm:$0xff]
        %v2889 = vld [vmem:[%s443 + $0x68] sm:$0xff]
        %v2890 = vld [vmem:[%s443 + $0x70] sm:$0xff]
        %v2891 = vld [vmem:[%s443 + $0x78] sm:$0xff]
        %v2892 = vld [vmem:[%s443 + $0x80] sm:$0xff]
        %v2893 = vld [vmem:[%s443 + $0x88] sm:$0xff]
        %v2894 = vld [vmem:[%s443 + $0x90] sm:$0xff]
        %v2895 = vld [vmem:[%s443 + $0x98] sm:$0xff]
        %v2896 = vld [vmem:[%s443 + $0xa0] sm:$0xff]
        %v2897 = vld [vmem:[%s443 + $0xa8] sm:$0xff]
        %v2898 = vld [vmem:[%s443 + $0xb0] sm:$0xff]
        %v2899 = vld [vmem:[%s443 + $0xb8] sm:$0xff]
        %v2900 = vld [vmem:[%s443 + $0xc0] sm:$0xff]
        %v2901 = vld [vmem:[%s443 + $0xc8] sm:$0xff]
        %v2902 = vld [vmem:[%s443 + $0xd0] sm:$0xff]
        %v2903 = vld [vmem:[%s443 + $0xd8] sm:$0xff]
        %v2904 = vld [vmem:[%s443 + $0xe0] sm:$0xff]
        %v2905 = vld [vmem:[%s443 + $0xe8] sm:$0xff]
        %v2906 = vld [vmem:[%s443 + $0xf0] sm:$0xff]
        %v2907 = vld [vmem:[%s443 + $0xf8] sm:$0xff]
        %v2908 = vadd.f32 %v2876, %v2844
        %v2909 = vadd.f32 %v2877, %v2845
        %v2910 = vadd.f32 %v2878, %v2846
        %v2911 = vadd.f32 %v2879, %v2847
        %v2912 = vadd.f32 %v2880, %v2848
        %v2913 = vadd.f32 %v2881, %v2849
        %v2914 = vadd.f32 %v2882, %v2850
        %v2915 = vadd.f32 %v2883, %v2851
        %v2916 = vadd.f32 %v2884, %v2852
        %v2917 = vadd.f32 %v2885, %v2853
        %v2918 = vadd.f32 %v2886, %v2854
        %v2919 = vadd.f32 %v2887, %v2855
        %v2920 = vadd.f32 %v2888, %v2856
        %v2921 = vadd.f32 %v2889, %v2857
        %v2922 = vadd.f32 %v2890, %v2858
        %v2923 = vadd.f32 %v2891, %v2859
        %v2924 = vadd.f32 %v2892, %v2860
        %v2925 = vadd.f32 %v2893, %v2861
        %v2926 = vadd.f32 %v2894, %v2862
        %v2927 = vadd.f32 %v2895, %v2863
        %v2928 = vadd.f32 %v2896, %v2864
        %v2929 = vadd.f32 %v2897, %v2865
        %v2930 = vadd.f32 %v2898, %v2866
        %v2931 = vadd.f32 %v2899, %v2867
        %v2932 = vadd.f32 %v2900, %v2868
        %v2933 = vadd.f32 %v2901, %v2869
        %v2934 = vadd.f32 %v2902, %v2870
        %v2935 = vadd.f32 %v2903, %v2871
        %v2936 = vadd.f32 %v2904, %v2872
        %v2937 = vadd.f32 %v2905, %v2873
        %v2938 = vadd.f32 %v2906, %v2874
        %v2939 = vadd.f32 %v2907, %v2875
        %2940 = vst.msk [vmem:[%s516] sm:$0xff] %vm986, %v2908
        %2941 = vst.msk [vmem:[%s516 + $0x8] sm:$0xff] %vm986, %v2909
        %2942 = vst.msk [vmem:[%s516 + $0x10] sm:$0xff] %vm986, %v2910
        %2943 = vst.msk [vmem:[%s516 + $0x18] sm:$0xff] %vm986, %v2911
        %2944 = vst.msk [vmem:[%s516 + $0x20] sm:$0xff] %vm986, %v2912
        %2945 = vst.msk [vmem:[%s516 + $0x28] sm:$0xff] %vm986, %v2913
        %2946 = vst.msk [vmem:[%s516 + $0x30] sm:$0xff] %vm986, %v2914
        %2947 = vst.msk [vmem:[%s516 + $0x38] sm:$0xff] %vm986, %v2915
        %2948 = vst.msk [vmem:[%s516 + $0x40] sm:$0xff] %vm986, %v2916
        %2949 = vst.msk [vmem:[%s516 + $0x48] sm:$0xff] %vm986, %v2917
        %2950 = vst.msk [vmem:[%s516 + $0x50] sm:$0xff] %vm986, %v2918
        %2951 = vst.msk [vmem:[%s516 + $0x58] sm:$0xff] %vm986, %v2919
        %2952 = vst.msk [vmem:[%s516 + $0x60] sm:$0xff] %vm986, %v2920
        %2953 = vst.msk [vmem:[%s516 + $0x68] sm:$0xff] %vm986, %v2921
        %2954 = vst.msk [vmem:[%s516 + $0x70] sm:$0xff] %vm986, %v2922
        %2955 = vst.msk [vmem:[%s516 + $0x78] sm:$0xff] %vm986, %v2923
        %2956 = vst.msk [vmem:[%s516 + $0x80] sm:$0xff] %vm986, %v2924
        %2957 = vst.msk [vmem:[%s516 + $0x88] sm:$0xff] %vm986, %v2925
        %2958 = vst.msk [vmem:[%s516 + $0x90] sm:$0xff] %vm986, %v2926
        %2959 = vst.msk [vmem:[%s516 + $0x98] sm:$0xff] %vm986, %v2927
        %2960 = vst.msk [vmem:[%s516 + $0xa0] sm:$0xff] %vm986, %v2928
        %2961 = vst.msk [vmem:[%s516 + $0xa8] sm:$0xff] %vm986, %v2929
        %2962 = vst.msk [vmem:[%s516 + $0xb0] sm:$0xff] %vm986, %v2930
        %2963 = vst.msk [vmem:[%s516 + $0xb8] sm:$0xff] %vm986, %v2931
        %2964 = vst.msk [vmem:[%s516 + $0xc0] sm:$0xff] %vm986, %v2932
        %2965 = vst.msk [vmem:[%s516 + $0xc8] sm:$0xff] %vm986, %v2933
        %2966 = vst.msk [vmem:[%s516 + $0xd0] sm:$0xff] %vm986, %v2934
        %2967 = vst.msk [vmem:[%s516 + $0xd8] sm:$0xff] %vm986, %v2935
        %2968 = vst.msk [vmem:[%s516 + $0xe0] sm:$0xff] %vm986, %v2936
        %2969 = vst.msk [vmem:[%s516 + $0xe8] sm:$0xff] %vm986, %v2937
        %2970 = vst.msk [vmem:[%s516 + $0xf0] sm:$0xff] %vm986, %v2938
        %2971 = vst.msk [vmem:[%s516 + $0xf8] sm:$0xff] %vm986, %v2939
        %v2972 = vpack.c.bf16 %v2845, %v2844
        %v2973 = vpack.c.bf16 %v2847, %v2846
        %v2974 = vpack.c.bf16 %v2849, %v2848
        %v2975 = vpack.c.bf16 %v2851, %v2850
        %v2976 = vpack.c.bf16 %v2853, %v2852
        %v2977 = vpack.c.bf16 %v2855, %v2854
        %v2978 = vpack.c.bf16 %v2857, %v2856
        %v2979 = vpack.c.bf16 %v2859, %v2858
        %v2980 = vpack.c.bf16 %v2861, %v2860
        %v2981 = vpack.c.bf16 %v2863, %v2862
        %v2982 = vpack.c.bf16 %v2865, %v2864
        %v2983 = vpack.c.bf16 %v2867, %v2866
        %v2984 = vpack.c.bf16 %v2869, %v2868
        %v2985 = vpack.c.bf16 %v2871, %v2870
        %v2986 = vpack.c.bf16 %v2873, %v2872
        %v2987 = vpack.c.bf16 %v2875, %v2874
        %3004 = vrot.lane.b32.xlu0 %v2972, 32
        %v3005 = vpop.permute.xlu0 %3004
        %3006 = vrot.lane.b32.xlu0 %v2973, 32
        %v3007 = vpop.permute.xlu0 %3006
        %3008 = vrot.lane.b32.xlu0 %v2974, 32
        %v3009 = vpop.permute.xlu0 %3008
        %3010 = vrot.lane.b32.xlu0 %v2975, 32
        %v3011 = vpop.permute.xlu0 %3010
        %3012 = vrot.lane.b32.xlu0 %v2976, 32
        %v3013 = vpop.permute.xlu0 %3012
        %3014 = vrot.lane.b32.xlu0 %v2977, 32
        %v3015 = vpop.permute.xlu0 %3014
        %3016 = vrot.lane.b32.xlu0 %v2978, 32
        %v3017 = vpop.permute.xlu0 %3016
        %3018 = vrot.lane.b32.xlu0 %v2979, 32
        %v3019 = vpop.permute.xlu0 %3018
        %3020 = vrot.lane.b32.xlu0 %v2980, 32
        %v3021 = vpop.permute.xlu0 %3020
        %3022 = vrot.lane.b32.xlu0 %v2981, 32
        %v3023 = vpop.permute.xlu0 %3022
        %3024 = vrot.lane.b32.xlu0 %v2982, 32
        %v3025 = vpop.permute.xlu0 %3024
        %3026 = vrot.lane.b32.xlu0 %v2983, 32
        %v3027 = vpop.permute.xlu0 %3026
        %3028 = vrot.lane.b32.xlu0 %v2984, 32
        %v3029 = vpop.permute.xlu0 %3028
        %3030 = vrot.lane.b32.xlu0 %v2985, 32
        %v3031 = vpop.permute.xlu0 %3030
        %3032 = vrot.lane.b32.xlu0 %v2986, 32
        %v3033 = vpop.permute.xlu0 %3032
        %3034 = vrot.lane.b32.xlu0 %v2987, 32
        %v3035 = vpop.permute.xlu0 %3034
        %3052 = vst.msk [vmem:[%s694] sm:$0xff] %vm695, %v3005
        %3053 = vst.msk [vmem:[%s694 + $0x8] sm:$0xff] %vm695, %v3007
        %3054 = vst.msk [vmem:[%s694 + $0x10] sm:$0xff] %vm695, %v3009
        %3055 = vst.msk [vmem:[%s694 + $0x18] sm:$0xff] %vm695, %v3011
        %3056 = vst.msk [vmem:[%s694 + $0x20] sm:$0xff] %vm695, %v3013
        %3057 = vst.msk [vmem:[%s694 + $0x28] sm:$0xff] %vm695, %v3015
        %3058 = vst.msk [vmem:[%s694 + $0x30] sm:$0xff] %vm695, %v3017
        %3059 = vst.msk [vmem:[%s694 + $0x38] sm:$0xff] %vm695, %v3019
        %3060 = vst.msk [vmem:[%s694 + $0x40] sm:$0xff] %vm695, %v3021
        %3061 = vst.msk [vmem:[%s694 + $0x48] sm:$0xff] %vm695, %v3023
        %3062 = vst.msk [vmem:[%s694 + $0x50] sm:$0xff] %vm695, %v3025
        %3063 = vst.msk [vmem:[%s694 + $0x58] sm:$0xff] %vm695, %v3027
        %3064 = vst.msk [vmem:[%s694 + $0x60] sm:$0xff] %vm695, %v3029
        %3065 = vst.msk [vmem:[%s694 + $0x68] sm:$0xff] %vm695, %v3031
        %3066 = vst.msk [vmem:[%s694 + $0x70] sm:$0xff] %vm695, %v3033
        %3067 = vst.msk [vmem:[%s694 + $0x78] sm:$0xff] %vm695, %v3035
        %v3100 = vrot.slane %v2844, 7
        %v3101 = vrot.slane %v2845, 7
        %v3102 = vsel %vm776, %v3100, %v3101
        %v3103 = vrot.slane %v2846, 7
        %v3104 = vrot.slane %v2847, 7
        %v3105 = vsel %vm776, %v3103, %v3104
        %v3106 = vrot.slane %v2848, 7
        %v3107 = vrot.slane %v2849, 7
        %v3108 = vsel %vm776, %v3106, %v3107
        %v3109 = vrot.slane %v2850, 7
        %v3110 = vrot.slane %v2851, 7
        %v3111 = vsel %vm776, %v3109, %v3110
        %v3112 = vrot.slane %v2852, 7
        %v3113 = vrot.slane %v2853, 7
        %v3114 = vsel %vm776, %v3112, %v3113
        %v3115 = vrot.slane %v2854, 7
        %v3116 = vrot.slane %v2855, 7
        %v3117 = vsel %vm776, %v3115, %v3116
        %v3118 = vrot.slane %v2856, 7
        %v3119 = vrot.slane %v2857, 7
        %v3120 = vsel %vm776, %v3118, %v3119
        %v3121 = vrot.slane %v2858, 7
        %v3122 = vrot.slane %v2859, 7
        %v3123 = vsel %vm776, %v3121, %v3122
        %v3124 = vrot.slane %v2860, 7
        %v3125 = vrot.slane %v2861, 7
        %v3126 = vsel %vm776, %v3124, %v3125
        %v3127 = vrot.slane %v2862, 7
        %v3128 = vrot.slane %v2863, 7
        %v3129 = vsel %vm776, %v3127, %v3128
        %v3130 = vrot.slane %v2864, 7
        %v3131 = vrot.slane %v2865, 7
        %v3132 = vsel %vm776, %v3130, %v3131
        %v3133 = vrot.slane %v2866, 7
        %v3134 = vrot.slane %v2867, 7
        %v3135 = vsel %vm776, %v3133, %v3134
        %v3136 = vrot.slane %v2868, 7
        %v3137 = vrot.slane %v2869, 7
        %v3138 = vsel %vm776, %v3136, %v3137
        %v3139 = vrot.slane %v2870, 7
        %v3140 = vrot.slane %v2871, 7
        %v3141 = vsel %vm776, %v3139, %v3140
        %v3142 = vrot.slane %v2872, 7
        %v3143 = vrot.slane %v2873, 7
        %v3144 = vsel %vm776, %v3142, %v3143
        %v3145 = vrot.slane %v2874, 7
        %v3146 = vrot.slane %v2875, 7
        %v3147 = vsel %vm776, %v3145, %v3146
        %v3180 = vsel %vm776, 0.0, %v3100
        %v3181 = vsel %vm776, 0.0, %v3103
        %v3182 = vsel %vm776, 0.0, %v3106
        %v3183 = vsel %vm776, 0.0, %v3109
        %v3184 = vsel %vm776, 0.0, %v3112
        %v3185 = vsel %vm776, 0.0, %v3115
        %v3186 = vsel %vm776, 0.0, %v3118
        %v3187 = vsel %vm776, 0.0, %v3121
        %v3188 = vsel %vm776, 0.0, %v3124
        %v3189 = vsel %vm776, 0.0, %v3127
        %v3190 = vsel %vm776, 0.0, %v3130
        %v3191 = vsel %vm776, 0.0, %v3133
        %v3192 = vsel %vm776, 0.0, %v3136
        %v3193 = vsel %vm776, 0.0, %v3139
        %v3194 = vsel %vm776, 0.0, %v3142
        %v3195 = vsel %vm776, 0.0, %v3145
        %v3196 = vrot.slane %v2844, 1
        %v3197 = vrot.slane %v2845, 1
        %v3198 = vsel %vm873, %v3196, %v3197
        %v3199 = vrot.slane %v2846, 1
        %v3200 = vrot.slane %v2847, 1
        %v3201 = vsel %vm873, %v3199, %v3200
        %v3202 = vrot.slane %v2848, 1
        %v3203 = vrot.slane %v2849, 1
        %v3204 = vsel %vm873, %v3202, %v3203
        %v3205 = vrot.slane %v2850, 1
        %v3206 = vrot.slane %v2851, 1
        %v3207 = vsel %vm873, %v3205, %v3206
        %v3208 = vrot.slane %v2852, 1
        %v3209 = vrot.slane %v2853, 1
        %v3210 = vsel %vm873, %v3208, %v3209
        %v3211 = vrot.slane %v2854, 1
        %v3212 = vrot.slane %v2855, 1
        %v3213 = vsel %vm873, %v3211, %v3212
        %v3214 = vrot.slane %v2856, 1
        %v3215 = vrot.slane %v2857, 1
        %v3216 = vsel %vm873, %v3214, %v3215
        %v3217 = vrot.slane %v2858, 1
        %v3218 = vrot.slane %v2859, 1
        %v3219 = vsel %vm873, %v3217, %v3218
        %v3220 = vrot.slane %v2860, 1
        %v3221 = vrot.slane %v2861, 1
        %v3222 = vsel %vm873, %v3220, %v3221
        %v3223 = vrot.slane %v2862, 1
        %v3224 = vrot.slane %v2863, 1
        %v3225 = vsel %vm873, %v3223, %v3224
        %v3226 = vrot.slane %v2864, 1
        %v3227 = vrot.slane %v2865, 1
        %v3228 = vsel %vm873, %v3226, %v3227
        %v3229 = vrot.slane %v2866, 1
        %v3230 = vrot.slane %v2867, 1
        %v3231 = vsel %vm873, %v3229, %v3230
        %v3232 = vrot.slane %v2868, 1
        %v3233 = vrot.slane %v2869, 1
        %v3234 = vsel %vm873, %v3232, %v3233
        %v3235 = vrot.slane %v2870, 1
        %v3236 = vrot.slane %v2871, 1
        %v3237 = vsel %vm873, %v3235, %v3236
        %v3238 = vrot.slane %v2872, 1
        %v3239 = vrot.slane %v2873, 1
        %v3240 = vsel %vm873, %v3238, %v3239
        %v3241 = vrot.slane %v2874, 1
        %v3242 = vrot.slane %v2875, 1
        %v3243 = vsel %vm873, %v3241, %v3242
        %v3276 = vsel %vm873, %v3197, 0.0
        %v3277 = vsel %vm873, %v3200, 0.0
        %v3278 = vsel %vm873, %v3203, 0.0
        %v3279 = vsel %vm873, %v3206, 0.0
        %v3280 = vsel %vm873, %v3209, 0.0
        %v3281 = vsel %vm873, %v3212, 0.0
        %v3282 = vsel %vm873, %v3215, 0.0
        %v3283 = vsel %vm873, %v3218, 0.0
        %v3284 = vsel %vm873, %v3221, 0.0
        %v3285 = vsel %vm873, %v3224, 0.0
        %v3286 = vsel %vm873, %v3227, 0.0
        %v3287 = vsel %vm873, %v3230, 0.0
        %v3288 = vsel %vm873, %v3233, 0.0
        %v3289 = vsel %vm873, %v3236, 0.0
        %v3290 = vsel %vm873, %v3239, 0.0
        %v3291 = vsel %vm873, %v3242, 0.0
        %v3292 = vpack.c.bf16 %v3102, %v3180
        %v3293 = vpack.c.bf16 %v3105, %v3181
        %v3294 = vpack.c.bf16 %v3108, %v3182
        %v3295 = vpack.c.bf16 %v3111, %v3183
        %v3296 = vpack.c.bf16 %v3114, %v3184
        %v3297 = vpack.c.bf16 %v3117, %v3185
        %v3298 = vpack.c.bf16 %v3120, %v3186
        %v3299 = vpack.c.bf16 %v3123, %v3187
        %v3300 = vpack.c.bf16 %v3126, %v3188
        %v3301 = vpack.c.bf16 %v3129, %v3189
        %v3302 = vpack.c.bf16 %v3132, %v3190
        %v3303 = vpack.c.bf16 %v3135, %v3191
        %v3304 = vpack.c.bf16 %v3138, %v3192
        %v3305 = vpack.c.bf16 %v3141, %v3193
        %v3306 = vpack.c.bf16 %v3144, %v3194
        %v3307 = vpack.c.bf16 %v3147, %v3195
        %3308 = vst.msk [vmem:[%s694] sm:$0xff] %vm986, %v3292
        %3309 = vst.msk [vmem:[%s694 + $0x8] sm:$0xff] %vm986, %v3293
        %3310 = vst.msk [vmem:[%s694 + $0x10] sm:$0xff] %vm986, %v3294
        %3311 = vst.msk [vmem:[%s694 + $0x18] sm:$0xff] %vm986, %v3295
        %3312 = vst.msk [vmem:[%s694 + $0x20] sm:$0xff] %vm986, %v3296
        %3313 = vst.msk [vmem:[%s694 + $0x28] sm:$0xff] %vm986, %v3297
        %3314 = vst.msk [vmem:[%s694 + $0x30] sm:$0xff] %vm986, %v3298
        %3315 = vst.msk [vmem:[%s694 + $0x38] sm:$0xff] %vm986, %v3299
        %3316 = vst.msk [vmem:[%s694 + $0x40] sm:$0xff] %vm986, %v3300
        %3317 = vst.msk [vmem:[%s694 + $0x48] sm:$0xff] %vm986, %v3301
        %3318 = vst.msk [vmem:[%s694 + $0x50] sm:$0xff] %vm986, %v3302
        %3319 = vst.msk [vmem:[%s694 + $0x58] sm:$0xff] %vm986, %v3303
        %3320 = vst.msk [vmem:[%s694 + $0x60] sm:$0xff] %vm986, %v3304
        %3321 = vst.msk [vmem:[%s694 + $0x68] sm:$0xff] %vm986, %v3305
        %3322 = vst.msk [vmem:[%s694 + $0x70] sm:$0xff] %vm986, %v3306
        %3323 = vst.msk [vmem:[%s694 + $0x78] sm:$0xff] %vm986, %v3307
        %v3324 = vpack.c.bf16 %v3276, %v3198
        %v3325 = vpack.c.bf16 %v3277, %v3201
        %v3326 = vpack.c.bf16 %v3278, %v3204
        %v3327 = vpack.c.bf16 %v3279, %v3207
        %v3328 = vpack.c.bf16 %v3280, %v3210
        %v3329 = vpack.c.bf16 %v3281, %v3213
        %v3330 = vpack.c.bf16 %v3282, %v3216
        %v3331 = vpack.c.bf16 %v3283, %v3219
        %v3332 = vpack.c.bf16 %v3284, %v3222
        %v3333 = vpack.c.bf16 %v3285, %v3225
        %v3334 = vpack.c.bf16 %v3286, %v3228
        %v3335 = vpack.c.bf16 %v3287, %v3231
        %v3336 = vpack.c.bf16 %v3288, %v3234
        %v3337 = vpack.c.bf16 %v3289, %v3237
        %v3338 = vpack.c.bf16 %v3290, %v3240
        %v3339 = vpack.c.bf16 %v3291, %v3243
        %3356 = vrot.lane.b32.xlu0 %v3324, 64
        %v3357 = vpop.permute.xlu0 %3356
        %3358 = vrot.lane.b32.xlu0 %v3325, 64
        %v3359 = vpop.permute.xlu0 %3358
        %3360 = vrot.lane.b32.xlu0 %v3326, 64
        %v3361 = vpop.permute.xlu0 %3360
        %3362 = vrot.lane.b32.xlu0 %v3327, 64
        %v3363 = vpop.permute.xlu0 %3362
        %3364 = vrot.lane.b32.xlu0 %v3328, 64
        %v3365 = vpop.permute.xlu0 %3364
        %3366 = vrot.lane.b32.xlu0 %v3329, 64
        %v3367 = vpop.permute.xlu0 %3366
        %3368 = vrot.lane.b32.xlu0 %v3330, 64
        %v3369 = vpop.permute.xlu0 %3368
        %3370 = vrot.lane.b32.xlu0 %v3331, 64
        %v3371 = vpop.permute.xlu0 %3370
        %3372 = vrot.lane.b32.xlu0 %v3332, 64
        %v3373 = vpop.permute.xlu0 %3372
        %3374 = vrot.lane.b32.xlu0 %v3333, 64
        %v3375 = vpop.permute.xlu0 %3374
        %3376 = vrot.lane.b32.xlu0 %v3334, 64
        %v3377 = vpop.permute.xlu0 %3376
        %3378 = vrot.lane.b32.xlu0 %v3335, 64
        %v3379 = vpop.permute.xlu0 %3378
        %3380 = vrot.lane.b32.xlu0 %v3336, 64
        %v3381 = vpop.permute.xlu0 %3380
        %3382 = vrot.lane.b32.xlu0 %v3337, 64
        %v3383 = vpop.permute.xlu0 %3382
        %3384 = vrot.lane.b32.xlu0 %v3338, 64
        %v3385 = vpop.permute.xlu0 %3384
        %3386 = vrot.lane.b32.xlu0 %v3339, 64
        %v3387 = vpop.permute.xlu0 %3386
        %3404 = vst.msk [vmem:[%s694] sm:$0xff] %vm1083, %v3357
        %3405 = vst.msk [vmem:[%s694 + $0x8] sm:$0xff] %vm1083, %v3359
        %3406 = vst.msk [vmem:[%s694 + $0x10] sm:$0xff] %vm1083, %v3361
        %3407 = vst.msk [vmem:[%s694 + $0x18] sm:$0xff] %vm1083, %v3363
        %3408 = vst.msk [vmem:[%s694 + $0x20] sm:$0xff] %vm1083, %v3365
        %3409 = vst.msk [vmem:[%s694 + $0x28] sm:$0xff] %vm1083, %v3367
        %3410 = vst.msk [vmem:[%s694 + $0x30] sm:$0xff] %vm1083, %v3369
        %3411 = vst.msk [vmem:[%s694 + $0x38] sm:$0xff] %vm1083, %v3371
        %3412 = vst.msk [vmem:[%s694 + $0x40] sm:$0xff] %vm1083, %v3373
        %3413 = vst.msk [vmem:[%s694 + $0x48] sm:$0xff] %vm1083, %v3375
        %3414 = vst.msk [vmem:[%s694 + $0x50] sm:$0xff] %vm1083, %v3377
        %3415 = vst.msk [vmem:[%s694 + $0x58] sm:$0xff] %vm1083, %v3379
        %3416 = vst.msk [vmem:[%s694 + $0x60] sm:$0xff] %vm1083, %v3381
        %3417 = vst.msk [vmem:[%s694 + $0x68] sm:$0xff] %vm1083, %v3383
        %3418 = vst.msk [vmem:[%s694 + $0x70] sm:$0xff] %vm1083, %v3385
        %3419 = vst.msk [vmem:[%s694 + $0x78] sm:$0xff] %vm1083, %v3387
        %v3420 = vld [vmem:[#allocation2] sm:$0xff]
        %v3421 = vld [vmem:[#allocation2 + $0x8] sm:$0xff]
        %v3422 = vld [vmem:[#allocation2 + $0x10] sm:$0xff]
        %v3423 = vld [vmem:[#allocation2 + $0x18] sm:$0xff]
        %v3424 = vld [vmem:[#allocation2 + $0x20] sm:$0xff]
        %v3425 = vld [vmem:[#allocation2 + $0x28] sm:$0xff]
        %v3426 = vld [vmem:[#allocation2 + $0x30] sm:$0xff]
        %v3427 = vld [vmem:[#allocation2 + $0x38] sm:$0xff]
        %v3428 = vld [vmem:[#allocation2 + $0x40] sm:$0xff]
        %v3429 = vld [vmem:[#allocation2 + $0x48] sm:$0xff]
        %v3430 = vld [vmem:[#allocation2 + $0x50] sm:$0xff]
        %v3431 = vld [vmem:[#allocation2 + $0x58] sm:$0xff]
        %v3432 = vld [vmem:[#allocation2 + $0x60] sm:$0xff]
        %v3433 = vld [vmem:[#allocation2 + $0x68] sm:$0xff]
        %v3434 = vld [vmem:[#allocation2 + $0x70] sm:$0xff]
        %v3435 = vld [vmem:[#allocation2 + $0x78] sm:$0xff]
        %v3436 = vld [vmem:[#allocation2 + $0x80] sm:$0xff]
        %v3437 = vld [vmem:[#allocation2 + $0x88] sm:$0xff]
        %v3438 = vld [vmem:[#allocation13] sm:$0xf]
        %v3439 = vld [vmem:[#allocation13 + $0x4] sm:$0xf]
        %v3440 = vld [vmem:[#allocation13 + $0x8] sm:$0xf]
        %v3441 = vld [vmem:[#allocation13 + $0xc] sm:$0xf]
        %v3442 = vld [vmem:[#allocation13 + $0x10] sm:$0xf]
        %v3443 = vld [vmem:[#allocation13 + $0x14] sm:$0xf]
        %v3444 = vld [vmem:[#allocation13 + $0x18] sm:$0xf]
        %v3445 = vld [vmem:[#allocation13 + $0x1c] sm:$0xf]
        %v3446 = vld [vmem:[#allocation13 + $0x20] sm:$0xf]
        %v3447 = vld [vmem:[#allocation13 + $0x24] sm:$0xf]
        %v3448 = vld [vmem:[#allocation13 + $0x28] sm:$0xf]
        %v3449 = vld [vmem:[#allocation13 + $0x2c] sm:$0xf]
        %v3462 = vunpack.c.l.b16 %v3438
        %v3463 = vunpack.c.l.b16 %v3439
        %v3464 = vunpack.c.l.b16 %v3440
        %v3465 = vunpack.c.l.b16 %v3441
        %v3466 = vunpack.c.l.b16 %v3442
        %v3467 = vunpack.c.l.b16 %v3443
        %v3468 = vunpack.c.l.b16 %v3444
        %v3469 = vunpack.c.l.b16 %v3445
        %v3470 = vunpack.c.l.b16 %v3446
        %v3471 = vunpack.c.l.b16 %v3447
        %v3472 = vunpack.c.l.b16 %v3448
        %v3473 = vunpack.c.l.b16 %v3449
        %v3474 = vpack.c.b16 %v3463, %v3462
        %v3475 = vpack.c.b16 %v3465, %v3464
        %v3476 = vpack.c.b16 %v3467, %v3466
        %v3477 = vpack.c.b16 %v3469, %v3468
        %v3478 = vpack.c.b16 %v3471, %v3470
        %v3479 = vpack.c.b16 %v3473, %v3472
        %v3487 = vsel %vm1102, %v3420, 0
        %v3490 = vsel %vm1102, %v3421, 0
        %v3493 = vsel %vm1102, %v3422, 0
        %v3496 = vsel %vm1102, %v3423, 0
        %v3499 = vsel %vm1102, %v3424, 0
        %v3502 = vsel %vm1102, %v3425, 0
        %v3505 = vsel %vm1102, %v3426, 0
        %v3508 = vsel %vm1102, %v3427, 0
        %v3511 = vsel %vm1102, %v3428, 0
        %v3514 = vsel %vm1102, %v3429, 0
        %v3517 = vsel %vm1102, %v3430, 0
        %v3520 = vsel %vm1102, %v3431, 0
        %v3523 = vsel %vm1102, %v3432, 0
        %v3526 = vsel %vm1102, %v3433, 0
        %v3529 = vsel %vm1102, %v3434, 0
        %v3532 = vsel %vm1102, %v3435, 0
        %v3535 = vsel %vm1102, %v3436, 0
        %v3538 = vsel %vm1102, %v3437, 0
        %3540 = vmatprep.subr.bf16.mxu0 0
        %3541 = vmatpush1.bf16.msra.mxu0 %v3474
        %3542 = vmatprep.subr.bf16.mxu0 0
        %3543 = vmatpush1.bf16.msra.mxu0 %v3475
        %3544 = vmatprep.subr.bf16.mxu0 0
        %3545 = vmatpush1.bf16.msra.mxu0 %v3476
        %3546 = vmatprep.subr.bf16.mxu0 0
        %3547 = vmatpush1.bf16.msra.mxu0 %v3477
        %3548 = vmatprep.subr.bf16.mxu0 0
        %3549 = vmatpush1.bf16.msra.mxu0 %v3478
        %3550 = vmatprep.subr.bf16.mxu0 0
        %3551 = vmatpush1.bf16.msra.mxu0 %v3479
        %3552 = vmatprep.subr.bf16.mxu0 0
        %3553 = vmatpush1.bf16.msra.mxu0 0
        %3554 = vmatprep.subr.bf16.mxu0 0
        %3555 = vmatpush1.bf16.msra.mxu0 0
        %3556 = vmatprep.subr.bf16.mxu0 0
        %3557 = vmatpush1.bf16.msra.mxu0 0
        %3558 = vmatprep.subr.bf16.mxu0 0
        %3559 = vmatpush1.bf16.msra.mxu0 0
        %3560 = vmatprep.subr.bf16.mxu0 0
        %3561 = vmatpush1.bf16.msra.mxu0 0
        %3562 = vmatprep.subr.bf16.mxu0 0
        %3563 = vmatpush1.bf16.msra.mxu0 0
        %3564 = vmatprep.subr.bf16.mxu0 0
        %3565 = vmatpush1.bf16.msra.mxu0 0
        %3566 = vmatprep.subr.bf16.mxu0 0
        %3567 = vmatpush1.bf16.msra.mxu0 0
        %3568 = vmatprep.subr.bf16.mxu0 0
        %3569 = vmatpush1.bf16.msra.mxu0 0
        %3570 = vmatprep.subr.bf16.mxu0 0
        %3571 = vmatpush1.bf16.msra.mxu0 0
        %3572 = vmatprep.mubr.bf16.mxu0 0
        %3573 = vmatmul.mubr.bf16.gmra.mrb[0].mxu0 %v3487
        %v3574 = vpop.f32.mrb[0].mxu0
        %v3575 = vadd.f32 0.0, %v3574
        %v3576 = vpop.f32.mrb[0].mxu0
        %v3577 = vpop.f32.mrb[0].mxu0
        %v3578 = vadd.f32 0.0, %v3577
        %v3579 = vpop.f32.mrb[0].mxu0
        %3580 = vmatprep.mubr.bf16.mxu0 0
        %3581 = vmatmul.mubr.bf16.gmra.mrb[0].mxu0 %v3490
        %v3582 = vpop.f32.mrb[0].mxu0
        %v3583 = vadd.f32 0.0, %v3582
        %v3584 = vpop.f32.mrb[0].mxu0
        %v3585 = vpop.f32.mrb[0].mxu0
        %v3586 = vadd.f32 0.0, %v3585
        %v3587 = vpop.f32.mrb[0].mxu0
        %3588 = vmatprep.mubr.bf16.mxu0 0
        %3589 = vmatmul.mubr.bf16.gmra.mrb[0].mxu0 %v3493
        %v3590 = vpop.f32.mrb[0].mxu0
        %v3591 = vadd.f32 0.0, %v3590
        %v3592 = vpop.f32.mrb[0].mxu0
        %v3593 = vpop.f32.mrb[0].mxu0
        %v3594 = vadd.f32 0.0, %v3593
        %v3595 = vpop.f32.mrb[0].mxu0
        %3596 = vmatprep.mubr.bf16.mxu0 0
        %3597 = vmatmul.mubr.bf16.gmra.mrb[0].mxu0 %v3496
        %v3598 = vpop.f32.mrb[0].mxu0
        %v3599 = vadd.f32 0.0, %v3598
        %v3600 = vpop.f32.mrb[0].mxu0
        %v3601 = vpop.f32.mrb[0].mxu0
        %v3602 = vadd.f32 0.0, %v3601
        %v3603 = vpop.f32.mrb[0].mxu0
        %3604 = vmatprep.mubr.bf16.mxu0 0
        %3605 = vmatmul.mubr.bf16.gmra.mrb[0].mxu0 %v3499
        %v3606 = vpop.f32.mrb[0].mxu0
        %v3607 = vadd.f32 0.0, %v3606
        %v3608 = vpop.f32.mrb[0].mxu0
        %v3609 = vpop.f32.mrb[0].mxu0
        %v3610 = vadd.f32 0.0, %v3609
        %v3611 = vpop.f32.mrb[0].mxu0
        %3612 = vmatprep.mubr.bf16.mxu0 0
        %3613 = vmatmul.mubr.bf16.gmra.mrb[0].mxu0 %v3502
        %v3614 = vpop.f32.mrb[0].mxu0
        %v3615 = vadd.f32 0.0, %v3614
        %v3616 = vpop.f32.mrb[0].mxu0
        %v3617 = vpop.f32.mrb[0].mxu0
        %v3618 = vadd.f32 0.0, %v3617
        %v3619 = vpop.f32.mrb[0].mxu0
        %3620 = vmatprep.mubr.bf16.mxu0 0
        %3621 = vmatmul.mubr.bf16.gmra.mrb[0].mxu0 %v3505
        %v3622 = vpop.f32.mrb[0].mxu0
        %v3623 = vadd.f32 0.0, %v3622
        %v3624 = vpop.f32.mrb[0].mxu0
        %v3625 = vpop.f32.mrb[0].mxu0
        %v3626 = vadd.f32 0.0, %v3625
        %v3627 = vpop.f32.mrb[0].mxu0
        %3628 = vmatprep.mubr.bf16.mxu0 0
        %3629 = vmatmul.mubr.bf16.gmra.mrb[0].mxu0 %v3508
        %v3630 = vpop.f32.mrb[0].mxu0
        %v3631 = vadd.f32 0.0, %v3630
        %v3632 = vpop.f32.mrb[0].mxu0
        %v3633 = vpop.f32.mrb[0].mxu0
        %v3634 = vadd.f32 0.0, %v3633
        %v3635 = vpop.f32.mrb[0].mxu0
        %3636 = vmatprep.mubr.bf16.mxu0 0
        %3637 = vmatmul.mubr.bf16.gmra.mrb[0].mxu0 %v3511
        %v3638 = vpop.f32.mrb[0].mxu0
        %v3639 = vadd.f32 0.0, %v3638
        %v3640 = vpop.f32.mrb[0].mxu0
        %v3641 = vpop.f32.mrb[0].mxu0
        %v3642 = vadd.f32 0.0, %v3641
        %v3643 = vpop.f32.mrb[0].mxu0
        %3644 = vmatprep.mubr.bf16.mxu0 0
        %3645 = vmatmul.mubr.bf16.gmra.mrb[0].mxu0 %v3514
        %v3646 = vpop.f32.mrb[0].mxu0
        %v3647 = vadd.f32 0.0, %v3646
        %v3648 = vpop.f32.mrb[0].mxu0
        %v3649 = vpop.f32.mrb[0].mxu0
        %v3650 = vadd.f32 0.0, %v3649
        %v3651 = vpop.f32.mrb[0].mxu0
        %3652 = vmatprep.mubr.bf16.mxu0 0
        %3653 = vmatmul.mubr.bf16.gmra.mrb[0].mxu0 %v3517
        %v3654 = vpop.f32.mrb[0].mxu0
        %v3655 = vadd.f32 0.0, %v3654
        %v3656 = vpop.f32.mrb[0].mxu0
        %v3657 = vpop.f32.mrb[0].mxu0
        %v3658 = vadd.f32 0.0, %v3657
        %v3659 = vpop.f32.mrb[0].mxu0
        %3660 = vmatprep.mubr.bf16.mxu0 0
        %3661 = vmatmul.mubr.bf16.gmra.mrb[0].mxu0 %v3520
        %v3662 = vpop.f32.mrb[0].mxu0
        %v3663 = vadd.f32 0.0, %v3662
        %v3664 = vpop.f32.mrb[0].mxu0
        %v3665 = vpop.f32.mrb[0].mxu0
        %v3666 = vadd.f32 0.0, %v3665
        %v3667 = vpop.f32.mrb[0].mxu0
        %3668 = vmatprep.mubr.bf16.mxu0 0
        %3669 = vmatmul.mubr.bf16.gmra.mrb[0].mxu0 %v3523
        %v3670 = vpop.f32.mrb[0].mxu0
        %v3671 = vadd.f32 0.0, %v3670
        %v3672 = vpop.f32.mrb[0].mxu0
        %v3673 = vpop.f32.mrb[0].mxu0
        %v3674 = vadd.f32 0.0, %v3673
        %v3675 = vpop.f32.mrb[0].mxu0
        %3676 = vmatprep.mubr.bf16.mxu0 0
        %3677 = vmatmul.mubr.bf16.gmra.mrb[0].mxu0 %v3526
        %v3678 = vpop.f32.mrb[0].mxu0
        %v3679 = vadd.f32 0.0, %v3678
        %v3680 = vpop.f32.mrb[0].mxu0
        %v3681 = vpop.f32.mrb[0].mxu0
        %v3682 = vadd.f32 0.0, %v3681
        %v3683 = vpop.f32.mrb[0].mxu0
        %3684 = vmatprep.mubr.bf16.mxu0 0
        %3685 = vmatmul.mubr.bf16.gmra.mrb[0].mxu0 %v3529
        %v3686 = vpop.f32.mrb[0].mxu0
        %v3687 = vadd.f32 0.0, %v3686
        %v3688 = vpop.f32.mrb[0].mxu0
        %v3689 = vpop.f32.mrb[0].mxu0
        %v3690 = vadd.f32 0.0, %v3689
        %v3691 = vpop.f32.mrb[0].mxu0
        %3692 = vmatprep.mubr.bf16.mxu0 0
        %3693 = vmatmul.mubr.bf16.gmra.mrb[0].mxu0 %v3532
        %v3694 = vpop.f32.mrb[0].mxu0
        %v3695 = vadd.f32 0.0, %v3694
        %v3696 = vpop.f32.mrb[0].mxu0
        %v3697 = vpop.f32.mrb[0].mxu0
        %v3698 = vadd.f32 0.0, %v3697
        %v3699 = vpop.f32.mrb[0].mxu0
        %3700 = vmatprep.mubr.bf16.mxu0 0
        %3701 = vmatmul.mubr.bf16.gmra.mrb[0].mxu0 %v3535
        %v3702 = vpop.f32.mrb[0].mxu0
        %v3703 = vadd.f32 0.0, %v3702
        %v3704 = vpop.f32.mrb[0].mxu0
        %v3705 = vpop.f32.mrb[0].mxu0
        %v3706 = vadd.f32 0.0, %v3705
        %v3707 = vpop.f32.mrb[0].mxu0
        %3708 = vmatprep.mubr.bf16.mxu0 0
        %3709 = vmatmul.mubr.bf16.gmra.mrb[0].mxu0 %v3538
        %v3710 = vpop.f32.mrb[0].mxu0
        %v3711 = vadd.f32 0.0, %v3710
        %v3712 = vpop.f32.mrb[0].mxu0
        %v3713 = vpop.f32.mrb[0].mxu0
        %v3714 = vadd.f32 0.0, %v3713
        %v3715 = vpop.f32.mrb[0].mxu0
        %3716 = vdwg.mxu0
        %3749 = vrot.lane.b32.xlu0 %v3583, 96
        %v3750 = vpop.permute.xlu0 %3749
        %3751 = vrot.lane.b32.xlu0 %v3586, 96
        %v3752 = vpop.permute.xlu0 %3751
        %3753 = vrot.lane.b32.xlu0 %v3591, 96
        %v3754 = vpop.permute.xlu0 %3753
        %3755 = vrot.lane.b32.xlu0 %v3594, 96
        %v3756 = vpop.permute.xlu0 %3755
        %3757 = vrot.lane.b32.xlu0 %v3599, 96
        %v3758 = vpop.permute.xlu0 %3757
        %3759 = vrot.lane.b32.xlu0 %v3602, 96
        %v3760 = vpop.permute.xlu0 %3759
        %3761 = vrot.lane.b32.xlu0 %v3607, 96
        %v3762 = vpop.permute.xlu0 %3761
        %3763 = vrot.lane.b32.xlu0 %v3610, 96
        %v3764 = vpop.permute.xlu0 %3763
        %3765 = vrot.lane.b32.xlu0 %v3615, 96
        %v3766 = vpop.permute.xlu0 %3765
        %3767 = vrot.lane.b32.xlu0 %v3618, 96
        %v3768 = vpop.permute.xlu0 %3767
        %3769 = vrot.lane.b32.xlu0 %v3623, 96
        %v3770 = vpop.permute.xlu0 %3769
        %3771 = vrot.lane.b32.xlu0 %v3626, 96
        %v3772 = vpop.permute.xlu0 %3771
        %3773 = vrot.lane.b32.xlu0 %v3631, 96
        %v3774 = vpop.permute.xlu0 %3773
        %3775 = vrot.lane.b32.xlu0 %v3634, 96
        %v3776 = vpop.permute.xlu0 %3775
        %3777 = vrot.lane.b32.xlu0 %v3639, 96
        %v3778 = vpop.permute.xlu0 %3777
        %3779 = vrot.lane.b32.xlu0 %v3642, 96
        %v3780 = vpop.permute.xlu0 %3779
        %3781 = vrot.lane.b32.xlu0 %v3647, 96
        %v3782 = vpop.permute.xlu0 %3781
        %3783 = vrot.lane.b32.xlu0 %v3650, 96
        %v3784 = vpop.permute.xlu0 %3783
        %3785 = vrot.lane.b32.xlu0 %v3655, 96
        %v3786 = vpop.permute.xlu0 %3785
        %3787 = vrot.lane.b32.xlu0 %v3658, 96
        %v3788 = vpop.permute.xlu0 %3787
        %3789 = vrot.lane.b32.xlu0 %v3663, 96
        %v3790 = vpop.permute.xlu0 %3789
        %3791 = vrot.lane.b32.xlu0 %v3666, 96
        %v3792 = vpop.permute.xlu0 %3791
        %3793 = vrot.lane.b32.xlu0 %v3671, 96
        %v3794 = vpop.permute.xlu0 %3793
        %3795 = vrot.lane.b32.xlu0 %v3674, 96
        %v3796 = vpop.permute.xlu0 %3795
        %3797 = vrot.lane.b32.xlu0 %v3679, 96
        %v3798 = vpop.permute.xlu0 %3797
        %3799 = vrot.lane.b32.xlu0 %v3682, 96
        %v3800 = vpop.permute.xlu0 %3799
        %3801 = vrot.lane.b32.xlu0 %v3687, 96
        %v3802 = vpop.permute.xlu0 %3801
        %3803 = vrot.lane.b32.xlu0 %v3690, 96
        %v3804 = vpop.permute.xlu0 %3803
        %3805 = vrot.lane.b32.xlu0 %v3695, 96
        %v3806 = vpop.permute.xlu0 %3805
        %3807 = vrot.lane.b32.xlu0 %v3698, 96
        %v3808 = vpop.permute.xlu0 %3807
        %3809 = vrot.lane.b32.xlu0 %v3703, 96
        %v3810 = vpop.permute.xlu0 %3809
        %3811 = vrot.lane.b32.xlu0 %v3706, 96
        %v3812 = vpop.permute.xlu0 %3811
        %v3845 = vadd.f32 %v3575, %v3750
        %v3846 = vadd.f32 %v3578, %v3752
        %v3847 = vadd.f32 %v3583, %v3754
        %v3848 = vadd.f32 %v3586, %v3756
        %v3849 = vadd.f32 %v3591, %v3758
        %v3850 = vadd.f32 %v3594, %v3760
        %v3851 = vadd.f32 %v3599, %v3762
        %v3852 = vadd.f32 %v3602, %v3764
        %v3853 = vadd.f32 %v3607, %v3766
        %v3854 = vadd.f32 %v3610, %v3768
        %v3855 = vadd.f32 %v3615, %v3770
        %v3856 = vadd.f32 %v3618, %v3772
        %v3857 = vadd.f32 %v3623, %v3774
        %v3858 = vadd.f32 %v3626, %v3776
        %v3859 = vadd.f32 %v3631, %v3778
        %v3860 = vadd.f32 %v3634, %v3780
        %v3861 = vadd.f32 %v3639, %v3782
        %v3862 = vadd.f32 %v3642, %v3784
        %v3863 = vadd.f32 %v3647, %v3786
        %v3864 = vadd.f32 %v3650, %v3788
        %v3865 = vadd.f32 %v3655, %v3790
        %v3866 = vadd.f32 %v3658, %v3792
        %v3867 = vadd.f32 %v3663, %v3794
        %v3868 = vadd.f32 %v3666, %v3796
        %v3869 = vadd.f32 %v3671, %v3798
        %v3870 = vadd.f32 %v3674, %v3800
        %v3871 = vadd.f32 %v3679, %v3802
        %v3872 = vadd.f32 %v3682, %v3804
        %v3873 = vadd.f32 %v3687, %v3806
        %v3874 = vadd.f32 %v3690, %v3808
        %v3875 = vadd.f32 %v3695, %v3810
        %v3876 = vadd.f32 %v3698, %v3812
        %3879 = vrot.lane.b32.xlu0 %v3591, 64
        %v3880 = vpop.permute.xlu0 %3879
        %3881 = vrot.lane.b32.xlu0 %v3594, 64
        %v3882 = vpop.permute.xlu0 %3881
        %3883 = vrot.lane.b32.xlu0 %v3599, 64
        %v3884 = vpop.permute.xlu0 %3883
        %3885 = vrot.lane.b32.xlu0 %v3602, 64
        %v3886 = vpop.permute.xlu0 %3885
        %3887 = vrot.lane.b32.xlu0 %v3607, 64
        %v3888 = vpop.permute.xlu0 %3887
        %3889 = vrot.lane.b32.xlu0 %v3610, 64
        %v3890 = vpop.permute.xlu0 %3889
        %3891 = vrot.lane.b32.xlu0 %v3615, 64
        %v3892 = vpop.permute.xlu0 %3891
        %3893 = vrot.lane.b32.xlu0 %v3618, 64
        %v3894 = vpop.permute.xlu0 %3893
        %3895 = vrot.lane.b32.xlu0 %v3623, 64
        %v3896 = vpop.permute.xlu0 %3895
        %3897 = vrot.lane.b32.xlu0 %v3626, 64
        %v3898 = vpop.permute.xlu0 %3897
        %3899 = vrot.lane.b32.xlu0 %v3631, 64
        %v3900 = vpop.permute.xlu0 %3899
        %3901 = vrot.lane.b32.xlu0 %v3634, 64
        %v3902 = vpop.permute.xlu0 %3901
        %3903 = vrot.lane.b32.xlu0 %v3639, 64
        %v3904 = vpop.permute.xlu0 %3903
        %3905 = vrot.lane.b32.xlu0 %v3642, 64
        %v3906 = vpop.permute.xlu0 %3905
        %3907 = vrot.lane.b32.xlu0 %v3647, 64
        %v3908 = vpop.permute.xlu0 %3907
        %3909 = vrot.lane.b32.xlu0 %v3650, 64
        %v3910 = vpop.permute.xlu0 %3909
        %3911 = vrot.lane.b32.xlu0 %v3655, 64
        %v3912 = vpop.permute.xlu0 %3911
        %3913 = vrot.lane.b32.xlu0 %v3658, 64
        %v3914 = vpop.permute.xlu0 %3913
        %3915 = vrot.lane.b32.xlu0 %v3663, 64
        %v3916 = vpop.permute.xlu0 %3915
        %3917 = vrot.lane.b32.xlu0 %v3666, 64
        %v3918 = vpop.permute.xlu0 %3917
        %3919 = vrot.lane.b32.xlu0 %v3671, 64
        %v3920 = vpop.permute.xlu0 %3919
        %3921 = vrot.lane.b32.xlu0 %v3674, 64
        %v3922 = vpop.permute.xlu0 %3921
        %3923 = vrot.lane.b32.xlu0 %v3679, 64
        %v3924 = vpop.permute.xlu0 %3923
        %3925 = vrot.lane.b32.xlu0 %v3682, 64
        %v3926 = vpop.permute.xlu0 %3925
        %3927 = vrot.lane.b32.xlu0 %v3687, 64
        %v3928 = vpop.permute.xlu0 %3927
        %3929 = vrot.lane.b32.xlu0 %v3690, 64
        %v3930 = vpop.permute.xlu0 %3929
        %3931 = vrot.lane.b32.xlu0 %v3695, 64
        %v3932 = vpop.permute.xlu0 %3931
        %3933 = vrot.lane.b32.xlu0 %v3698, 64
        %v3934 = vpop.permute.xlu0 %3933
        %3935 = vrot.lane.b32.xlu0 %v3703, 64
        %v3936 = vpop.permute.xlu0 %3935
        %3937 = vrot.lane.b32.xlu0 %v3706, 64
        %v3938 = vpop.permute.xlu0 %3937
        %3939 = vrot.lane.b32.xlu0 %v3711, 64
        %v3940 = vpop.permute.xlu0 %3939
        %3941 = vrot.lane.b32.xlu0 %v3714, 64
        %v3942 = vpop.permute.xlu0 %3941
        %v3975 = vadd.f32 %v3845, %v3880
        %v3976 = vadd.f32 %v3846, %v3882
        %v3977 = vadd.f32 %v3847, %v3884
        %v3978 = vadd.f32 %v3848, %v3886
        %v3979 = vadd.f32 %v3849, %v3888
        %v3980 = vadd.f32 %v3850, %v3890
        %v3981 = vadd.f32 %v3851, %v3892
        %v3982 = vadd.f32 %v3852, %v3894
        %v3983 = vadd.f32 %v3853, %v3896
        %v3984 = vadd.f32 %v3854, %v3898
        %v3985 = vadd.f32 %v3855, %v3900
        %v3986 = vadd.f32 %v3856, %v3902
        %v3987 = vadd.f32 %v3857, %v3904
        %v3988 = vadd.f32 %v3858, %v3906
        %v3989 = vadd.f32 %v3859, %v3908
        %v3990 = vadd.f32 %v3860, %v3910
        %v3991 = vadd.f32 %v3861, %v3912
        %v3992 = vadd.f32 %v3862, %v3914
        %v3993 = vadd.f32 %v3863, %v3916
        %v3994 = vadd.f32 %v3864, %v3918
        %v3995 = vadd.f32 %v3865, %v3920
        %v3996 = vadd.f32 %v3866, %v3922
        %v3997 = vadd.f32 %v3867, %v3924
        %v3998 = vadd.f32 %v3868, %v3926
        %v3999 = vadd.f32 %v3869, %v3928
        %v4000 = vadd.f32 %v3870, %v3930
        %v4001 = vadd.f32 %v3871, %v3932
        %v4002 = vadd.f32 %v3872, %v3934
        %v4003 = vadd.f32 %v3873, %v3936
        %v4004 = vadd.f32 %v3874, %v3938
        %v4005 = vadd.f32 %v3875, %v3940
        %v4006 = vadd.f32 %v3876, %v3942
        %v4007 = vld [vmem:[%s8] sm:$0x1]
        %v4009 = vlaneseq
        %v4010 = vshrl.u32 %v4009, 7
        %v4011 = vsub.s32 0, %v4010
        %v4012 = vrot.slane %v4007, %v4011
        %v4014 = vadd.f32 %v3975, %v4012
        %v4015 = vadd.f32 %v3976, %v4012
        %v4016 = vadd.f32 %v3977, %v4012
        %v4017 = vadd.f32 %v3978, %v4012
        %v4018 = vadd.f32 %v3979, %v4012
        %v4019 = vadd.f32 %v3980, %v4012
        %v4020 = vadd.f32 %v3981, %v4012
        %v4021 = vadd.f32 %v3982, %v4012
        %v4022 = vadd.f32 %v3983, %v4012
        %v4023 = vadd.f32 %v3984, %v4012
        %v4024 = vadd.f32 %v3985, %v4012
        %v4025 = vadd.f32 %v3986, %v4012
        %v4026 = vadd.f32 %v3987, %v4012
        %v4027 = vadd.f32 %v3988, %v4012
        %v4028 = vadd.f32 %v3989, %v4012
        %v4029 = vadd.f32 %v3990, %v4012
        %v4030 = vadd.f32 %v3991, %v4012
        %v4031 = vadd.f32 %v3992, %v4012
        %v4032 = vadd.f32 %v3993, %v4012
        %v4033 = vadd.f32 %v3994, %v4012
        %v4034 = vadd.f32 %v3995, %v4012
        %v4035 = vadd.f32 %v3996, %v4012
        %v4036 = vadd.f32 %v3997, %v4012
        %v4037 = vadd.f32 %v3998, %v4012
        %v4038 = vadd.f32 %v3999, %v4012
        %v4039 = vadd.f32 %v4000, %v4012
        %v4040 = vadd.f32 %v4001, %v4012
        %v4041 = vadd.f32 %v4002, %v4012
        %v4042 = vadd.f32 %v4003, %v4012
        %v4043 = vadd.f32 %v4004, %v4012
        %v4044 = vadd.f32 %v4005, %v4012
        %v4045 = vadd.f32 %v4006, %v4012
        %v4046 = vmax.f32 %v4014, 0.0
        %v4047 = vmax.f32 %v4015, 0.0
        %v4048 = vmax.f32 %v4016, 0.0
        %v4049 = vmax.f32 %v4017, 0.0
        %v4050 = vmax.f32 %v4018, 0.0
        %v4051 = vmax.f32 %v4019, 0.0
        %v4052 = vmax.f32 %v4020, 0.0
        %v4053 = vmax.f32 %v4021, 0.0
        %v4054 = vmax.f32 %v4022, 0.0
        %v4055 = vmax.f32 %v4023, 0.0
        %v4056 = vmax.f32 %v4024, 0.0
        %v4057 = vmax.f32 %v4025, 0.0
        %v4058 = vmax.f32 %v4026, 0.0
        %v4059 = vmax.f32 %v4027, 0.0
        %v4060 = vmax.f32 %v4028, 0.0
        %v4061 = vmax.f32 %v4029, 0.0
        %v4062 = vmax.f32 %v4030, 0.0
        %v4063 = vmax.f32 %v4031, 0.0
        %v4064 = vmax.f32 %v4032, 0.0
        %v4065 = vmax.f32 %v4033, 0.0
        %v4066 = vmax.f32 %v4034, 0.0
        %v4067 = vmax.f32 %v4035, 0.0
        %v4068 = vmax.f32 %v4036, 0.0
        %v4069 = vmax.f32 %v4037, 0.0
        %v4070 = vmax.f32 %v4038, 0.0
        %v4071 = vmax.f32 %v4039, 0.0
        %v4072 = vmax.f32 %v4040, 0.0
        %v4073 = vmax.f32 %v4041, 0.0
        %v4074 = vmax.f32 %v4042, 0.0
        %v4075 = vmax.f32 %v4043, 0.0
        %v4076 = vmax.f32 %v4044, 0.0
        %v4077 = vmax.f32 %v4045, 0.0
        %v4078 = vpack.c.bf16 %v4047, %v4046
        %v4079 = vpack.c.bf16 %v4049, %v4048
        %v4080 = vpack.c.bf16 %v4051, %v4050
        %v4081 = vpack.c.bf16 %v4053, %v4052
        %v4082 = vpack.c.bf16 %v4055, %v4054
        %v4083 = vpack.c.bf16 %v4057, %v4056
        %v4084 = vpack.c.bf16 %v4059, %v4058
        %v4085 = vpack.c.bf16 %v4061, %v4060
        %v4086 = vpack.c.bf16 %v4063, %v4062
        %v4087 = vpack.c.bf16 %v4065, %v4064
        %v4088 = vpack.c.bf16 %v4067, %v4066
        %v4089 = vpack.c.bf16 %v4069, %v4068
        %v4090 = vpack.c.bf16 %v4071, %v4070
        %v4091 = vpack.c.bf16 %v4073, %v4072
        %v4092 = vpack.c.bf16 %v4075, %v4074
        %v4093 = vpack.c.bf16 %v4077, %v4076
        %4110 = vrot.lane.b32.xlu0 %v4078, 32
        %v4111 = vpop.permute.xlu0 %4110
        %4112 = vrot.lane.b32.xlu0 %v4079, 32
        %v4113 = vpop.permute.xlu0 %4112
        %4114 = vrot.lane.b32.xlu0 %v4080, 32
        %v4115 = vpop.permute.xlu0 %4114
        %4116 = vrot.lane.b32.xlu0 %v4081, 32
        %v4117 = vpop.permute.xlu0 %4116
        %4118 = vrot.lane.b32.xlu0 %v4082, 32
        %v4119 = vpop.permute.xlu0 %4118
        %4120 = vrot.lane.b32.xlu0 %v4083, 32
        %v4121 = vpop.permute.xlu0 %4120
        %4122 = vrot.lane.b32.xlu0 %v4084, 32
        %v4123 = vpop.permute.xlu0 %4122
        %4124 = vrot.lane.b32.xlu0 %v4085, 32
        %v4125 = vpop.permute.xlu0 %4124
        %4126 = vrot.lane.b32.xlu0 %v4086, 32
        %v4127 = vpop.permute.xlu0 %4126
        %4128 = vrot.lane.b32.xlu0 %v4087, 32
        %v4129 = vpop.permute.xlu0 %4128
        %4130 = vrot.lane.b32.xlu0 %v4088, 32
        %v4131 = vpop.permute.xlu0 %4130
        %4132 = vrot.lane.b32.xlu0 %v4089, 32
        %v4133 = vpop.permute.xlu0 %4132
        %4134 = vrot.lane.b32.xlu0 %v4090, 32
        %v4135 = vpop.permute.xlu0 %4134
        %4136 = vrot.lane.b32.xlu0 %v4091, 32
        %v4137 = vpop.permute.xlu0 %4136
        %4138 = vrot.lane.b32.xlu0 %v4092, 32
        %v4139 = vpop.permute.xlu0 %4138
        %4140 = vrot.lane.b32.xlu0 %v4093, 32
        %v4141 = vpop.permute.xlu0 %4140
        %4158 = vst.msk [vmem:[%s694] sm:$0xff] %vm695, %v4111
        %4159 = vst.msk [vmem:[%s694 + $0x8] sm:$0xff] %vm695, %v4113
        %4160 = vst.msk [vmem:[%s694 + $0x10] sm:$0xff] %vm695, %v4115
        %4161 = vst.msk [vmem:[%s694 + $0x18] sm:$0xff] %vm695, %v4117
        %4162 = vst.msk [vmem:[%s694 + $0x20] sm:$0xff] %vm695, %v4119
        %4163 = vst.msk [vmem:[%s694 + $0x28] sm:$0xff] %vm695, %v4121
        %4164 = vst.msk [vmem:[%s694 + $0x30] sm:$0xff] %vm695, %v4123
        %4165 = vst.msk [vmem:[%s694 + $0x38] sm:$0xff] %vm695, %v4125
        %4166 = vst.msk [vmem:[%s694 + $0x40] sm:$0xff] %vm695, %v4127
        %4167 = vst.msk [vmem:[%s694 + $0x48] sm:$0xff] %vm695, %v4129
        %4168 = vst.msk [vmem:[%s694 + $0x50] sm:$0xff] %vm695, %v4131
        %4169 = vst.msk [vmem:[%s694 + $0x58] sm:$0xff] %vm695, %v4133
        %4170 = vst.msk [vmem:[%s694 + $0x60] sm:$0xff] %vm695, %v4135
        %4171 = vst.msk [vmem:[%s694 + $0x68] sm:$0xff] %vm695, %v4137
        %4172 = vst.msk [vmem:[%s694 + $0x70] sm:$0xff] %vm695, %v4139
        %4173 = vst.msk [vmem:[%s694 + $0x78] sm:$0xff] %vm695, %v4141
        %v4206 = vrot.slane %v4046, 7
        %v4207 = vrot.slane %v4047, 7
        %v4208 = vsel %vm776, %v4206, %v4207
        %v4209 = vrot.slane %v4048, 7
        %v4210 = vrot.slane %v4049, 7
        %v4211 = vsel %vm776, %v4209, %v4210
        %v4212 = vrot.slane %v4050, 7
        %v4213 = vrot.slane %v4051, 7
        %v4214 = vsel %vm776, %v4212, %v4213
        %v4215 = vrot.slane %v4052, 7
        %v4216 = vrot.slane %v4053, 7
        %v4217 = vsel %vm776, %v4215, %v4216
        %v4218 = vrot.slane %v4054, 7
        %v4219 = vrot.slane %v4055, 7
        %v4220 = vsel %vm776, %v4218, %v4219
        %v4221 = vrot.slane %v4056, 7
        %v4222 = vrot.slane %v4057, 7
        %v4223 = vsel %vm776, %v4221, %v4222
        %v4224 = vrot.slane %v4058, 7
        %v4225 = vrot.slane %v4059, 7
        %v4226 = vsel %vm776, %v4224, %v4225
        %v4227 = vrot.slane %v4060, 7
        %v4228 = vrot.slane %v4061, 7
        %v4229 = vsel %vm776, %v4227, %v4228
        %v4230 = vrot.slane %v4062, 7
        %v4231 = vrot.slane %v4063, 7
        %v4232 = vsel %vm776, %v4230, %v4231
        %v4233 = vrot.slane %v4064, 7
        %v4234 = vrot.slane %v4065, 7
        %v4235 = vsel %vm776, %v4233, %v4234
        %v4236 = vrot.slane %v4066, 7
        %v4237 = vrot.slane %v4067, 7
        %v4238 = vsel %vm776, %v4236, %v4237
        %v4239 = vrot.slane %v4068, 7
        %v4240 = vrot.slane %v4069, 7
        %v4241 = vsel %vm776, %v4239, %v4240
        %v4242 = vrot.slane %v4070, 7
        %v4243 = vrot.slane %v4071, 7
        %v4244 = vsel %vm776, %v4242, %v4243
        %v4245 = vrot.slane %v4072, 7
        %v4246 = vrot.slane %v4073, 7
        %v4247 = vsel %vm776, %v4245, %v4246
        %v4248 = vrot.slane %v4074, 7
        %v4249 = vrot.slane %v4075, 7
        %v4250 = vsel %vm776, %v4248, %v4249
        %v4251 = vrot.slane %v4076, 7
        %v4252 = vrot.slane %v4077, 7
        %v4253 = vsel %vm776, %v4251, %v4252
        %v4286 = vsel %vm776, 0.0, %v4206
        %v4287 = vsel %vm776, 0.0, %v4209
        %v4288 = vsel %vm776, 0.0, %v4212
        %v4289 = vsel %vm776, 0.0, %v4215
        %v4290 = vsel %vm776, 0.0, %v4218
        %v4291 = vsel %vm776, 0.0, %v4221
        %v4292 = vsel %vm776, 0.0, %v4224
        %v4293 = vsel %vm776, 0.0, %v4227
        %v4294 = vsel %vm776, 0.0, %v4230
        %v4295 = vsel %vm776, 0.0, %v4233
        %v4296 = vsel %vm776, 0.0, %v4236
        %v4297 = vsel %vm776, 0.0, %v4239
        %v4298 = vsel %vm776, 0.0, %v4242
        %v4299 = vsel %vm776, 0.0, %v4245
        %v4300 = vsel %vm776, 0.0, %v4248
        %v4301 = vsel %vm776, 0.0, %v4251
        %v4302 = vrot.slane %v4046, 1
        %v4303 = vrot.slane %v4047, 1
        %v4304 = vsel %vm873, %v4302, %v4303
        %v4305 = vrot.slane %v4048, 1
        %v4306 = vrot.slane %v4049, 1
        %v4307 = vsel %vm873, %v4305, %v4306
        %v4308 = vrot.slane %v4050, 1
        %v4309 = vrot.slane %v4051, 1
        %v4310 = vsel %vm873, %v4308, %v4309
        %v4311 = vrot.slane %v4052, 1
        %v4312 = vrot.slane %v4053, 1
        %v4313 = vsel %vm873, %v4311, %v4312
        %v4314 = vrot.slane %v4054, 1
        %v4315 = vrot.slane %v4055, 1
        %v4316 = vsel %vm873, %v4314, %v4315
        %v4317 = vrot.slane %v4056, 1
        %v4318 = vrot.slane %v4057, 1
        %v4319 = vsel %vm873, %v4317, %v4318
        %v4320 = vrot.slane %v4058, 1
        %v4321 = vrot.slane %v4059, 1
        %v4322 = vsel %vm873, %v4320, %v4321
        %v4323 = vrot.slane %v4060, 1
        %v4324 = vrot.slane %v4061, 1
        %v4325 = vsel %vm873, %v4323, %v4324
        %v4326 = vrot.slane %v4062, 1
        %v4327 = vrot.slane %v4063, 1
        %v4328 = vsel %vm873, %v4326, %v4327
        %v4329 = vrot.slane %v4064, 1
        %v4330 = vrot.slane %v4065, 1
        %v4331 = vsel %vm873, %v4329, %v4330
        %v4332 = vrot.slane %v4066, 1
        %v4333 = vrot.slane %v4067, 1
        %v4334 = vsel %vm873, %v4332, %v4333
        %v4335 = vrot.slane %v4068, 1
        %v4336 = vrot.slane %v4069, 1
        %v4337 = vsel %vm873, %v4335, %v4336
        %v4338 = vrot.slane %v4070, 1
        %v4339 = vrot.slane %v4071, 1
        %v4340 = vsel %vm873, %v4338, %v4339
        %v4341 = vrot.slane %v4072, 1
        %v4342 = vrot.slane %v4073, 1
        %v4343 = vsel %vm873, %v4341, %v4342
        %v4344 = vrot.slane %v4074, 1
        %v4345 = vrot.slane %v4075, 1
        %v4346 = vsel %vm873, %v4344, %v4345
        %v4347 = vrot.slane %v4076, 1
        %v4348 = vrot.slane %v4077, 1
        %v4349 = vsel %vm873, %v4347, %v4348
        %v4382 = vsel %vm873, %v4303, 0.0
        %v4383 = vsel %vm873, %v4306, 0.0
        %v4384 = vsel %vm873, %v4309, 0.0
        %v4385 = vsel %vm873, %v4312, 0.0
        %v4386 = vsel %vm873, %v4315, 0.0
        %v4387 = vsel %vm873, %v4318, 0.0
        %v4388 = vsel %vm873, %v4321, 0.0
        %v4389 = vsel %vm873, %v4324, 0.0
        %v4390 = vsel %vm873, %v4327, 0.0
        %v4391 = vsel %vm873, %v4330, 0.0
        %v4392 = vsel %vm873, %v4333, 0.0
        %v4393 = vsel %vm873, %v4336, 0.0
        %v4394 = vsel %vm873, %v4339, 0.0
        %v4395 = vsel %vm873, %v4342, 0.0
        %v4396 = vsel %vm873, %v4345, 0.0
        %v4397 = vsel %vm873, %v4348, 0.0
        %v4398 = vpack.c.bf16 %v4208, %v4286
        %v4399 = vpack.c.bf16 %v4211, %v4287
        %v4400 = vpack.c.bf16 %v4214, %v4288
        %v4401 = vpack.c.bf16 %v4217, %v4289
        %v4402 = vpack.c.bf16 %v4220, %v4290
        %v4403 = vpack.c.bf16 %v4223, %v4291
        %v4404 = vpack.c.bf16 %v4226, %v4292
        %v4405 = vpack.c.bf16 %v4229, %v4293
        %v4406 = vpack.c.bf16 %v4232, %v4294
        %v4407 = vpack.c.bf16 %v4235, %v4295
        %v4408 = vpack.c.bf16 %v4238, %v4296
        %v4409 = vpack.c.bf16 %v4241, %v4297
        %v4410 = vpack.c.bf16 %v4244, %v4298
        %v4411 = vpack.c.bf16 %v4247, %v4299
        %v4412 = vpack.c.bf16 %v4250, %v4300
        %v4413 = vpack.c.bf16 %v4253, %v4301
        %4414 = vst.msk [vmem:[%s694] sm:$0xff] %vm986, %v4398
        %4415 = vst.msk [vmem:[%s694 + $0x8] sm:$0xff] %vm986, %v4399
        %4416 = vst.msk [vmem:[%s694 + $0x10] sm:$0xff] %vm986, %v4400
        %4417 = vst.msk [vmem:[%s694 + $0x18] sm:$0xff] %vm986, %v4401
        %4418 = vst.msk [vmem:[%s694 + $0x20] sm:$0xff] %vm986, %v4402
        %4419 = vst.msk [vmem:[%s694 + $0x28] sm:$0xff] %vm986, %v4403
        %4420 = vst.msk [vmem:[%s694 + $0x30] sm:$0xff] %vm986, %v4404
        %4421 = vst.msk [vmem:[%s694 + $0x38] sm:$0xff] %vm986, %v4405
        %4422 = vst.msk [vmem:[%s694 + $0x40] sm:$0xff] %vm986, %v4406
        %4423 = vst.msk [vmem:[%s694 + $0x48] sm:$0xff] %vm986, %v4407
        %4424 = vst.msk [vmem:[%s694 + $0x50] sm:$0xff] %vm986, %v4408
        %4425 = vst.msk [vmem:[%s694 + $0x58] sm:$0xff] %vm986, %v4409
        %4426 = vst.msk [vmem:[%s694 + $0x60] sm:$0xff] %vm986, %v4410
        %4427 = vst.msk [vmem:[%s694 + $0x68] sm:$0xff] %vm986, %v4411
        %4428 = vst.msk [vmem:[%s694 + $0x70] sm:$0xff] %vm986, %v4412
        %4429 = vst.msk [vmem:[%s694 + $0x78] sm:$0xff] %vm986, %v4413
        %v4430 = vpack.c.bf16 %v4382, %v4304
        %v4431 = vpack.c.bf16 %v4383, %v4307
        %v4432 = vpack.c.bf16 %v4384, %v4310
        %v4433 = vpack.c.bf16 %v4385, %v4313
        %v4434 = vpack.c.bf16 %v4386, %v4316
        %v4435 = vpack.c.bf16 %v4387, %v4319
        %v4436 = vpack.c.bf16 %v4388, %v4322
        %v4437 = vpack.c.bf16 %v4389, %v4325
        %v4438 = vpack.c.bf16 %v4390, %v4328
        %v4439 = vpack.c.bf16 %v4391, %v4331
        %v4440 = vpack.c.bf16 %v4392, %v4334
        %v4441 = vpack.c.bf16 %v4393, %v4337
        %v4442 = vpack.c.bf16 %v4394, %v4340
        %v4443 = vpack.c.bf16 %v4395, %v4343
        %v4444 = vpack.c.bf16 %v4396, %v4346
        %v4445 = vpack.c.bf16 %v4397, %v4349
        %4462 = vrot.lane.b32.xlu0 %v4430, 64
        %v4463 = vpop.permute.xlu0 %4462
        %4464 = vrot.lane.b32.xlu0 %v4431, 64
        %v4465 = vpop.permute.xlu0 %4464
        %4466 = vrot.lane.b32.xlu0 %v4432, 64
        %v4467 = vpop.permute.xlu0 %4466
        %4468 = vrot.lane.b32.xlu0 %v4433, 64
        %v4469 = vpop.permute.xlu0 %4468
        %4470 = vrot.lane.b32.xlu0 %v4434, 64
        %v4471 = vpop.permute.xlu0 %4470
        %4472 = vrot.lane.b32.xlu0 %v4435, 64
        %v4473 = vpop.permute.xlu0 %4472
        %4474 = vrot.lane.b32.xlu0 %v4436, 64
        %v4475 = vpop.permute.xlu0 %4474
        %4476 = vrot.lane.b32.xlu0 %v4437, 64
        %v4477 = vpop.permute.xlu0 %4476
        %4478 = vrot.lane.b32.xlu0 %v4438, 64
        %v4479 = vpop.permute.xlu0 %4478
        %4480 = vrot.lane.b32.xlu0 %v4439, 64
        %v4481 = vpop.permute.xlu0 %4480
        %4482 = vrot.lane.b32.xlu0 %v4440, 64
        %v4483 = vpop.permute.xlu0 %4482
        %4484 = vrot.lane.b32.xlu0 %v4441, 64
        %v4485 = vpop.permute.xlu0 %4484
        %4486 = vrot.lane.b32.xlu0 %v4442, 64
        %v4487 = vpop.permute.xlu0 %4486
        %4488 = vrot.lane.b32.xlu0 %v4443, 64
        %v4489 = vpop.permute.xlu0 %4488
        %4490 = vrot.lane.b32.xlu0 %v4444, 64
        %v4491 = vpop.permute.xlu0 %4490
        %4492 = vrot.lane.b32.xlu0 %v4445, 64
        %v4493 = vpop.permute.xlu0 %4492
        %4510 = vst.msk [vmem:[%s694] sm:$0xff] %vm1083, %v4463
        %4511 = vst.msk [vmem:[%s694 + $0x8] sm:$0xff] %vm1083, %v4465
        %4512 = vst.msk [vmem:[%s694 + $0x10] sm:$0xff] %vm1083, %v4467
        %4513 = vst.msk [vmem:[%s694 + $0x18] sm:$0xff] %vm1083, %v4469
        %4514 = vst.msk [vmem:[%s694 + $0x20] sm:$0xff] %vm1083, %v4471
        %4515 = vst.msk [vmem:[%s694 + $0x28] sm:$0xff] %vm1083, %v4473
        %4516 = vst.msk [vmem:[%s694 + $0x30] sm:$0xff] %vm1083, %v4475
        %4517 = vst.msk [vmem:[%s694 + $0x38] sm:$0xff] %vm1083, %v4477
        %4518 = vst.msk [vmem:[%s694 + $0x40] sm:$0xff] %vm1083, %v4479
        %4519 = vst.msk [vmem:[%s694 + $0x48] sm:$0xff] %vm1083, %v4481
        %4520 = vst.msk [vmem:[%s694 + $0x50] sm:$0xff] %vm1083, %v4483
        %4521 = vst.msk [vmem:[%s694 + $0x58] sm:$0xff] %vm1083, %v4485
        %4522 = vst.msk [vmem:[%s694 + $0x60] sm:$0xff] %vm1083, %v4487
        %4523 = vst.msk [vmem:[%s694 + $0x68] sm:$0xff] %vm1083, %v4489
        %4524 = vst.msk [vmem:[%s694 + $0x70] sm:$0xff] %vm1083, %v4491
        %4525 = vst.msk [vmem:[%s694 + $0x78] sm:$0xff] %vm1083, %v4493
        %v4526 = vld [vmem:[#allocation2] sm:$0xff]
        %v4527 = vld [vmem:[#allocation2 + $0x8] sm:$0xff]
        %v4528 = vld [vmem:[#allocation2 + $0x10] sm:$0xff]
        %v4529 = vld [vmem:[#allocation2 + $0x18] sm:$0xff]
        %v4530 = vld [vmem:[#allocation2 + $0x20] sm:$0xff]
        %v4531 = vld [vmem:[#allocation2 + $0x28] sm:$0xff]
        %v4532 = vld [vmem:[#allocation2 + $0x30] sm:$0xff]
        %v4533 = vld [vmem:[#allocation2 + $0x38] sm:$0xff]
        %v4534 = vld [vmem:[#allocation2 + $0x40] sm:$0xff]
        %v4535 = vld [vmem:[#allocation2 + $0x48] sm:$0xff]
        %v4536 = vld [vmem:[#allocation2 + $0x50] sm:$0xff]
        %v4537 = vld [vmem:[#allocation2 + $0x58] sm:$0xff]
        %v4538 = vld [vmem:[#allocation2 + $0x60] sm:$0xff]
        %v4539 = vld [vmem:[#allocation2 + $0x68] sm:$0xff]
        %v4540 = vld [vmem:[#allocation2 + $0x70] sm:$0xff]
        %v4541 = vld [vmem:[#allocation2 + $0x78] sm:$0xff]
        %v4542 = vld [vmem:[#allocation2 + $0x80] sm:$0xff]
        %v4543 = vld [vmem:[#allocation2 + $0x88] sm:$0xff]
        %v4544 = vld [vmem:[#allocation14] sm:$0xf]
        %v4545 = vld [vmem:[#allocation14 + $0x4] sm:$0xf]
        %v4546 = vld [vmem:[#allocation14 + $0x8] sm:$0xf]
        %v4547 = vld [vmem:[#allocation14 + $0xc] sm:$0xf]
        %v4548 = vld [vmem:[#allocation14 + $0x10] sm:$0xf]
        %v4549 = vld [vmem:[#allocation14 + $0x14] sm:$0xf]
        %v4550 = vld [vmem:[#allocation14 + $0x18] sm:$0xf]
        %v4551 = vld [vmem:[#allocation14 + $0x1c] sm:$0xf]
        %v4552 = vld [vmem:[#allocation14 + $0x20] sm:$0xf]
        %v4553 = vld [vmem:[#allocation14 + $0x24] sm:$0xf]
        %v4554 = vld [vmem:[#allocation14 + $0x28] sm:$0xf]
        %v4555 = vld [vmem:[#allocation14 + $0x2c] sm:$0xf]
        %v4568 = vunpack.c.l.b16 %v4544
        %v4569 = vunpack.c.l.b16 %v4545
        %v4570 = vunpack.c.l.b16 %v4546
        %v4571 = vunpack.c.l.b16 %v4547
        %v4572 = vunpack.c.l.b16 %v4548
        %v4573 = vunpack.c.l.b16 %v4549
        %v4574 = vunpack.c.l.b16 %v4550
        %v4575 = vunpack.c.l.b16 %v4551
        %v4576 = vunpack.c.l.b16 %v4552
        %v4577 = vunpack.c.l.b16 %v4553
        %v4578 = vunpack.c.l.b16 %v4554
        %v4579 = vunpack.c.l.b16 %v4555
        %v4580 = vpack.c.b16 %v4569, %v4568
        %v4581 = vpack.c.b16 %v4571, %v4570
        %v4582 = vpack.c.b16 %v4573, %v4572
        %v4583 = vpack.c.b16 %v4575, %v4574
        %v4584 = vpack.c.b16 %v4577, %v4576
        %v4585 = vpack.c.b16 %v4579, %v4578
        %v4593 = vsel %vm1102, %v4526, 0
        %v4596 = vsel %vm1102, %v4527, 0
        %v4599 = vsel %vm1102, %v4528, 0
        %v4602 = vsel %vm1102, %v4529, 0
        %v4605 = vsel %vm1102, %v4530, 0
        %v4608 = vsel %vm1102, %v4531, 0
        %v4611 = vsel %vm1102, %v4532, 0
        %v4614 = vsel %vm1102, %v4533, 0
        %v4617 = vsel %vm1102, %v4534, 0
        %v4620 = vsel %vm1102, %v4535, 0
        %v4623 = vsel %vm1102, %v4536, 0
        %v4626 = vsel %vm1102, %v4537, 0
        %v4629 = vsel %vm1102, %v4538, 0
        %v4632 = vsel %vm1102, %v4539, 0
        %v4635 = vsel %vm1102, %v4540, 0
        %v4638 = vsel %vm1102, %v4541, 0
        %v4641 = vsel %vm1102, %v4542, 0
        %v4644 = vsel %vm1102, %v4543, 0
        %4646 = vmatprep.subr.bf16.mxu0 0
        %4647 = vmatpush1.bf16.msra.mxu0 %v4580
        %4648 = vmatprep.subr.bf16.mxu0 0
        %4649 = vmatpush1.bf16.msra.mxu0 %v4581
        %4650 = vmatprep.subr.bf16.mxu0 0
        %4651 = vmatpush1.bf16.msra.mxu0 %v4582
        %4652 = vmatprep.subr.bf16.mxu0 0
        %4653 = vmatpush1.bf16.msra.mxu0 %v4583
        %4654 = vmatprep.subr.bf16.mxu0 0
        %4655 = vmatpush1.bf16.msra.mxu0 %v4584
        %4656 = vmatprep.subr.bf16.mxu0 0
        %4657 = vmatpush1.bf16.msra.mxu0 %v4585
        %4658 = vmatprep.subr.bf16.mxu0 0
        %4659 = vmatpush1.bf16.msra.mxu0 0
        %4660 = vmatprep.subr.bf16.mxu0 0
        %4661 = vmatpush1.bf16.msra.mxu0 0
        %4662 = vmatprep.subr.bf16.mxu0 0
        %4663 = vmatpush1.bf16.msra.mxu0 0
        %4664 = vmatprep.subr.bf16.mxu0 0
        %4665 = vmatpush1.bf16.msra.mxu0 0
        %4666 = vmatprep.subr.bf16.mxu0 0
        %4667 = vmatpush1.bf16.msra.mxu0 0
        %4668 = vmatprep.subr.bf16.mxu0 0
        %4669 = vmatpush1.bf16.msra.mxu0 0
        %4670 = vmatprep.subr.bf16.mxu0 0
        %4671 = vmatpush1.bf16.msra.mxu0 0
        %4672 = vmatprep.subr.bf16.mxu0 0
        %4673 = vmatpush1.bf16.msra.mxu0 0
        %4674 = vmatprep.subr.bf16.mxu0 0
        %4675 = vmatpush1.bf16.msra.mxu0 0
        %4676 = vmatprep.subr.bf16.mxu0 0
        %4677 = vmatpush1.bf16.msra.mxu0 0
        %4678 = vmatprep.mubr.bf16.mxu0 0
        %4679 = vmatmul.mubr.bf16.gmra.mrb[0].mxu0 %v4593
        %v4680 = vpop.f32.mrb[0].mxu0
        %v4681 = vadd.f32 0.0, %v4680
        %v4682 = vpop.f32.mrb[0].mxu0
        %v4683 = vpop.f32.mrb[0].mxu0
        %v4684 = vadd.f32 0.0, %v4683
        %v4685 = vpop.f32.mrb[0].mxu0
        %4686 = vmatprep.mubr.bf16.mxu0 0
        %4687 = vmatmul.mubr.bf16.gmra.mrb[0].mxu0 %v4596
        %v4688 = vpop.f32.mrb[0].mxu0
        %v4689 = vadd.f32 0.0, %v4688
        %v4690 = vpop.f32.mrb[0].mxu0
        %v4691 = vpop.f32.mrb[0].mxu0
        %v4692 = vadd.f32 0.0, %v4691
        %v4693 = vpop.f32.mrb[0].mxu0
        %4694 = vmatprep.mubr.bf16.mxu0 0
        %4695 = vmatmul.mubr.bf16.gmra.mrb[0].mxu0 %v4599
        %v4696 = vpop.f32.mrb[0].mxu0
        %v4697 = vadd.f32 0.0, %v4696
        %v4698 = vpop.f32.mrb[0].mxu0
        %v4699 = vpop.f32.mrb[0].mxu0
        %v4700 = vadd.f32 0.0, %v4699
        %v4701 = vpop.f32.mrb[0].mxu0
        %4702 = vmatprep.mubr.bf16.mxu0 0
        %4703 = vmatmul.mubr.bf16.gmra.mrb[0].mxu0 %v4602
        %v4704 = vpop.f32.mrb[0].mxu0
        %v4705 = vadd.f32 0.0, %v4704
        %v4706 = vpop.f32.mrb[0].mxu0
        %v4707 = vpop.f32.mrb[0].mxu0
        %v4708 = vadd.f32 0.0, %v4707
        %v4709 = vpop.f32.mrb[0].mxu0
        %4710 = vmatprep.mubr.bf16.mxu0 0
        %4711 = vmatmul.mubr.bf16.gmra.mrb[0].mxu0 %v4605
        %v4712 = vpop.f32.mrb[0].mxu0
        %v4713 = vadd.f32 0.0, %v4712
        %v4714 = vpop.f32.mrb[0].mxu0
        %v4715 = vpop.f32.mrb[0].mxu0
        %v4716 = vadd.f32 0.0, %v4715
        %v4717 = vpop.f32.mrb[0].mxu0
        %4718 = vmatprep.mubr.bf16.mxu0 0
        %4719 = vmatmul.mubr.bf16.gmra.mrb[0].mxu0 %v4608
        %v4720 = vpop.f32.mrb[0].mxu0
        %v4721 = vadd.f32 0.0, %v4720
        %v4722 = vpop.f32.mrb[0].mxu0
        %v4723 = vpop.f32.mrb[0].mxu0
        %v4724 = vadd.f32 0.0, %v4723
        %v4725 = vpop.f32.mrb[0].mxu0
        %4726 = vmatprep.mubr.bf16.mxu0 0
        %4727 = vmatmul.mubr.bf16.gmra.mrb[0].mxu0 %v4611
        %v4728 = vpop.f32.mrb[0].mxu0
        %v4729 = vadd.f32 0.0, %v4728
        %v4730 = vpop.f32.mrb[0].mxu0
        %v4731 = vpop.f32.mrb[0].mxu0
        %v4732 = vadd.f32 0.0, %v4731
        %v4733 = vpop.f32.mrb[0].mxu0
        %4734 = vmatprep.mubr.bf16.mxu0 0
        %4735 = vmatmul.mubr.bf16.gmra.mrb[0].mxu0 %v4614
        %v4736 = vpop.f32.mrb[0].mxu0
        %v4737 = vadd.f32 0.0, %v4736
        %v4738 = vpop.f32.mrb[0].mxu0
        %v4739 = vpop.f32.mrb[0].mxu0
        %v4740 = vadd.f32 0.0, %v4739
        %v4741 = vpop.f32.mrb[0].mxu0
        %4742 = vmatprep.mubr.bf16.mxu0 0
        %4743 = vmatmul.mubr.bf16.gmra.mrb[0].mxu0 %v4617
        %v4744 = vpop.f32.mrb[0].mxu0
        %v4745 = vadd.f32 0.0, %v4744
        %v4746 = vpop.f32.mrb[0].mxu0
        %v4747 = vpop.f32.mrb[0].mxu0
        %v4748 = vadd.f32 0.0, %v4747
        %v4749 = vpop.f32.mrb[0].mxu0
        %4750 = vmatprep.mubr.bf16.mxu0 0
        %4751 = vmatmul.mubr.bf16.gmra.mrb[0].mxu0 %v4620
        %v4752 = vpop.f32.mrb[0].mxu0
        %v4753 = vadd.f32 0.0, %v4752
        %v4754 = vpop.f32.mrb[0].mxu0
        %v4755 = vpop.f32.mrb[0].mxu0
        %v4756 = vadd.f32 0.0, %v4755
        %v4757 = vpop.f32.mrb[0].mxu0
        %4758 = vmatprep.mubr.bf16.mxu0 0
        %4759 = vmatmul.mubr.bf16.gmra.mrb[0].mxu0 %v4623
        %v4760 = vpop.f32.mrb[0].mxu0
        %v4761 = vadd.f32 0.0, %v4760
        %v4762 = vpop.f32.mrb[0].mxu0
        %v4763 = vpop.f32.mrb[0].mxu0
        %v4764 = vadd.f32 0.0, %v4763
        %v4765 = vpop.f32.mrb[0].mxu0
        %4766 = vmatprep.mubr.bf16.mxu0 0
        %4767 = vmatmul.mubr.bf16.gmra.mrb[0].mxu0 %v4626
        %v4768 = vpop.f32.mrb[0].mxu0
        %v4769 = vadd.f32 0.0, %v4768
        %v4770 = vpop.f32.mrb[0].mxu0
        %v4771 = vpop.f32.mrb[0].mxu0
        %v4772 = vadd.f32 0.0, %v4771
        %v4773 = vpop.f32.mrb[0].mxu0
        %4774 = vmatprep.mubr.bf16.mxu0 0
        %4775 = vmatmul.mubr.bf16.gmra.mrb[0].mxu0 %v4629
        %v4776 = vpop.f32.mrb[0].mxu0
        %v4777 = vadd.f32 0.0, %v4776
        %v4778 = vpop.f32.mrb[0].mxu0
        %v4779 = vpop.f32.mrb[0].mxu0
        %v4780 = vadd.f32 0.0, %v4779
        %v4781 = vpop.f32.mrb[0].mxu0
        %4782 = vmatprep.mubr.bf16.mxu0 0
        %4783 = vmatmul.mubr.bf16.gmra.mrb[0].mxu0 %v4632
        %v4784 = vpop.f32.mrb[0].mxu0
        %v4785 = vadd.f32 0.0, %v4784
        %v4786 = vpop.f32.mrb[0].mxu0
        %v4787 = vpop.f32.mrb[0].mxu0
        %v4788 = vadd.f32 0.0, %v4787
        %v4789 = vpop.f32.mrb[0].mxu0
        %4790 = vmatprep.mubr.bf16.mxu0 0
        %4791 = vmatmul.mubr.bf16.gmra.mrb[0].mxu0 %v4635
        %v4792 = vpop.f32.mrb[0].mxu0
        %v4793 = vadd.f32 0.0, %v4792
        %v4794 = vpop.f32.mrb[0].mxu0
        %v4795 = vpop.f32.mrb[0].mxu0
        %v4796 = vadd.f32 0.0, %v4795
        %v4797 = vpop.f32.mrb[0].mxu0
        %4798 = vmatprep.mubr.bf16.mxu0 0
        %4799 = vmatmul.mubr.bf16.gmra.mrb[0].mxu0 %v4638
        %v4800 = vpop.f32.mrb[0].mxu0
        %v4801 = vadd.f32 0.0, %v4800
        %v4802 = vpop.f32.mrb[0].mxu0
        %v4803 = vpop.f32.mrb[0].mxu0
        %v4804 = vadd.f32 0.0, %v4803
        %v4805 = vpop.f32.mrb[0].mxu0
        %4806 = vmatprep.mubr.bf16.mxu0 0
        %4807 = vmatmul.mubr.bf16.gmra.mrb[0].mxu0 %v4641
        %v4808 = vpop.f32.mrb[0].mxu0
        %v4809 = vadd.f32 0.0, %v4808
        %v4810 = vpop.f32.mrb[0].mxu0
        %v4811 = vpop.f32.mrb[0].mxu0
        %v4812 = vadd.f32 0.0, %v4811
        %v4813 = vpop.f32.mrb[0].mxu0
        %4814 = vmatprep.mubr.bf16.mxu0 0
        %4815 = vmatmul.mubr.bf16.gmra.mrb[0].mxu0 %v4644
        %v4816 = vpop.f32.mrb[0].mxu0
        %v4817 = vadd.f32 0.0, %v4816
        %v4818 = vpop.f32.mrb[0].mxu0
        %v4819 = vpop.f32.mrb[0].mxu0
        %v4820 = vadd.f32 0.0, %v4819
        %v4821 = vpop.f32.mrb[0].mxu0
        %4822 = vdwg.mxu0
        %4855 = vrot.lane.b32.xlu0 %v4689, 96
        %v4856 = vpop.permute.xlu0 %4855
        %4857 = vrot.lane.b32.xlu0 %v4692, 96
        %v4858 = vpop.permute.xlu0 %4857
        %4859 = vrot.lane.b32.xlu0 %v4697, 96
        %v4860 = vpop.permute.xlu0 %4859
        %4861 = vrot.lane.b32.xlu0 %v4700, 96
        %v4862 = vpop.permute.xlu0 %4861
        %4863 = vrot.lane.b32.xlu0 %v4705, 96
        %v4864 = vpop.permute.xlu0 %4863
        %4865 = vrot.lane.b32.xlu0 %v4708, 96
        %v4866 = vpop.permute.xlu0 %4865
        %4867 = vrot.lane.b32.xlu0 %v4713, 96
        %v4868 = vpop.permute.xlu0 %4867
        %4869 = vrot.lane.b32.xlu0 %v4716, 96
        %v4870 = vpop.permute.xlu0 %4869
        %4871 = vrot.lane.b32.xlu0 %v4721, 96
        %v4872 = vpop.permute.xlu0 %4871
        %4873 = vrot.lane.b32.xlu0 %v4724, 96
        %v4874 = vpop.permute.xlu0 %4873
        %4875 = vrot.lane.b32.xlu0 %v4729, 96
        %v4876 = vpop.permute.xlu0 %4875
        %4877 = vrot.lane.b32.xlu0 %v4732, 96
        %v4878 = vpop.permute.xlu0 %4877
        %4879 = vrot.lane.b32.xlu0 %v4737, 96
        %v4880 = vpop.permute.xlu0 %4879
        %4881 = vrot.lane.b32.xlu0 %v4740, 96
        %v4882 = vpop.permute.xlu0 %4881
        %4883 = vrot.lane.b32.xlu0 %v4745, 96
        %v4884 = vpop.permute.xlu0 %4883
        %4885 = vrot.lane.b32.xlu0 %v4748, 96
        %v4886 = vpop.permute.xlu0 %4885
        %4887 = vrot.lane.b32.xlu0 %v4753, 96
        %v4888 = vpop.permute.xlu0 %4887
        %4889 = vrot.lane.b32.xlu0 %v4756, 96
        %v4890 = vpop.permute.xlu0 %4889
        %4891 = vrot.lane.b32.xlu0 %v4761, 96
        %v4892 = vpop.permute.xlu0 %4891
        %4893 = vrot.lane.b32.xlu0 %v4764, 96
        %v4894 = vpop.permute.xlu0 %4893
        %4895 = vrot.lane.b32.xlu0 %v4769, 96
        %v4896 = vpop.permute.xlu0 %4895
        %4897 = vrot.lane.b32.xlu0 %v4772, 96
        %v4898 = vpop.permute.xlu0 %4897
        %4899 = vrot.lane.b32.xlu0 %v4777, 96
        %v4900 = vpop.permute.xlu0 %4899
        %4901 = vrot.lane.b32.xlu0 %v4780, 96
        %v4902 = vpop.permute.xlu0 %4901
        %4903 = vrot.lane.b32.xlu0 %v4785, 96
        %v4904 = vpop.permute.xlu0 %4903
        %4905 = vrot.lane.b32.xlu0 %v4788, 96
        %v4906 = vpop.permute.xlu0 %4905
        %4907 = vrot.lane.b32.xlu0 %v4793, 96
        %v4908 = vpop.permute.xlu0 %4907
        %4909 = vrot.lane.b32.xlu0 %v4796, 96
        %v4910 = vpop.permute.xlu0 %4909
        %4911 = vrot.lane.b32.xlu0 %v4801, 96
        %v4912 = vpop.permute.xlu0 %4911
        %4913 = vrot.lane.b32.xlu0 %v4804, 96
        %v4914 = vpop.permute.xlu0 %4913
        %4915 = vrot.lane.b32.xlu0 %v4809, 96
        %v4916 = vpop.permute.xlu0 %4915
        %4917 = vrot.lane.b32.xlu0 %v4812, 96
        %v4918 = vpop.permute.xlu0 %4917
        %v4951 = vadd.f32 %v4681, %v4856
        %v4952 = vadd.f32 %v4684, %v4858
        %v4953 = vadd.f32 %v4689, %v4860
        %v4954 = vadd.f32 %v4692, %v4862
        %v4955 = vadd.f32 %v4697, %v4864
        %v4956 = vadd.f32 %v4700, %v4866
        %v4957 = vadd.f32 %v4705, %v4868
        %v4958 = vadd.f32 %v4708, %v4870
        %v4959 = vadd.f32 %v4713, %v4872
        %v4960 = vadd.f32 %v4716, %v4874
        %v4961 = vadd.f32 %v4721, %v4876
        %v4962 = vadd.f32 %v4724, %v4878
        %v4963 = vadd.f32 %v4729, %v4880
        %v4964 = vadd.f32 %v4732, %v4882
        %v4965 = vadd.f32 %v4737, %v4884
        %v4966 = vadd.f32 %v4740, %v4886
        %v4967 = vadd.f32 %v4745, %v4888
        %v4968 = vadd.f32 %v4748, %v4890
        %v4969 = vadd.f32 %v4753, %v4892
        %v4970 = vadd.f32 %v4756, %v4894
        %v4971 = vadd.f32 %v4761, %v4896
        %v4972 = vadd.f32 %v4764, %v4898
        %v4973 = vadd.f32 %v4769, %v4900
        %v4974 = vadd.f32 %v4772, %v4902
        %v4975 = vadd.f32 %v4777, %v4904
        %v4976 = vadd.f32 %v4780, %v4906
        %v4977 = vadd.f32 %v4785, %v4908
        %v4978 = vadd.f32 %v4788, %v4910
        %v4979 = vadd.f32 %v4793, %v4912
        %v4980 = vadd.f32 %v4796, %v4914
        %v4981 = vadd.f32 %v4801, %v4916
        %v4982 = vadd.f32 %v4804, %v4918
        %4985 = vrot.lane.b32.xlu0 %v4697, 64
        %v4986 = vpop.permute.xlu0 %4985
        %4987 = vrot.lane.b32.xlu0 %v4700, 64
        %v4988 = vpop.permute.xlu0 %4987
        %4989 = vrot.lane.b32.xlu0 %v4705, 64
        %v4990 = vpop.permute.xlu0 %4989
        %4991 = vrot.lane.b32.xlu0 %v4708, 64
        %v4992 = vpop.permute.xlu0 %4991
        %4993 = vrot.lane.b32.xlu0 %v4713, 64
        %v4994 = vpop.permute.xlu0 %4993
        %4995 = vrot.lane.b32.xlu0 %v4716, 64
        %v4996 = vpop.permute.xlu0 %4995
        %4997 = vrot.lane.b32.xlu0 %v4721, 64
        %v4998 = vpop.permute.xlu0 %4997
        %4999 = vrot.lane.b32.xlu0 %v4724, 64
        %v5000 = vpop.permute.xlu0 %4999
        %5001 = vrot.lane.b32.xlu0 %v4729, 64
        %v5002 = vpop.permute.xlu0 %5001
        %5003 = vrot.lane.b32.xlu0 %v4732, 64
        %v5004 = vpop.permute.xlu0 %5003
        %5005 = vrot.lane.b32.xlu0 %v4737, 64
        %v5006 = vpop.permute.xlu0 %5005
        %5007 = vrot.lane.b32.xlu0 %v4740, 64
        %v5008 = vpop.permute.xlu0 %5007
        %5009 = vrot.lane.b32.xlu0 %v4745, 64
        %v5010 = vpop.permute.xlu0 %5009
        %5011 = vrot.lane.b32.xlu0 %v4748, 64
        %v5012 = vpop.permute.xlu0 %5011
        %5013 = vrot.lane.b32.xlu0 %v4753, 64
        %v5014 = vpop.permute.xlu0 %5013
        %5015 = vrot.lane.b32.xlu0 %v4756, 64
        %v5016 = vpop.permute.xlu0 %5015
        %5017 = vrot.lane.b32.xlu0 %v4761, 64
        %v5018 = vpop.permute.xlu0 %5017
        %5019 = vrot.lane.b32.xlu0 %v4764, 64
        %v5020 = vpop.permute.xlu0 %5019
        %5021 = vrot.lane.b32.xlu0 %v4769, 64
        %v5022 = vpop.permute.xlu0 %5021
        %5023 = vrot.lane.b32.xlu0 %v4772, 64
        %v5024 = vpop.permute.xlu0 %5023
        %5025 = vrot.lane.b32.xlu0 %v4777, 64
        %v5026 = vpop.permute.xlu0 %5025
        %5027 = vrot.lane.b32.xlu0 %v4780, 64
        %v5028 = vpop.permute.xlu0 %5027
        %5029 = vrot.lane.b32.xlu0 %v4785, 64
        %v5030 = vpop.permute.xlu0 %5029
        %5031 = vrot.lane.b32.xlu0 %v4788, 64
        %v5032 = vpop.permute.xlu0 %5031
        %5033 = vrot.lane.b32.xlu0 %v4793, 64
        %v5034 = vpop.permute.xlu0 %5033
        %5035 = vrot.lane.b32.xlu0 %v4796, 64
        %v5036 = vpop.permute.xlu0 %5035
        %5037 = vrot.lane.b32.xlu0 %v4801, 64
        %v5038 = vpop.permute.xlu0 %5037
        %5039 = vrot.lane.b32.xlu0 %v4804, 64
        %v5040 = vpop.permute.xlu0 %5039
        %5041 = vrot.lane.b32.xlu0 %v4809, 64
        %v5042 = vpop.permute.xlu0 %5041
        %5043 = vrot.lane.b32.xlu0 %v4812, 64
        %v5044 = vpop.permute.xlu0 %5043
        %5045 = vrot.lane.b32.xlu0 %v4817, 64
        %v5046 = vpop.permute.xlu0 %5045
        %5047 = vrot.lane.b32.xlu0 %v4820, 64
        %v5048 = vpop.permute.xlu0 %5047
        %v5081 = vadd.f32 %v4951, %v4986
        %v5082 = vadd.f32 %v4952, %v4988
        %v5083 = vadd.f32 %v4953, %v4990
        %v5084 = vadd.f32 %v4954, %v4992
        %v5085 = vadd.f32 %v4955, %v4994
        %v5086 = vadd.f32 %v4956, %v4996
        %v5087 = vadd.f32 %v4957, %v4998
        %v5088 = vadd.f32 %v4958, %v5000
        %v5089 = vadd.f32 %v4959, %v5002
        %v5090 = vadd.f32 %v4960, %v5004
        %v5091 = vadd.f32 %v4961, %v5006
        %v5092 = vadd.f32 %v4962, %v5008
        %v5093 = vadd.f32 %v4963, %v5010
        %v5094 = vadd.f32 %v4964, %v5012
        %v5095 = vadd.f32 %v4965, %v5014
        %v5096 = vadd.f32 %v4966, %v5016
        %v5097 = vadd.f32 %v4967, %v5018
        %v5098 = vadd.f32 %v4968, %v5020
        %v5099 = vadd.f32 %v4969, %v5022
        %v5100 = vadd.f32 %v4970, %v5024
        %v5101 = vadd.f32 %v4971, %v5026
        %v5102 = vadd.f32 %v4972, %v5028
        %v5103 = vadd.f32 %v4973, %v5030
        %v5104 = vadd.f32 %v4974, %v5032
        %v5105 = vadd.f32 %v4975, %v5034
        %v5106 = vadd.f32 %v4976, %v5036
        %v5107 = vadd.f32 %v4977, %v5038
        %v5108 = vadd.f32 %v4978, %v5040
        %v5109 = vadd.f32 %v4979, %v5042
        %v5110 = vadd.f32 %v4980, %v5044
        %v5111 = vadd.f32 %v4981, %v5046
        %v5112 = vadd.f32 %v4982, %v5048
        %v5113 = vld [vmem:[%s10] sm:$0x1]
        %v5115 = vlaneseq
        %v5116 = vshrl.u32 %v5115, 7
        %v5117 = vsub.s32 0, %v5116
        %v5118 = vrot.slane %v5113, %v5117
        %v5120 = vadd.f32 %v5081, %v5118
        %v5121 = vadd.f32 %v5082, %v5118
        %v5122 = vadd.f32 %v5083, %v5118
        %v5123 = vadd.f32 %v5084, %v5118
        %v5124 = vadd.f32 %v5085, %v5118
        %v5125 = vadd.f32 %v5086, %v5118
        %v5126 = vadd.f32 %v5087, %v5118
        %v5127 = vadd.f32 %v5088, %v5118
        %v5128 = vadd.f32 %v5089, %v5118
        %v5129 = vadd.f32 %v5090, %v5118
        %v5130 = vadd.f32 %v5091, %v5118
        %v5131 = vadd.f32 %v5092, %v5118
        %v5132 = vadd.f32 %v5093, %v5118
        %v5133 = vadd.f32 %v5094, %v5118
        %v5134 = vadd.f32 %v5095, %v5118
        %v5135 = vadd.f32 %v5096, %v5118
        %v5136 = vadd.f32 %v5097, %v5118
        %v5137 = vadd.f32 %v5098, %v5118
        %v5138 = vadd.f32 %v5099, %v5118
        %v5139 = vadd.f32 %v5100, %v5118
        %v5140 = vadd.f32 %v5101, %v5118
        %v5141 = vadd.f32 %v5102, %v5118
        %v5142 = vadd.f32 %v5103, %v5118
        %v5143 = vadd.f32 %v5104, %v5118
        %v5144 = vadd.f32 %v5105, %v5118
        %v5145 = vadd.f32 %v5106, %v5118
        %v5146 = vadd.f32 %v5107, %v5118
        %v5147 = vadd.f32 %v5108, %v5118
        %v5148 = vadd.f32 %v5109, %v5118
        %v5149 = vadd.f32 %v5110, %v5118
        %v5150 = vadd.f32 %v5111, %v5118
        %v5151 = vadd.f32 %v5112, %v5118
        %v5152 = vld [vmem:[%s516] sm:$0xff]
        %v5153 = vld [vmem:[%s516 + $0x8] sm:$0xff]
        %v5154 = vld [vmem:[%s516 + $0x10] sm:$0xff]
        %v5155 = vld [vmem:[%s516 + $0x18] sm:$0xff]
        %v5156 = vld [vmem:[%s516 + $0x20] sm:$0xff]
        %v5157 = vld [vmem:[%s516 + $0x28] sm:$0xff]
        %v5158 = vld [vmem:[%s516 + $0x30] sm:$0xff]
        %v5159 = vld [vmem:[%s516 + $0x38] sm:$0xff]
        %v5160 = vld [vmem:[%s516 + $0x40] sm:$0xff]
        %v5161 = vld [vmem:[%s516 + $0x48] sm:$0xff]
        %v5162 = vld [vmem:[%s516 + $0x50] sm:$0xff]
        %v5163 = vld [vmem:[%s516 + $0x58] sm:$0xff]
        %v5164 = vld [vmem:[%s516 + $0x60] sm:$0xff]
        %v5165 = vld [vmem:[%s516 + $0x68] sm:$0xff]
        %v5166 = vld [vmem:[%s516 + $0x70] sm:$0xff]
        %v5167 = vld [vmem:[%s516 + $0x78] sm:$0xff]
        %v5168 = vld [vmem:[%s516 + $0x80] sm:$0xff]
        %v5169 = vld [vmem:[%s516 + $0x88] sm:$0xff]
        %v5170 = vld [vmem:[%s516 + $0x90] sm:$0xff]
        %v5171 = vld [vmem:[%s516 + $0x98] sm:$0xff]
        %v5172 = vld [vmem:[%s516 + $0xa0] sm:$0xff]
        %v5173 = vld [vmem:[%s516 + $0xa8] sm:$0xff]
        %v5174 = vld [vmem:[%s516 + $0xb0] sm:$0xff]
        %v5175 = vld [vmem:[%s516 + $0xb8] sm:$0xff]
        %v5176 = vld [vmem:[%s516 + $0xc0] sm:$0xff]
        %v5177 = vld [vmem:[%s516 + $0xc8] sm:$0xff]
        %v5178 = vld [vmem:[%s516 + $0xd0] sm:$0xff]
        %v5179 = vld [vmem:[%s516 + $0xd8] sm:$0xff]
        %v5180 = vld [vmem:[%s516 + $0xe0] sm:$0xff]
        %v5181 = vld [vmem:[%s516 + $0xe8] sm:$0xff]
        %v5182 = vld [vmem:[%s516 + $0xf0] sm:$0xff]
        %v5183 = vld [vmem:[%s516 + $0xf8] sm:$0xff]
        %v5184 = vadd.f32 %v5152, %v5120
        %v5185 = vadd.f32 %v5153, %v5121
        %v5186 = vadd.f32 %v5154, %v5122
        %v5187 = vadd.f32 %v5155, %v5123
        %v5188 = vadd.f32 %v5156, %v5124
        %v5189 = vadd.f32 %v5157, %v5125
        %v5190 = vadd.f32 %v5158, %v5126
        %v5191 = vadd.f32 %v5159, %v5127
        %v5192 = vadd.f32 %v5160, %v5128
        %v5193 = vadd.f32 %v5161, %v5129
        %v5194 = vadd.f32 %v5162, %v5130
        %v5195 = vadd.f32 %v5163, %v5131
        %v5196 = vadd.f32 %v5164, %v5132
        %v5197 = vadd.f32 %v5165, %v5133
        %v5198 = vadd.f32 %v5166, %v5134
        %v5199 = vadd.f32 %v5167, %v5135
        %v5200 = vadd.f32 %v5168, %v5136
        %v5201 = vadd.f32 %v5169, %v5137
        %v5202 = vadd.f32 %v5170, %v5138
        %v5203 = vadd.f32 %v5171, %v5139
        %v5204 = vadd.f32 %v5172, %v5140
        %v5205 = vadd.f32 %v5173, %v5141
        %v5206 = vadd.f32 %v5174, %v5142
        %v5207 = vadd.f32 %v5175, %v5143
        %v5208 = vadd.f32 %v5176, %v5144
        %v5209 = vadd.f32 %v5177, %v5145
        %v5210 = vadd.f32 %v5178, %v5146
        %v5211 = vadd.f32 %v5179, %v5147
        %v5212 = vadd.f32 %v5180, %v5148
        %v5213 = vadd.f32 %v5181, %v5149
        %v5214 = vadd.f32 %v5182, %v5150
        %v5215 = vadd.f32 %v5183, %v5151
        %5216 = vst.msk [vmem:[%s516] sm:$0xff] %vm986, %v5184
        %5217 = vst.msk [vmem:[%s516 + $0x8] sm:$0xff] %vm986, %v5185
        %5218 = vst.msk [vmem:[%s516 + $0x10] sm:$0xff] %vm986, %v5186
        %5219 = vst.msk [vmem:[%s516 + $0x18] sm:$0xff] %vm986, %v5187
        %5220 = vst.msk [vmem:[%s516 + $0x20] sm:$0xff] %vm986, %v5188
        %5221 = vst.msk [vmem:[%s516 + $0x28] sm:$0xff] %vm986, %v5189
        %5222 = vst.msk [vmem:[%s516 + $0x30] sm:$0xff] %vm986, %v5190
        %5223 = vst.msk [vmem:[%s516 + $0x38] sm:$0xff] %vm986, %v5191
        %5224 = vst.msk [vmem:[%s516 + $0x40] sm:$0xff] %vm986, %v5192
        %5225 = vst.msk [vmem:[%s516 + $0x48] sm:$0xff] %vm986, %v5193
        %5226 = vst.msk [vmem:[%s516 + $0x50] sm:$0xff] %vm986, %v5194
        %5227 = vst.msk [vmem:[%s516 + $0x58] sm:$0xff] %vm986, %v5195
        %5228 = vst.msk [vmem:[%s516 + $0x60] sm:$0xff] %vm986, %v5196
        %5229 = vst.msk [vmem:[%s516 + $0x68] sm:$0xff] %vm986, %v5197
        %5230 = vst.msk [vmem:[%s516 + $0x70] sm:$0xff] %vm986, %v5198
        %5231 = vst.msk [vmem:[%s516 + $0x78] sm:$0xff] %vm986, %v5199
        %5232 = vst.msk [vmem:[%s516 + $0x80] sm:$0xff] %vm986, %v5200
        %5233 = vst.msk [vmem:[%s516 + $0x88] sm:$0xff] %vm986, %v5201
        %5234 = vst.msk [vmem:[%s516 + $0x90] sm:$0xff] %vm986, %v5202
        %5235 = vst.msk [vmem:[%s516 + $0x98] sm:$0xff] %vm986, %v5203
        %5236 = vst.msk [vmem:[%s516 + $0xa0] sm:$0xff] %vm986, %v5204
        %5237 = vst.msk [vmem:[%s516 + $0xa8] sm:$0xff] %vm986, %v5205
        %5238 = vst.msk [vmem:[%s516 + $0xb0] sm:$0xff] %vm986, %v5206
        %5239 = vst.msk [vmem:[%s516 + $0xb8] sm:$0xff] %vm986, %v5207
        %5240 = vst.msk [vmem:[%s516 + $0xc0] sm:$0xff] %vm986, %v5208
        %5241 = vst.msk [vmem:[%s516 + $0xc8] sm:$0xff] %vm986, %v5209
        %5242 = vst.msk [vmem:[%s516 + $0xd0] sm:$0xff] %vm986, %v5210
        %5243 = vst.msk [vmem:[%s516 + $0xd8] sm:$0xff] %vm986, %v5211
        %5244 = vst.msk [vmem:[%s516 + $0xe0] sm:$0xff] %vm986, %v5212
        %5245 = vst.msk [vmem:[%s516 + $0xe8] sm:$0xff] %vm986, %v5213
        %5246 = vst.msk [vmem:[%s516 + $0xf0] sm:$0xff] %vm986, %v5214
        %5247 = vst.msk [vmem:[%s516 + $0xf8] sm:$0xff] %vm986, %v5215
        %s5248 = sand.u32 %s283, 1
        %s5249 = scalar_lea.sflag [#allocation5], %s5248
        %s5250 = sand.u32 %s283, 1
        %s5251 = smul.addr %s5250, 256
        %s5252 = scalar_lea.vmem [#allocation16], %s5251
        // Predicated region
        $region93: #{tpu_custom_call.1} parent=63 // pred_check
          %p5253 = pneg %p293
        $region94: #{tpu_custom_call.1} parent=63 // pred_check_branch
          %5255 = sbr.rel (%p5253) target = $region96
        $region95: #{tpu_custom_call.1} parent=63 // pred_region
          %s5257 = ssub.s32 4096, 4096
          %5258 = vsyncadd %s5249, %s5257
          %s5259 = smul.addr %s34, 32
          %s5260 = smul.addr %s5259, 128
          %s5261 = scalar_lea.hbm %s11, %s5260
          %s5262 = sshll.u32 %s5252, 4
          %s5263 = int_to_ptr.vmem [resolvable:$true] %s5262
          %5268 = dma.vmem_to_hbm [thread:$0]  %s5263, 4096, %s5261, %s5249, 128, 128, 8
        $region96: #{tpu_custom_call.1} parent=63 // pred_fallthru
          _
      $region64: #{tpu_custom_call.1} parent=5 // pred_fallthru
        _
      %p5269 = scmp.le.s32.totalorder 2, %s29
      // Predicated region
      $region97: #{tpu_custom_call.1} parent=5 // pred_check
        %p5270 = pneg %p5269
      $region98: #{tpu_custom_call.1} parent=5 // pred_check_branch
        %5272 = sbr.rel (%p5270) target = $region100
      $region99: #{tpu_custom_call.1} parent=5 // pred_region
        %s5273 = ssub.s32 %s29, 2
        // Predicated region
        $region101: #{tpu_custom_call.1} parent=99 // pred_check
          %p5274 = pneg %p299
        $region102: #{tpu_custom_call.1} parent=99 // pred_check_branch
          %5276 = sbr.rel (%p5274) target = $region104
        $region103: #{tpu_custom_call.1} parent=99 // pred_region
          %s5277 = sand.u32 %s284, 1
          %s5278 = scalar_lea.sflag [#allocation5], %s5277
          %s5279 = sand.u32 %s284, 1
          %s5280 = smul.addr %s5279, 256
          %s5281 = scalar_lea.vmem [#allocation16], %s5280
          %5282 = dma.done %s5278, 4096
        $region104: #{tpu_custom_call.1} parent=99 // pred_fallthru
          _
      $region100: #{tpu_custom_call.1} parent=5 // pred_fallthru
        _
    $region6: #{tpu_custom_call.1} parent=1 // loop_footer
      %s33 = sadd.s32 1, %s29
    $region7: #{tpu_custom_call.1} parent=1 // loop_footer_branch
      %28 = sbr.rel target = $region3
    $region8: #{tpu_custom_call.1} parent=1 // loop_exit
      _
    %5283 = vsyncpa [#allocation4], 1
    %s5284 = scalar_lea.sflag [#allocation4], 1
    %5285 = vsyncpa %s5284, 1
    %5286 = vsyncpa [#allocation8], 1
    %s5287 = scalar_lea.sflag [#allocation8], 1
    %5288 = vsyncpa %s5287, 1
    %5289 = vsyncpa [#allocation12], 1
    %5290 = vsyncpa [#allocation15], 1
    %5291 = vsyncpa [#allocation5], 1
    %s5292 = scalar_lea.sflag [#allocation5], 1
    %5293 = vsyncpa %s5292, 1
    %5294 = vsyncpa [#allocation6], 1
    %s5295 = scalar_lea.sflag [#allocation6], 1
    %5296 = vsyncpa %s5295, 1

</llo_original>
